<compile_context>
chip_gen: v5e
topology: v5e:2x2
jax: 0.10.0
libtpu: 0.0.40
codegen_flags: <defaults>
</compile_context>

<pallas_src>
import functools
import math

import jax
import jax.numpy as jnp
from jax.experimental import pallas as pl
from jax.experimental.pallas import tpu as pltpu


_LANES = 128
# Lane tile for the conv GEMMs. 512 keeps double-buffered blocks tiny on v7x (64 MiB
# VMEM); on v6e/v5e this could be raised to 1024-2048 for slightly better roofline.
_GEMM_TN = 512
# Set to jnp.bfloat16 on v6e/v7x to halve GEMM HBM traffic (f32 accumulation is kept
# via preferred_element_type); default f32 preserves PyTorch numerics.
_MXU_DTYPE = jnp.float32
_INV_LOG2 = 1.0 / math.log(2.0)


def _round_up(n, m):
    return ((n + m - 1) // m) * m


# ----------------------------------------------------------------------------------
# Pallas kernels
# ----------------------------------------------------------------------------------

def _gemm_kernel(w_ref, x_ref, b_ref, o_ref, *, act):
    """(Cout, K) @ (K, tn) + bias with fused activation.  tn (the spatial dim) is the
    lane axis -> unmasked full-width stores and a well-utilized MXU N dimension."""
    acc = jnp.dot(w_ref[...], x_ref[...], preferred_element_type=jnp.float32)
    acc = acc + b_ref[...]
    if act == "relu":
        acc = jnp.maximum(acc, 0.0)
    elif act == "leaky_relu":
        acc = jnp.where(acc >= 0.0, acc, 0.01 * acc)   # nn.LeakyReLU default slope
    o_ref[...] = acc.astype(o_ref.dtype)


def _entropy_max_kernel(px_ref, eta_ref):
    """Pass 1 of Dyna_Enc: global max of hx = clamp_min(-log2(px), 0) (grid reduction)."""
    @pl.when(pl.program_id(0) == 0)
    def _():
        eta_ref[...] = jnp.full((1, 1), -jnp.inf, jnp.float32)
    hx = jnp.maximum(-jnp.log(px_ref[...]) * _INV_LOG2, 0.0)
    bmax = jnp.max(jnp.max(hx, axis=1, keepdims=True), axis=0, keepdims=True)
    eta_ref[...] = jnp.maximum(eta_ref[...], bmax)


def _dyna_mask_kernel(x_ref, px_ref, eta_ref, o_ref):
    """Pass 2 of Dyna_Enc: keep only entries whose entropy reaches the global max."""
    hx = jnp.maximum(-jnp.log(px_ref[...]) * _INV_LOG2, 0.0)
    mask = (hx >= eta_ref[...]).astype(jnp.float32)
    o_ref[...] = x_ref[...] * mask


def _gauss_box_prob_kernel(y_ref, mu_ref, sc_ref, p_ref):
    """P = Phi((y+.5-mu)/s) - Phi((y-.5-mu)/s); tanh-based normal CDF (Mosaic-friendly).
    TODO(synk): tanh approximation of erf (error ~1e-3) stands in for the exact CDF."""
    y = y_ref[...]
    mu = mu_ref[...]
    sigma = jnp.maximum(jnp.abs(sc_ref[...]), 1e-6)
    inv_sigma = pl.reciprocal(sigma, approx=True)

    def ncdf(z):
        c = 0.7978845608028654  # sqrt(2/pi)
        return 0.5 * (1.0 + jnp.tanh(c * (z + 0.044715 * z * z * z)))

    d = (y - mu) * inv_sigma
    h = 0.5 * inv_sigma
    p_ref[...] = jnp.maximum(ncdf(d + h) - ncdf(d - h), 1e-9)


def _fusion_kernel(xlq_ref, xrq_ref, xl_ref, xr_ref, kmask_ref,
                   wq_ref, wk_ref, wv_ref, wo_ref,
                   g1_ref, b1_ref, g2_ref, b2_ref, ol_ref, or_ref, *, scale):
    """Fusion: LayerNorm + cross attention + Wo projection + residual.
    Tiled over query blocks; full keys/values stay resident (constant block index)."""
    xlq = xlq_ref[...]          # (B, tq, C) raw query block (for residual)
    xrq = xrq_ref[...]
    xl = xl_ref[...]            # (B, Tp, C) full (resident across the grid)
    xr = xr_ref[...]
    kmask = kmask_ref[...]      # (1, Tp, 1): zero out padded key tokens

    g1 = g1_ref[...]; b1 = b1_ref[...]
    g2 = g2_ref[...]; b2 = b2_ref[...]

    def ln(x, g, b):
        mu = jnp.mean(x, axis=-1, keepdims=True)
        var = jnp.mean((x - mu) ** 2, axis=-1, keepdims=True)
        return (x - mu) * jax.lax.rsqrt(var + 1e-5) * g + b

    Wq = wq_ref[...]; Wk = wk_ref[...]; Wv = wv_ref[...]; Wo = wo_ref[...]

    def proj(x3, W):
        B, n, C = x3.shape
        y = jnp.dot(x3.reshape(B * n, C), W, preferred_element_type=jnp.float32)
        return y.reshape(B, n, C)

    xlnq_l = ln(xlq, g1, b1)
    xlnq_r = ln(xrq, g2, b2)
    xln_l = ln(xl, g1, b1)
    xln_r = ln(xr, g2, b2)

    Q_l = proj(xlnq_l, Wq)
    Q_r = proj(xlnq_r, Wq)
    K_l = proj(xln_l, Wk)
    K_r = proj(xln_r, Wk)
    V_l = proj(xln_l, Wv) * kmask
    V_r = proj(xln_r, Wv) * kmask

    A_l = jnp.einsum('btc,bsc->bts', Q_l, K_r, preferred_element_type=jnp.float32) * scale
    A_r = jnp.einsum('btc,bsc->bts', Q_r, K_l, preferred_element_type=jnp.float32) * scale

    # nn.Softmax() (dim=None) applied to a 3-D tensor uses dim=0 in PyTorch
    # (_get_softmax_dim); reproduce that exact (batch-axis) softmax.
    def softmax0(a):
        m = jnp.max(a, axis=0, keepdims=True)
        e = jnp.exp(a - m)
        return e / jnp.sum(e, axis=0, keepdims=True)

    S_l = softmax0(A_l)
    S_r = softmax0(A_r)

    attn_l = jnp.einsum('bts,bsc->btc', S_l, V_l, preferred_element_type=jnp.float32)
    attn_r = jnp.einsum('bts,bsc->btc', S_r, V_r, preferred_element_type=jnp.float32)

    ol_ref[...] = (proj(attn_l, Wo) + xlq).astype(ol_ref.dtype)
    or_ref[...] = (proj(attn_r, Wo) + xrq).astype(or_ref.dtype)


# ----------------------------------------------------------------------------------
# GEMM / elementwise wrappers
# ----------------------------------------------------------------------------------

def gemm_bias_act_T(wmat, colT, b, act="none"):
    """out (Cout, M) = wmat (Cout, K) @ colT (K, M) + b, fused activation.
    Tiled over the lane (M) axis with a padded grid (no whole-matrix fallback)."""
    Cout, K = wmat.shape
    M = colT.shape[1]
    tn = min(_GEMM_TN, _round_up(M, _LANES))
    Mp = _round_up(M, tn)
    if Mp != M:
        colT = jnp.pad(colT, ((0, 0), (0, Mp - M)))
    out = pl.pallas_call(
        functools.partial(_gemm_kernel, act=act),
        out_shape=jax.ShapeDtypeStruct((Cout, Mp), jnp.float32),
        grid=(Mp // tn,),
        in_specs=[pl.BlockSpec((Cout, K), lambda i: (0, 0)),
                  pl.BlockSpec((K, tn), lambda i: (0, i)),
                  pl.BlockSpec((Cout, 1), lambda i: (0, 0))],
        out_specs=pl.BlockSpec((Cout, tn), lambda i: (0, i)),
        compiler_params=pltpu.CompilerParams(dimension_semantics=("parallel",)),
    )(wmat.astype(_MXU_DTYPE), colT.astype(_MXU_DTYPE), b.reshape(Cout, 1))
    return out[:, :M] if Mp != M else out


def _ew_layout(n, max_rows=1024):
    rows = pl.cdiv(n, _LANES)
    br = min(max_rows, _round_up(rows, 8))
    rows_p = _round_up(rows, br)
    return rows_p, br


def _as_tiles(a, rows_p, fill):
    n = a.size
    flat = a.reshape(-1)
    pad = rows_p * _LANES - n
    if pad:
        flat = jnp.pad(flat, (0, pad), constant_values=fill)
    return flat.reshape(rows_p, _LANES)


def gauss_box_prob(y, mu, scale):
    shape = y.shape
    n = y.size
    rows_p, br = _ew_layout(n)
    yt = _as_tiles(y, rows_p, 0.0)
    mt = _as_tiles(mu, rows_p, 0.0)
    st = _as_tiles(scale, rows_p, 1.0)
    spec = pl.BlockSpec((br, _LANES), lambda i: (i, 0))
    out = pl.pallas_call(
        _gauss_box_prob_kernel,
        out_shape=jax.ShapeDtypeStruct((rows_p, _LANES), jnp.float32),
        grid=(rows_p // br,),
        in_specs=[spec, spec, spec],
        out_specs=spec,
        compiler_params=pltpu.CompilerParams(dimension_semantics=("parallel",)),
    )(yt, mt, st)
    return out.reshape(-1)[:n].reshape(shape)


def dyna_enc(x, px):
    """Dyna_Enc forward.  The masking is elementwise given the global max, so the
    NCHW<->NHWC permutes of the original are unnecessary; work on a lane-dense
    (rows, 128) tiling of the flat tensor."""
    shape = x.shape
    n = x.size
    rows_p, br = _ew_layout(n)
    xt = _as_tiles(x, rows_p, 0.0)
    pt = _as_tiles(px, rows_p, 1.0)          # pad hx = 0 <= true max (hx >= 0): safe
    spec = pl.BlockSpec((br, _LANES), lambda i: (i, 0))
    grid = (rows_p // br,)
    eta = pl.pallas_call(
        _entropy_max_kernel,
        out_shape=jax.ShapeDtypeStruct((1, 1), jnp.float32),
        grid=grid,
        in_specs=[spec],
        out_specs=pl.BlockSpec((1, 1), lambda i: (0, 0)),
        compiler_params=pltpu.CompilerParams(dimension_semantics=("arbitrary",)),
    )(pt)
    out = pl.pallas_call(
        _dyna_mask_kernel,
        out_shape=jax.ShapeDtypeStruct((rows_p, _LANES), jnp.float32),
        grid=grid,
        in_specs=[spec, spec, pl.BlockSpec((1, 1), lambda i: (0, 0))],
        out_specs=spec,
        compiler_params=pltpu.CompilerParams(dimension_semantics=("parallel",)),
    )(xt, pt, eta)
    return out.reshape(-1)[:n].reshape(shape)


# ----------------------------------------------------------------------------------
# Conv / ConvTranspose via (transposed) im2col + Pallas GEMM
# ----------------------------------------------------------------------------------

def _im2col_T(x, kh, kw, stride, pad):
    """x:(B,C,H,W) -> col_T:(C*kh*kw, B*Ho*Wo); K ordered (c, kh, kw) like PyTorch
    weights, M ordered (b, ho, wo).  The channel transpose happens on the input
    (before the kh*kw replication), keeping layout churn small."""
    B, C, H, W = x.shape
    xp = jnp.pad(x, ((0, 0), (0, 0), (pad, pad), (pad, pad)))
    Ho = (H + 2 * pad - kh) // stride + 1
    Wo = (W + 2 * pad - kw) // stride + 1
    xt = xp.transpose(1, 0, 2, 3)                       # (C, B, Hp, Wp)
    cols = [xt[:, :, i:i + stride * Ho:stride, j:j + stride * Wo:stride]
            for i in range(kh) for j in range(kw)]
    col = jnp.stack(cols, axis=1)                       # (C, kh*kw, B, Ho, Wo)
    return col.reshape(C * kh * kw, B * Ho * Wo), Ho, Wo


def conv2d(x, w, b, stride, pad, act="none"):
    """PyTorch-semantics Conv2d. w:(Cout,Cin,kh,kw), x:(B,Cin,H,W) -> (B,Cout,Ho,Wo)."""
    B = x.shape[0]
    Cout, _, kh, kw = w.shape
    colT, Ho, Wo = _im2col_T(x, kh, kw, stride, pad)
    outT = gemm_bias_act_T(w.reshape(Cout, -1), colT, b, act=act)   # (Cout, B*Ho*Wo)
    return outT.reshape(Cout, B, Ho, Wo).transpose(1, 0, 2, 3)


# phase p -> list of (3-tap conv position u, original kernel tap index)
_PHASE_TAPS = {0: ((0, 4), (1, 2), (2, 0)), 1: ((1, 3), (2, 1))}


def _deconv5s2_to_conv3(w):
    """Pack a ConvTranspose2d(k=5,s=2,p=2,op=1) weight (Cin,Cout,5,5) into an equivalent
    stride-1 3x3 conv weight of shape (4*Cout, Cin, 3, 3) (one channel block per output
    phase), so no zero-dilated input / wasted MXU work is needed."""
    Cin, Cout = w.shape[0], w.shape[1]
    w_ps = jnp.zeros((2, 2, Cout, Cin, 3, 3), w.dtype)
    for p in (0, 1):
        for q in (0, 1):
            for u, a in _PHASE_TAPS[p]:
                for v, c in _PHASE_TAPS[q]:
                    w_ps = w_ps.at[p, q, :, :, u, v].set(w[:, :, a, c].T)
    return w_ps.reshape(4 * Cout, Cin, 3, 3)


def conv_transpose2d_s2(x, w, b, act="none"):
    """ConvTranspose2d(kernel=5, stride=2, padding=2, output_padding=1) as one stride-1
    3x3 conv over a 4x channel bank followed by a depth-to-space pixel shuffle."""
    B, _, H, W = x.shape
    Cout = w.shape[1]
    y = conv2d(x, _deconv5s2_to_conv3(w), jnp.tile(b, 4), stride=1, pad=1, act=act)
    y = y.reshape(B, 2, 2, Cout, H, W).transpose(0, 3, 4, 1, 5, 2)
    return y.reshape(B, Cout, 2 * H, 2 * W)


def conv_transpose2d_s1(x, w, b, pad, act="none"):
    """Stride-1 ConvTranspose2d == regular conv with flipped kernel, pad = k-1-pad."""
    k = w.shape[2]
    w_eq = jnp.flip(w, axis=(2, 3)).transpose(1, 0, 2, 3)
    return conv2d(x, w_eq, b, stride=1, pad=k - 1 - pad, act=act)


# ----------------------------------------------------------------------------------
# Module-level forwards
# ----------------------------------------------------------------------------------

def channel_attention(x, p):
    """AdaptiveAvgPool2d(1) + 1x1 conv.  Tiny (B x C @ C x C): plain jnp, a Pallas call
    here would be pure launch/DMA overhead."""
    B = x.shape[0]
    pooled = jnp.mean(x, axis=(2, 3))                       # (B, C)
    wmat = p['w'].reshape(p['w'].shape[0], -1)              # (Cout, C)
    out = pooled @ wmat.T + p['b']
    return out.reshape(B, -1, 1, 1)


def enc_forward(p, x):
    x1 = conv2d(x, p['conv1']['w'], p['conv1']['b'], 2, 2, act="relu")
    x1 = x1 * channel_attention(x1, p['ca1'])
    x2 = conv2d(x1, p['conv2']['w'], p['conv2']['b'], 2, 2, act="relu")
    x2 = x2 * channel_attention(x2, p['ca2'])
    x3 = conv2d(x2, p['conv3']['w'], p['conv3']['b'], 2, 2, act="relu")
    x3 = x3 * channel_attention(x3, p['ca3'])
    return conv2d(x3, p['conv4']['w'], p['conv4']['b'], 1, 1, act="none")


def hyper_enc_forward(p, x):
    x = jnp.abs(x)
    x1 = conv2d(x, p['conv1']['w'], p['conv1']['b'], 1, 0, act="relu")
    x2 = conv2d(x1, p['conv2']['w'], p['conv2']['b'], 2, 2, act="relu")
    return conv2d(x2, p['conv3']['w'], p['conv3']['b'], 2, 2, act="none")


def hyper_dec_forward(p, x):
    x1 = conv_transpose2d_s2(x, p['conv1']['w'], p['conv1']['b'], act="relu")
    x2 = conv_transpose2d_s2(x1, p['conv2']['w'], p['conv2']['b'], act="relu")
    return conv_transpose2d_s1(x2, p['conv3']['w'], p['conv3']['b'], 1, act="relu")


def dec_forward(p, s_l, s_r):
    def half(x, sfx):
        x1 = conv_transpose2d_s2(x, p['conv1' + sfx]['w'], p['conv1' + sfx]['b'], act="leaky_relu")
        x2 = conv_transpose2d_s2(x1, p['conv2' + sfx]['w'], p['conv2' + sfx]['b'], act="leaky_relu")
        x3 = conv_transpose2d_s2(x2, p['conv3' + sfx]['w'], p['conv3' + sfx]['b'], act="leaky_relu")
        return conv_transpose2d_s2(x3, p['conv4' + sfx]['w'], p['conv4' + sfx]['b'], act="none")
    return half(s_l, ''), half(s_r, 'r')


def fusion_forward(p, x_l, x_r):
    B, C, H, W = x_l.shape
    T = H * W
    xl = x_l.reshape(B, C, T).transpose(0, 2, 1)        # (B, T, C)
    xr = x_r.reshape(B, C, T).transpose(0, 2, 1)
    tq = min(512, _round_up(T, 8))
    Tp = _round_up(T, tq)
    if Tp != T:
        xl = jnp.pad(xl, ((0, 0), (0, Tp - T), (0, 0)))
        xr = jnp.pad(xr, ((0, 0), (0, Tp - T), (0, 0)))
    kmask = (jnp.arange(Tp) < T).astype(jnp.float32).reshape(1, Tp, 1)
    scale = 1.0 / math.sqrt(C)

    qspec = pl.BlockSpec((B, tq, C), lambda i: (0, i, 0))
    fspec = pl.BlockSpec((B, Tp, C), lambda i: (0, 0, 0))
    mspec = pl.BlockSpec((1, Tp, 1), lambda i: (0, 0, 0))
    wspec = pl.BlockSpec((C, C), lambda i: (0, 0))
    vspec = pl.BlockSpec((1, 1, C), lambda i: (0, 0, 0))

    ol, orr = pl.pallas_call(
        functools.partial(_fusion_kernel, scale=scale),
        out_shape=(jax.ShapeDtypeStruct((B, Tp, C), jnp.float32),
                   jax.ShapeDtypeStruct((B, Tp, C), jnp.float32)),
        grid=(Tp // tq,),
        in_specs=[qspec, qspec, fspec, fspec, mspec,
                  wspec, wspec, wspec, wspec,
                  vspec, vspec, vspec, vspec],
        out_specs=(qspec, qspec),
        compiler_params=pltpu.CompilerParams(dimension_semantics=("parallel",)),
    )(xl, xr, xl, xr, kmask, p['Wq'], p['Wk'], p['Wv'], p['Wo'],
      p['g1'].reshape(1, 1, C), p['b1'].reshape(1, 1, C),
      p['g2'].reshape(1, 1, C), p['b2'].reshape(1, 1, C))

    ol = ol[:, :T].transpose(0, 2, 1).reshape(B, C, H, W)
    orr = orr[:, :T].transpose(0, 2, 1).reshape(B, C, H, W)
    return ol, orr


def image_encdec_forward(p, x, if_training):
    y_main = enc_forward(p['enc'], x)
    y_hyper = hyper_enc_forward(p['henc'], y_main)

    # TODO(synk): Entropy_bottleneck class is not defined in the source file; replaced by
    # round/uniform-noise quantization + standard-normal box probability placeholder.
    if if_training:
        key = jax.random.PRNGKey(1)
        y_hyper_q = y_hyper + jax.random.uniform(key, y_hyper.shape, minval=-0.5, maxval=0.5)
    else:
        y_hyper_q = jnp.round(y_hyper)
    p_hyper = gauss_box_prob(y_hyper_q, jnp.zeros_like(y_hyper_q), jnp.ones_like(y_hyper_q))

    gaussian_params = hyper_dec_forward(p['hdec'], y_hyper_q)

    if if_training:
        key = jax.random.PRNGKey(2)
        y_main_q = y_main + jax.random.uniform(key, y_main.shape, minval=-0.5, maxval=0.5)
    else:
        y_main_q = jnp.round(y_main)

    # TODO(synk): Distribution_for_entropy2 class is not defined in the source; using the
    # standard mean/scale split + Gaussian box probability.
    C = y_main.shape[1]
    mean, scale = gaussian_params[:, :C], gaussian_params[:, C:]
    p_main = gauss_box_prob(y_main_q, mean, scale)
    return y_main, p_main, p_hyper, y_main_q, gaussian_params


def image_coding_forward(params, x_l, x_r, if_training=False):
    y_main_l, p_main_l, p_hyper_l, _, _ = image_encdec_forward(params['enc_l'], x_l, if_training)
    y_main_r, p_main_r, p_hyper_r, _, _ = image_encdec_forward(params['enc_r'], x_r, if_training)

    y_l = dyna_enc(y_main_l, p_main_l)
    y_r = dyna_enc(y_main_r, p_main_r)

    # TODO(synk): Channel(5) class is not defined in the source file; identity pass-through.
    s_l, s_r = y_l, y_r

    sf_l, sf_r = fusion_forward(params['fusion'], s_l, s_r)
    out_l, out_r = dec_forward(params['dec'], sf_l, sf_r)
    return out_l, out_r, p_main_l, p_hyper_l, p_main_r, p_hyper_r


# ----------------------------------------------------------------------------------
# Deterministic parameter initialization (shapes follow the module __init__)
# ----------------------------------------------------------------------------------

class _KeyGen:
    def __init__(self, key):
        self.key = key

    def __call__(self):
        self.key, sub = jax.random.split(self.key)
        return sub


def init_params(key, *, M1=8, M=8, N2=4, num_features=3):
    kg = _KeyGen(key)

    def conv_p(cout, cin, k):
        fan_in = cin * k * k
        w = jax.random.normal(kg(), (cout, cin, k, k), jnp.float32) * math.sqrt(2.0 / fan_in)
        b = jax.random.normal(kg(), (cout,), jnp.float32) * 0.01
        return {'w': w, 'b': b}

    def convT_p(cin, cout, k):
        fan_in = cin * k * k
        w = jax.random.normal(kg(), (cin, cout, k, k), jnp.float32) * math.sqrt(2.0 / fan_in)
        b = jax.random.normal(kg(), (cout,), jnp.float32) * 0.01
        return {'w': w, 'b': b}

    def encdec_p():
        return {
            'enc': {'conv1': conv_p(M1, num_features, 5), 'conv2': conv_p(M1, M1, 5),
                    'conv3': conv_p(M1, M1, 5), 'conv4': conv_p(N2, M1, 3),
                    'ca1': conv_p(M1, M1, 1), 'ca2': conv_p(M1, M1, 1), 'ca3': conv_p(M1, M1, 1)},
            'henc': {'conv1': conv_p(M, N2, 3), 'conv2': conv_p(M, M, 5), 'conv3': conv_p(N2, M, 5)},
            'hdec': {'conv1': convT_p(N2, M, 5), 'conv2': convT_p(M, M, 5), 'conv3': convT_p(M, 2 * N2, 3)},
        }

    # Decoder Dec(num_features, M, N2): N=N2, M1=M inside Dec.
    dec = {}
    for sfx in ('', 'r'):
        dec['conv1' + sfx] = convT_p(N2, M, 5)
        dec['conv2' + sfx] = convT_p(M, M, 5)
        dec['conv3' + sfx] = convT_p(M, M, 5)
        dec['conv4' + sfx] = convT_p(M, 3, 5)

    # Fusion(N2): kaiming_normal(a=sqrt(5)) -> std = sqrt(2/(1+5)) / sqrt(fan_in)
    std = math.sqrt(2.0 / 6.0) / math.sqrt(N2)
    fusion = {
        'Wq': jax.random.normal(kg(), (N2, N2), jnp.float32) * std,
        'Wk': jax.random.normal(kg(), (N2, N2), jnp.float32) * std,
        'Wv': jax.random.normal(kg(), (N2, N2), jnp.float32) * std,
        'Wo': jax.random.normal(kg(), (N2, N2), jnp.float32) * std,
        'g1': jnp.ones((N2,), jnp.float32), 'b1': jnp.zeros((N2,), jnp.float32),
        'g2': jnp.ones((N2,), jnp.float32), 'b2': jnp.zeros((N2,), jnp.float32),
    }

    return {'enc_l': encdec_p(), 'enc_r': encdec_p(), 'dec': dec, 'fusion': fusion}


# ----------------------------------------------------------------------------------

if __name__ == "__main__":
    # Small shapes: B=1, 3-channel 32x32 stereo pair; M1=8, M=8, N2=4.
    key = jax.random.PRNGKey(0)
    k_p, k_l, k_r = jax.random.split(key, 3)
    params = init_params(k_p, M1=8, M=8, N2=4, num_features=3)

    x_l = jax.random.normal(k_l, (1, 3, 32, 32), jnp.float32)
    x_r = jax.random.normal(k_r, (1, 3, 32, 32), jnp.float32)

    fwd = jax.jit(image_coding_forward, static_argnames=('if_training',))
    out_l, out_r, p_main_l, p_hyper_l, p_main_r, p_hyper_r = fwd(
        params, x_l, x_r, if_training=False)

    jax.block_until_ready((out_l, out_r, p_main_l, p_hyper_l, p_main_r, p_hyper_r))
    assert out_l.shape == (1, 3, 64, 64) and out_r.shape == (1, 3, 64, 64)
    assert p_main_l.shape == (1, 4, 4, 4) and p_hyper_l.shape == (1, 4, 1, 1)
    print("KERNEL_OK")
</pallas_src>

<mosaic_0001>
module attributes {stable_mosaic.version = 11 : i64} {
  func.func @_gemm_kernel(%arg0: i32, %arg1: memref<8x75xf32, #tpu.memory_space<vmem>>, %arg2: memref<75x256xf32, #tpu.memory_space<vmem>>, %arg3: memref<8x1xf32, #tpu.memory_space<vmem>>, %arg4: memref<8x256xf32, #tpu.memory_space<vmem>>) attributes {dimension_semantics = [#tpu.dimension_semantics<parallel>], iteration_bounds = array<i64: 1>, scalar_prefetch = 0 : i64, scratch_operands = 0 : i64, tpu.core_type = #tpu.core_type<tc>, window_params = [{pipeline_mode = #tpu.pipeline_mode<synchronous>, transform_indices = @transform_0, window_bounds = array<i64: 8, 75>}, {transform_indices = @transform_1, window_bounds = array<i64: 75, 256>}, {pipeline_mode = #tpu.pipeline_mode<synchronous>, transform_indices = @transform_2, window_bounds = array<i64: 8, 1>}, {transform_indices = @transform_3, window_bounds = array<i64: 8, 256>}]} {
    %c0 = arith.constant 0 : index
    %c0_0 = arith.constant 0 : index
    %0 = vector.load %arg1[%c0, %c0_0] : memref<8x75xf32, #tpu.memory_space<vmem>>, vector<8x75xf32>
    %c0_1 = arith.constant 0 : index
    %c0_2 = arith.constant 0 : index
    %1 = vector.load %arg2[%c0_1, %c0_2] : memref<75x256xf32, #tpu.memory_space<vmem>>, vector<75x256xf32>
    %cst = arith.constant dense<0.000000e+00> : vector<8x256xf32>
    %2 = tpu.matmul %0, %1, %cst {dimension_numbers = #tpu.dot_dimension_numbers<[1], [0], [0], [1], [0, 0, 1, 1], [], []>} : vector<8x75xf32>, vector<75x256xf32>, vector<8x256xf32> -> vector<8x256xf32>
    %c0_3 = arith.constant 0 : index
    %c0_4 = arith.constant 0 : index
    %3 = vector.load %arg3[%c0_3, %c0_4] : memref<8x1xf32, #tpu.memory_space<vmem>>, vector<8x1xf32>
    %4 = vector.broadcast %3 : vector<8x1xf32> to vector<8x256xf32>
    %5 = arith.addf %2, %4 : vector<8x256xf32>
    %cst_5 = arith.constant 0.000000e+00 : f32
    %6 = vector.broadcast %cst_5 : f32 to vector<8x256xf32>
    %7 = arith.maximumf %5, %6 : vector<8x256xf32>
    %c0_6 = arith.constant 0 : index
    %c0_7 = arith.constant 0 : index
    %8 = vector.load %arg4[%c0_6, %c0_7] : memref<8x256xf32, #tpu.memory_space<vmem>>, vector<8x256xf32>
    tpu.vector_store %arg4[%c0_6, %c0_7], %7 {strides = array<i32>} : memref<8x256xf32, #tpu.memory_space<vmem>>, vector<8x256xf32>,
    return
  }
  func.func @transform_0(%arg0: i32) -> (i32, i32) {
    %c0_i32 = arith.constant 0 : i32
    %c0_i32_0 = arith.constant 0 : i32
    %c0_i32_1 = arith.constant 0 : i32
    return %c0_i32, %c0_i32_0 : i32, i32
  }
  func.func @transform_1(%arg0: i32) -> (i32, i32) {
    %c0_i32 = arith.constant 0 : i32
    %c0_i32_0 = arith.constant 0 : i32
    return %c0_i32, %arg0 : i32, i32
  }
  func.func @transform_2(%arg0: i32) -> (i32, i32) {
    %c0_i32 = arith.constant 0 : i32
    %c0_i32_0 = arith.constant 0 : i32
    %c0_i32_1 = arith.constant 0 : i32
    return %c0_i32, %c0_i32_0 : i32, i32
  }
  func.func @transform_3(%arg0: i32) -> (i32, i32) {
    %c0_i32 = arith.constant 0 : i32
    %c0_i32_0 = arith.constant 0 : i32
    return %c0_i32, %arg0 : i32, i32
  }
}

module attributes {stable_mosaic.version = 11 : i64} {
  func.func @_gemm_kernel(%arg0: i32, %arg1: memref<8x200xf32, #tpu.memory_space<vmem>>, %arg2: memref<200x128xf32, #tpu.memory_space<vmem>>, %arg3: memref<8x1xf32, #tpu.memory_space<vmem>>, %arg4: memref<8x128xf32, #tpu.memory_space<vmem>>) attributes {dimension_semantics = [#tpu.dimension_semantics<parallel>], iteration_bounds = array<i64: 1>, scalar_prefetch = 0 : i64, scratch_operands = 0 : i64, tpu.core_type = #tpu.core_type<tc>, window_params = [{pipeline_mode = #tpu.pipeline_mode<synchronous>, transform_indices = @transform_0, window_bounds = array<i64: 8, 200>}, {transform_indices = @transform_1, window_bounds = array<i64: 200, 128>}, {pipeline_mode = #tpu.pipeline_mode<synchronous>, transform_indices = @transform_2, window_bounds = array<i64: 8, 1>}, {transform_indices = @transform_3, window_bounds = array<i64: 8, 128>}]} {
    %c0 = arith.constant 0 : index
    %c0_0 = arith.constant 0 : index
    %0 = vector.load %arg1[%c0, %c0_0] : memref<8x200xf32, #tpu.memory_space<vmem>>, vector<8x200xf32>
    %c0_1 = arith.constant 0 : index
    %c0_2 = arith.constant 0 : index
    %1 = vector.load %arg2[%c0_1, %c0_2] : memref<200x128xf32, #tpu.memory_space<vmem>>, vector<200x128xf32>
    %cst = arith.constant dense<0.000000e+00> : vector<8x128xf32>
    %2 = tpu.matmul %0, %1, %cst {dimension_numbers = #tpu.dot_dimension_numbers<[1], [0], [0], [1], [0, 0, 1, 1], [], []>} : vector<8x200xf32>, vector<200x128xf32>, vector<8x128xf32> -> vector<8x128xf32>
    %c0_3 = arith.constant 0 : index
    %c0_4 = arith.constant 0 : index
    %3 = vector.load %arg3[%c0_3, %c0_4] : memref<8x1xf32, #tpu.memory_space<vmem>>, vector<8x1xf32>
    %4 = vector.broadcast %3 : vector<8x1xf32> to vector<8x128xf32>
    %5 = arith.addf %2, %4 : vector<8x128xf32>
    %cst_5 = arith.constant 0.000000e+00 : f32
    %6 = vector.broadcast %cst_5 : f32 to vector<8x128xf32>
    %7 = arith.maximumf %5, %6 : vector<8x128xf32>
    %c0_6 = arith.constant 0 : index
    %c0_7 = arith.constant 0 : index
    %8 = vector.load %arg4[%c0_6, %c0_7] : memref<8x128xf32, #tpu.memory_space<vmem>>, vector<8x128xf32>
    tpu.vector_store %arg4[%c0_6, %c0_7], %7 {strides = array<i32>} : memref<8x128xf32, #tpu.memory_space<vmem>>, vector<8x128xf32>,
    return
  }
  func.func @transform_0(%arg0: i32) -> (i32, i32) {
    %c0_i32 = arith.constant 0 : i32
    %c0_i32_0 = arith.constant 0 : i32
    %c0_i32_1 = arith.constant 0 : i32
    return %c0_i32, %c0_i32_0 : i32, i32
  }
  func.func @transform_1(%arg0: i32) -> (i32, i32) {
    %c0_i32 = arith.constant 0 : i32
    %c0_i32_0 = arith.constant 0 : i32
    return %c0_i32, %arg0 : i32, i32
  }
  func.func @transform_2(%arg0: i32) -> (i32, i32) {
    %c0_i32 = arith.constant 0 : i32
    %c0_i32_0 = arith.constant 0 : i32
    %c0_i32_1 = arith.constant 0 : i32
    return %c0_i32, %c0_i32_0 : i32, i32
  }
  func.func @transform_3(%arg0: i32) -> (i32, i32) {
    %c0_i32 = arith.constant 0 : i32
    %c0_i32_0 = arith.constant 0 : i32
    return %c0_i32, %arg0 : i32, i32
  }
}

module attributes {stable_mosaic.version = 11 : i64} {
  func.func @_gemm_kernel(%arg0: i32, %arg1: memref<4x72xf32, #tpu.memory_space<vmem>>, %arg2: memref<72x128xf32, #tpu.memory_space<vmem>>, %arg3: memref<4x1xf32, #tpu.memory_space<vmem>>, %arg4: memref<4x128xf32, #tpu.memory_space<vmem>>) attributes {dimension_semantics = [#tpu.dimension_semantics<parallel>], iteration_bounds = array<i64: 1>, scalar_prefetch = 0 : i64, scratch_operands = 0 : i64, tpu.core_type = #tpu.core_type<tc>, window_params = [{pipeline_mode = #tpu.pipeline_mode<synchronous>, transform_indices = @transform_0, window_bounds = array<i64: 4, 72>}, {transform_indices = @transform_1, window_bounds = array<i64: 72, 128>}, {pipeline_mode = #tpu.pipeline_mode<synchronous>, transform_indices = @transform_2, window_bounds = array<i64: 4, 1>}, {transform_indices = @transform_3, window_bounds = array<i64: 4, 128>}]} {
    %c0 = arith.constant 0 : index
    %c0_0 = arith.constant 0 : index
    %0 = vector.load %arg1[%c0, %c0_0] : memref<4x72xf32, #tpu.memory_space<vmem>>, vector<4x72xf32>
    %c0_1 = arith.constant 0 : index
    %c0_2 = arith.constant 0 : index
    %1 = vector.load %arg2[%c0_1, %c0_2] : memref<72x128xf32, #tpu.memory_space<vmem>>, vector<72x128xf32>
    %cst = arith.constant dense<0.000000e+00> : vector<4x128xf32>
    %2 = tpu.matmul %0, %1, %cst {dimension_numbers = #tpu.dot_dimension_numbers<[1], [0], [0], [1], [0, 0, 1, 1], [], []>} : vector<4x72xf32>, vector<72x128xf32>, vector<4x128xf32> -> vector<4x128xf32>
    %c0_3 = arith.constant 0 : index
    %c0_4 = arith.constant 0 : index
    %3 = vector.load %arg3[%c0_3, %c0_4] : memref<4x1xf32, #tpu.memory_space<vmem>>, vector<4x1xf32>
    %4 = vector.broadcast %3 : vector<4x1xf32> to vector<4x128xf32>
    %5 = arith.addf %2, %4 : vector<4x128xf32>
    %c0_5 = arith.constant 0 : index
    %c0_6 = arith.constant 0 : index
    %6 = vector.load %arg4[%c0_5, %c0_6] : memref<4x128xf32, #tpu.memory_space<vmem>>, vector<4x128xf32>
    tpu.vector_store %arg4[%c0_5, %c0_6], %5 {strides = array<i32>} : memref<4x128xf32, #tpu.memory_space<vmem>>, vector<4x128xf32>,
    return
  }
  func.func @transform_0(%arg0: i32) -> (i32, i32) {
    %c0_i32 = arith.constant 0 : i32
    %c0_i32_0 = arith.constant 0 : i32
    %c0_i32_1 = arith.constant 0 : i32
    return %c0_i32, %c0_i32_0 : i32, i32
  }
  func.func @transform_1(%arg0: i32) -> (i32, i32) {
    %c0_i32 = arith.constant 0 : i32
    %c0_i32_0 = arith.constant 0 : i32
    return %c0_i32, %arg0 : i32, i32
  }
  func.func @transform_2(%arg0: i32) -> (i32, i32) {
    %c0_i32 = arith.constant 0 : i32
    %c0_i32_0 = arith.constant 0 : i32
    %c0_i32_1 = arith.constant 0 : i32
    return %c0_i32, %c0_i32_0 : i32, i32
  }
  func.func @transform_3(%arg0: i32) -> (i32, i32) {
    %c0_i32 = arith.constant 0 : i32
    %c0_i32_0 = arith.constant 0 : i32
    return %c0_i32, %arg0 : i32, i32
  }
}

module attributes {stable_mosaic.version = 11 : i64} {
  func.func @_gemm_kernel(%arg0: i32, %arg1: memref<8x36xf32, #tpu.memory_space<vmem>>, %arg2: memref<36x128xf32, #tpu.memory_space<vmem>>, %arg3: memref<8x1xf32, #tpu.memory_space<vmem>>, %arg4: memref<8x128xf32, #tpu.memory_space<vmem>>) attributes {dimension_semantics = [#tpu.dimension_semantics<parallel>], iteration_bounds = array<i64: 1>, scalar_prefetch = 0 : i64, scratch_operands = 0 : i64, tpu.core_type = #tpu.core_type<tc>, window_params = [{pipeline_mode = #tpu.pipeline_mode<synchronous>, transform_indices = @transform_0, window_bounds = array<i64: 8, 36>}, {transform_indices = @transform_1, window_bounds = array<i64: 36, 128>}, {pipeline_mode = #tpu.pipeline_mode<synchronous>, transform_indices = @transform_2, window_bounds = array<i64: 8, 1>}, {transform_indices = @transform_3, window_bounds = array<i64: 8, 128>}]} {
    %c0 = arith.constant 0 : index
    %c0_0 = arith.constant 0 : index
    %0 = vector.load %arg1[%c0, %c0_0] : memref<8x36xf32, #tpu.memory_space<vmem>>, vector<8x36xf32>
    %c0_1 = arith.constant 0 : index
    %c0_2 = arith.constant 0 : index
    %1 = vector.load %arg2[%c0_1, %c0_2] : memref<36x128xf32, #tpu.memory_space<vmem>>, vector<36x128xf32>
    %cst = arith.constant dense<0.000000e+00> : vector<8x128xf32>
    %2 = tpu.matmul %0, %1, %cst {dimension_numbers = #tpu.dot_dimension_numbers<[1], [0], [0], [1], [0, 0, 1, 1], [], []>} : vector<8x36xf32>, vector<36x128xf32>, vector<8x128xf32> -> vector<8x128xf32>
    %c0_3 = arith.constant 0 : index
    %c0_4 = arith.constant 0 : index
    %3 = vector.load %arg3[%c0_3, %c0_4] : memref<8x1xf32, #tpu.memory_space<vmem>>, vector<8x1xf32>
    %4 = vector.broadcast %3 : vector<8x1xf32> to vector<8x128xf32>
    %5 = arith.addf %2, %4 : vector<8x128xf32>
    %cst_5 = arith.constant 0.000000e+00 : f32
    %6 = vector.broadcast %cst_5 : f32 to vector<8x128xf32>
    %7 = arith.maximumf %5, %6 : vector<8x128xf32>
    %c0_6 = arith.constant 0 : index
    %c0_7 = arith.constant 0 : index
    %8 = vector.load %arg4[%c0_6, %c0_7] : memref<8x128xf32, #tpu.memory_space<vmem>>, vector<8x128xf32>
    tpu.vector_store %arg4[%c0_6, %c0_7], %7 {strides = array<i32>} : memref<8x128xf32, #tpu.memory_space<vmem>>, vector<8x128xf32>,
    return
  }
  func.func @transform_0(%arg0: i32) -> (i32, i32) {
    %c0_i32 = arith.constant 0 : i32
    %c0_i32_0 = arith.constant 0 : i32
    %c0_i32_1 = arith.constant 0 : i32
    return %c0_i32, %c0_i32_0 : i32, i32
  }
  func.func @transform_1(%arg0: i32) -> (i32, i32) {
    %c0_i32 = arith.constant 0 : i32
    %c0_i32_0 = arith.constant 0 : i32
    return %c0_i32, %arg0 : i32, i32
  }
  func.func @transform_2(%arg0: i32) -> (i32, i32) {
    %c0_i32 = arith.constant 0 : i32
    %c0_i32_0 = arith.constant 0 : i32
    %c0_i32_1 = arith.constant 0 : i32
    return %c0_i32, %c0_i32_0 : i32, i32
  }
  func.func @transform_3(%arg0: i32) -> (i32, i32) {
    %c0_i32 = arith.constant 0 : i32
    %c0_i32_0 = arith.constant 0 : i32
    return %c0_i32, %arg0 : i32, i32
  }
}

module attributes {stable_mosaic.version = 11 : i64} {
  func.func @_gemm_kernel(%arg0: i32, %arg1: memref<4x200xf32, #tpu.memory_space<vmem>>, %arg2: memref<200x128xf32, #tpu.memory_space<vmem>>, %arg3: memref<4x1xf32, #tpu.memory_space<vmem>>, %arg4: memref<4x128xf32, #tpu.memory_space<vmem>>) attributes {dimension_semantics = [#tpu.dimension_semantics<parallel>], iteration_bounds = array<i64: 1>, scalar_prefetch = 0 : i64, scratch_operands = 0 : i64, tpu.core_type = #tpu.core_type<tc>, window_params = [{pipeline_mode = #tpu.pipeline_mode<synchronous>, transform_indices = @transform_0, window_bounds = array<i64: 4, 200>}, {transform_indices = @transform_1, window_bounds = array<i64: 200, 128>}, {pipeline_mode = #tpu.pipeline_mode<synchronous>, transform_indices = @transform_2, window_bounds = array<i64: 4, 1>}, {transform_indices = @transform_3, window_bounds = array<i64: 4, 128>}]} {
    %c0 = arith.constant 0 : index
    %c0_0 = arith.constant 0 : index
    %0 = vector.load %arg1[%c0, %c0_0] : memref<4x200xf32, #tpu.memory_space<vmem>>, vector<4x200xf32>
    %c0_1 = arith.constant 0 : index
    %c0_2 = arith.constant 0 : index
    %1 = vector.load %arg2[%c0_1, %c0_2] : memref<200x128xf32, #tpu.memory_space<vmem>>, vector<200x128xf32>
    %cst = arith.constant dense<0.000000e+00> : vector<4x128xf32>
    %2 = tpu.matmul %0, %1, %cst {dimension_numbers = #tpu.dot_dimension_numbers<[1], [0], [0], [1], [0, 0, 1, 1], [], []>} : vector<4x200xf32>, vector<200x128xf32>, vector<4x128xf32> -> vector<4x128xf32>
    %c0_3 = arith.constant 0 : index
    %c0_4 = arith.constant 0 : index
    %3 = vector.load %arg3[%c0_3, %c0_4] : memref<4x1xf32, #tpu.memory_space<vmem>>, vector<4x1xf32>
    %4 = vector.broadcast %3 : vector<4x1xf32> to vector<4x128xf32>
    %5 = arith.addf %2, %4 : vector<4x128xf32>
    %c0_5 = arith.constant 0 : index
    %c0_6 = arith.constant 0 : index
    %6 = vector.load %arg4[%c0_5, %c0_6] : memref<4x128xf32, #tpu.memory_space<vmem>>, vector<4x128xf32>
    tpu.vector_store %arg4[%c0_5, %c0_6], %5 {strides = array<i32>} : memref<4x128xf32, #tpu.memory_space<vmem>>, vector<4x128xf32>,
    return
  }
  func.func @transform_0(%arg0: i32) -> (i32, i32) {
    %c0_i32 = arith.constant 0 : i32
    %c0_i32_0 = arith.constant 0 : i32
    %c0_i32_1 = arith.constant 0 : i32
    return %c0_i32, %c0_i32_0 : i32, i32
  }
  func.func @transform_1(%arg0: i32) -> (i32, i32) {
    %c0_i32 = arith.constant 0 : i32
    %c0_i32_0 = arith.constant 0 : i32
    return %c0_i32, %arg0 : i32, i32
  }
  func.func @transform_2(%arg0: i32) -> (i32, i32) {
    %c0_i32 = arith.constant 0 : i32
    %c0_i32_0 = arith.constant 0 : i32
    %c0_i32_1 = arith.constant 0 : i32
    return %c0_i32, %c0_i32_0 : i32, i32
  }
  func.func @transform_3(%arg0: i32) -> (i32, i32) {
    %c0_i32 = arith.constant 0 : i32
    %c0_i32_0 = arith.constant 0 : i32
    return %c0_i32, %arg0 : i32, i32
  }
}

module attributes {stable_mosaic.version = 11 : i64} {
  func.func @_gemm_kernel(%arg0: i32, %arg1: memref<32x36xf32, #tpu.memory_space<vmem>>, %arg2: memref<36x128xf32, #tpu.memory_space<vmem>>, %arg3: memref<32x1xf32, #tpu.memory_space<vmem>>, %arg4: memref<32x128xf32, #tpu.memory_space<vmem>>) attributes {dimension_semantics = [#tpu.dimension_semantics<parallel>], iteration_bounds = array<i64: 1>, scalar_prefetch = 0 : i64, scratch_operands = 0 : i64, tpu.core_type = #tpu.core_type<tc>, window_params = [{pipeline_mode = #tpu.pipeline_mode<synchronous>, transform_indices = @transform_0, window_bounds = array<i64: 32, 36>}, {transform_indices = @transform_1, window_bounds = array<i64: 36, 128>}, {pipeline_mode = #tpu.pipeline_mode<synchronous>, transform_indices = @transform_2, window_bounds = array<i64: 32, 1>}, {transform_indices = @transform_3, window_bounds = array<i64: 32, 128>}]} {
    %c0 = arith.constant 0 : index
    %c0_0 = arith.constant 0 : index
    %0 = vector.load %arg1[%c0, %c0_0] : memref<32x36xf32, #tpu.memory_space<vmem>>, vector<32x36xf32>
    %c0_1 = arith.constant 0 : index
    %c0_2 = arith.constant 0 : index
    %1 = vector.load %arg2[%c0_1, %c0_2] : memref<36x128xf32, #tpu.memory_space<vmem>>, vector<36x128xf32>
    %cst = arith.constant dense<0.000000e+00> : vector<32x128xf32>
    %2 = tpu.matmul %0, %1, %cst {dimension_numbers = #tpu.dot_dimension_numbers<[1], [0], [0], [1], [0, 0, 1, 1], [], []>} : vector<32x36xf32>, vector<36x128xf32>, vector<32x128xf32> -> vector<32x128xf32>
    %c0_3 = arith.constant 0 : index
    %c0_4 = arith.constant 0 : index
    %3 = vector.load %arg3[%c0_3, %c0_4] : memref<32x1xf32, #tpu.memory_space<vmem>>, vector<32x1xf32>
    %4 = vector.broadcast %3 : vector<32x1xf32> to vector<32x128xf32>
    %5 = arith.addf %2, %4 : vector<32x128xf32>
    %cst_5 = arith.constant 0.000000e+00 : f32
    %6 = vector.broadcast %cst_5 : f32 to vector<32x128xf32>
    %7 = arith.maximumf %5, %6 : vector<32x128xf32>
    %c0_6 = arith.constant 0 : index
    %c0_7 = arith.constant 0 : index
    %8 = vector.load %arg4[%c0_6, %c0_7] : memref<32x128xf32, #tpu.memory_space<vmem>>, vector<32x128xf32>
    tpu.vector_store %arg4[%c0_6, %c0_7], %7 {strides = array<i32>} : memref<32x128xf32, #tpu.memory_space<vmem>>, vector<32x128xf32>,
    return
  }
  func.func @transform_0(%arg0: i32) -> (i32, i32) {
    %c0_i32 = arith.constant 0 : i32
    %c0_i32_0 = arith.constant 0 : i32
    %c0_i32_1 = arith.constant 0 : i32
    return %c0_i32, %c0_i32_0 : i32, i32
  }
  func.func @transform_1(%arg0: i32) -> (i32, i32) {
    %c0_i32 = arith.constant 0 : i32
    %c0_i32_0 = arith.constant 0 : i32
    return %c0_i32, %arg0 : i32, i32
  }
  func.func @transform_2(%arg0: i32) -> (i32, i32) {
    %c0_i32 = arith.constant 0 : i32
    %c0_i32_0 = arith.constant 0 : i32
    %c0_i32_1 = arith.constant 0 : i32
    return %c0_i32, %c0_i32_0 : i32, i32
  }
  func.func @transform_3(%arg0: i32) -> (i32, i32) {
    %c0_i32 = arith.constant 0 : i32
    %c0_i32_0 = arith.constant 0 : i32
    return %c0_i32, %arg0 : i32, i32
  }
}

module attributes {stable_mosaic.version = 11 : i64} {
  func.func @_gauss_box_prob_kernel(%arg0: i32, %arg1: memref<8x128xf32, #tpu.memory_space<vmem>>, %arg2: memref<8x128xf32, #tpu.memory_space<vmem>>, %arg3: memref<8x128xf32, #tpu.memory_space<vmem>>, %arg4: memref<8x128xf32, #tpu.memory_space<vmem>>) attributes {dimension_semantics = [#tpu.dimension_semantics<parallel>], iteration_bounds = array<i64: 1>, scalar_prefetch = 0 : i64, scratch_operands = 0 : i64, tpu.core_type = #tpu.core_type<tc>, window_params = [{transform_indices = @transform_0, window_bounds = array<i64: 8, 128>}, {transform_indices = @transform_1, window_bounds = array<i64: 8, 128>}, {transform_indices = @transform_2, window_bounds = array<i64: 8, 128>}, {transform_indices = @transform_3, window_bounds = array<i64: 8, 128>}]} {
    %c0 = arith.constant 0 : index
    %c0_0 = arith.constant 0 : index
    %0 = vector.load %arg1[%c0, %c0_0] : memref<8x128xf32, #tpu.memory_space<vmem>>, vector<8x128xf32>
    %c0_1 = arith.constant 0 : index
    %c0_2 = arith.constant 0 : index
    %1 = vector.load %arg2[%c0_1, %c0_2] : memref<8x128xf32, #tpu.memory_space<vmem>>, vector<8x128xf32>
    %c0_3 = arith.constant 0 : index
    %c0_4 = arith.constant 0 : index
    %2 = vector.load %arg3[%c0_3, %c0_4] : memref<8x128xf32, #tpu.memory_space<vmem>>, vector<8x128xf32>
    %3 = math.absf %2 : vector<8x128xf32>
    %cst = arith.constant 9.99999997E-7 : f32
    %4 = vector.broadcast %cst : f32 to vector<8x128xf32>
    %5 = arith.maximumf %3, %4 : vector<8x128xf32>
    %6 = tpu.reciprocal %5 {approx = true} : vector<8x128xf32> -> vector<8x128xf32>
    %7 = arith.subf %0, %1 : vector<8x128xf32>
    %8 = arith.mulf %7, %6 : vector<8x128xf32>
    %cst_5 = arith.constant 5.000000e-01 : f32
    %9 = vector.broadcast %cst_5 : f32 to vector<8x128xf32>
    %10 = arith.mulf %9, %6 : vector<8x128xf32>
    %11 = arith.addf %8, %10 : vector<8x128xf32>
    %cst_6 = arith.constant 4.471500e-02 : f32
    %12 = vector.broadcast %cst_6 : f32 to vector<8x128xf32>
    %13 = arith.mulf %12, %11 : vector<8x128xf32>
    %14 = arith.mulf %13, %11 : vector<8x128xf32>
    %15 = arith.mulf %14, %11 : vector<8x128xf32>
    %16 = arith.addf %11, %15 : vector<8x128xf32>
    %cst_7 = arith.constant 0.797884583 : f32
    %17 = vector.broadcast %cst_7 : f32 to vector<8x128xf32>
    %18 = arith.mulf %17, %16 : vector<8x128xf32>
    %19 = math.tanh %18 : vector<8x128xf32>
    %cst_8 = arith.constant 1.000000e+00 : f32
    %20 = vector.broadcast %cst_8 : f32 to vector<8x128xf32>
    %21 = arith.addf %20, %19 : vector<8x128xf32>
    %cst_9 = arith.constant 5.000000e-01 : f32
    %22 = vector.broadcast %cst_9 : f32 to vector<8x128xf32>
    %23 = arith.mulf %22, %21 : vector<8x128xf32>
    %24 = arith.subf %8, %10 : vector<8x128xf32>
    %cst_10 = arith.constant 4.471500e-02 : f32
    %25 = vector.broadcast %cst_10 : f32 to vector<8x128xf32>
    %26 = arith.mulf %25, %24 : vector<8x128xf32>
    %27 = arith.mulf %26, %24 : vector<8x128xf32>
    %28 = arith.mulf %27, %24 : vector<8x128xf32>
    %29 = arith.addf %24, %28 : vector<8x128xf32>
    %cst_11 = arith.constant 0.797884583 : f32
    %30 = vector.broadcast %cst_11 : f32 to vector<8x128xf32>
    %31 = arith.mulf %30, %29 : vector<8x128xf32>
    %32 = math.tanh %31 : vector<8x128xf32>
    %cst_12 = arith.constant 1.000000e+00 : f32
    %33 = vector.broadcast %cst_12 : f32 to vector<8x128xf32>
    %34 = arith.addf %33, %32 : vector<8x128xf32>
    %cst_13 = arith.constant 5.000000e-01 : f32
    %35 = vector.broadcast %cst_13 : f32 to vector<8x128xf32>
    %36 = arith.mulf %35, %34 : vector<8x128xf32>
    %37 = arith.subf %23, %36 : vector<8x128xf32>
    %cst_14 = arith.constant 9.99999971E-10 : f32
    %38 = vector.broadcast %cst_14 : f32 to vector<8x128xf32>
    %39 = arith.maximumf %37, %38 : vector<8x128xf32>
    %c0_15 = arith.constant 0 : index
    %c0_16 = arith.constant 0 : index
    %40 = vector.load %arg4[%c0_15, %c0_16] : memref<8x128xf32, #tpu.memory_space<vmem>>, vector<8x128xf32>
    tpu.vector_store %arg4[%c0_15, %c0_16], %39 {strides = array<i32>} : memref<8x128xf32, #tpu.memory_space<vmem>>, vector<8x128xf32>,
    return
  }
  func.func @transform_0(%arg0: i32) -> (i32, i32) {
    %c0_i32 = arith.constant 0 : i32
    %c0_i32_0 = arith.constant 0 : i32
    return %arg0, %c0_i32 : i32, i32
  }
  func.func @transform_1(%arg0: i32) -> (i32, i32) {
    %c0_i32 = arith.constant 0 : i32
    %c0_i32_0 = arith.constant 0 : i32
    return %arg0, %c0_i32 : i32, i32
  }
  func.func @transform_2(%arg0: i32) -> (i32, i32) {
    %c0_i32 = arith.constant 0 : i32
    %c0_i32_0 = arith.constant 0 : i32
    return %arg0, %c0_i32 : i32, i32
  }
  func.func @transform_3(%arg0: i32) -> (i32, i32) {
    %c0_i32 = arith.constant 0 : i32
    %c0_i32_0 = arith.constant 0 : i32
    return %arg0, %c0_i32 : i32, i32
  }
}

module attributes {stable_mosaic.version = 11 : i64} {
  func.func @_entropy_max_kernel(%arg0: i32, %arg1: memref<8x128xf32, #tpu.memory_space<vmem>>, %arg2: memref<1x1xf32, #tpu.memory_space<vmem>>) attributes {dimension_semantics = [#tpu.dimension_semantics<arbitrary>], iteration_bounds = array<i64: 1>, scalar_prefetch = 0 : i64, scratch_operands = 0 : i64, tpu.core_type = #tpu.core_type<tc>, window_params = [{transform_indices = @transform_0, window_bounds = array<i64: 8, 128>}, {pipeline_mode = #tpu.pipeline_mode<synchronous>, transform_indices = @transform_1, window_bounds = array<i64: 1, 1>}]} {
    %c0_i32 = arith.constant 0 : i32
    %0 = arith.cmpi eq, %arg0, %c0_i32 : i32
    %1 = arith.extui %0 : i1 to i32
    %c0_i32_0 = arith.constant 0 : i32
    %2 = arith.cmpi ne, %1, %c0_i32_0 : i32
    scf.if %2 {
      %cst_10 = arith.constant 0xFF800000 : f32
      %18 = vector.broadcast %cst_10 : f32 to vector<1x1xf32>
      %c0_11 = arith.constant 0 : index
      %c0_12 = arith.constant 0 : index
      %19 = vector.load %arg2[%c0_11, %c0_12] : memref<1x1xf32, #tpu.memory_space<vmem>>, vector<1x1xf32>
      tpu.vector_store %arg2[%c0_11, %c0_12], %18 {strides = array<i32>} : memref<1x1xf32, #tpu.memory_space<vmem>>, vector<1x1xf32>,
    } else {
    }
    %c0 = arith.constant 0 : index
    %c0_1 = arith.constant 0 : index
    %3 = vector.load %arg1[%c0, %c0_1] : memref<8x128xf32, #tpu.memory_space<vmem>>, vector<8x128xf32>
    %4 = math.log %3 : vector<8x128xf32>
    %cst = arith.constant 0.000000e+00 : f32
    %5 = vector.broadcast %cst : f32 to vector<8x128xf32>
    %6 = arith.subf %5, %4 : vector<8x128xf32>
    %cst_2 = arith.constant 1.44269502 : f32
    %7 = vector.broadcast %cst_2 : f32 to vector<8x128xf32>
    %8 = arith.mulf %6, %7 : vector<8x128xf32>
    %cst_3 = arith.constant 0.000000e+00 : f32
    %9 = vector.broadcast %cst_3 : f32 to vector<8x128xf32>
    %10 = arith.maximumf %8, %9 : vector<8x128xf32>
    %cst_4 = arith.constant dense<0xFF800000> : vector<8xf32>
    %11 = vector.multi_reduction <maximumf>, %10, %cst_4 [1] : vector<8x128xf32> to vector<8xf32>
    %12 = vector.shape_cast %11 : vector<8xf32> to vector<8x1xf32>
    %cst_5 = arith.constant dense<0xFF800000> : vector<1xf32>
    %13 = vector.multi_reduction <maximumf>, %12, %cst_5 [0] : vector<8x1xf32> to vector<1xf32>
    %14 = vector.shape_cast %13 : vector<1xf32> to vector<1x1xf32>
    %c0_6 = arith.constant 0 : index
    %c0_7 = arith.constant 0 : index
    %15 = vector.load %arg2[%c0_6, %c0_7] : memref<1x1xf32, #tpu.memory_space<vmem>>, vector<1x1xf32>
    %16 = arith.maximumf %15, %14 : vector<1x1xf32>
    %c0_8 = arith.constant 0 : index
    %c0_9 = arith.constant 0 : index
    %17 = vector.load %arg2[%c0_8, %c0_9] : memref<1x1xf32, #tpu.memory_space<vmem>>, vector<1x1xf32>
    tpu.vector_store %arg2[%c0_8, %c0_9], %16 {strides = array<i32>} : memref<1x1xf32, #tpu.memory_space<vmem>>, vector<1x1xf32>,
    return
  }
  func.func @transform_0(%arg0: i32) -> (i32, i32) {
    %c0_i32 = arith.constant 0 : i32
    %c0_i32_0 = arith.constant 0 : i32
    return %arg0, %c0_i32 : i32, i32
  }
  func.func @transform_1(%arg0: i32) -> (i32, i32) {
    %c0_i32 = arith.constant 0 : i32
    %c0_i32_0 = arith.constant 0 : i32
    %c0_i32_1 = arith.constant 0 : i32
    return %c0_i32, %c0_i32_0 : i32, i32
  }
}

module attributes {stable_mosaic.version = 11 : i64} {
  func.func @_gemm_kernel(%arg0: i32, %arg1: memref<32x72xf32, #tpu.memory_space<vmem>>, %arg2: memref<72x128xf32, #tpu.memory_space<vmem>>, %arg3: memref<32x1xf32, #tpu.memory_space<vmem>>, %arg4: memref<32x128xf32, #tpu.memory_space<vmem>>) attributes {dimension_semantics = [#tpu.dimension_semantics<parallel>], iteration_bounds = array<i64: 1>, scalar_prefetch = 0 : i64, scratch_operands = 0 : i64, tpu.core_type = #tpu.core_type<tc>, window_params = [{pipeline_mode = #tpu.pipeline_mode<synchronous>, transform_indices = @transform_0, window_bounds = array<i64: 32, 72>}, {transform_indices = @transform_1, window_bounds = array<i64: 72, 128>}, {pipeline_mode = #tpu.pipeline_mode<synchronous>, transform_indices = @transform_2, window_bounds = array<i64: 32, 1>}, {transform_indices = @transform_3, window_bounds = array<i64: 32, 128>}]} {
    %c0 = arith.constant 0 : index
    %c0_0 = arith.constant 0 : index
    %0 = vector.load %arg1[%c0, %c0_0] : memref<32x72xf32, #tpu.memory_space<vmem>>, vector<32x72xf32>
    %c0_1 = arith.constant 0 : index
    %c0_2 = arith.constant 0 : index
    %1 = vector.load %arg2[%c0_1, %c0_2] : memref<72x128xf32, #tpu.memory_space<vmem>>, vector<72x128xf32>
    %cst = arith.constant dense<0.000000e+00> : vector<32x128xf32>
    %2 = tpu.matmul %0, %1, %cst {dimension_numbers = #tpu.dot_dimension_numbers<[1], [0], [0], [1], [0, 0, 1, 1], [], []>} : vector<32x72xf32>, vector<72x128xf32>, vector<32x128xf32> -> vector<32x128xf32>
    %c0_3 = arith.constant 0 : index
    %c0_4 = arith.constant 0 : index
    %3 = vector.load %arg3[%c0_3, %c0_4] : memref<32x1xf32, #tpu.memory_space<vmem>>, vector<32x1xf32>
    %4 = vector.broadcast %3 : vector<32x1xf32> to vector<32x128xf32>
    %5 = arith.addf %2, %4 : vector<32x128xf32>
    %cst_5 = arith.constant 0.000000e+00 : f32
    %6 = vector.broadcast %cst_5 : f32 to vector<32x128xf32>
    %7 = arith.maximumf %5, %6 : vector<32x128xf32>
    %c0_6 = arith.constant 0 : index
    %c0_7 = arith.constant 0 : index
    %8 = vector.load %arg4[%c0_6, %c0_7] : memref<32x128xf32, #tpu.memory_space<vmem>>, vector<32x128xf32>
    tpu.vector_store %arg4[%c0_6, %c0_7], %7 {strides = array<i32>} : memref<32x128xf32, #tpu.memory_space<vmem>>, vector<32x128xf32>,
    return
  }
  func.func @transform_0(%arg0: i32) -> (i32, i32) {
    %c0_i32 = arith.constant 0 : i32
    %c0_i32_0 = arith.constant 0 : i32
    %c0_i32_1 = arith.constant 0 : i32
    return %c0_i32, %c0_i32_0 : i32, i32
  }
  func.func @transform_1(%arg0: i32) -> (i32, i32) {
    %c0_i32 = arith.constant 0 : i32
    %c0_i32_0 = arith.constant 0 : i32
    return %c0_i32, %arg0 : i32, i32
  }
  func.func @transform_2(%arg0: i32) -> (i32, i32) {
    %c0_i32 = arith.constant 0 : i32
    %c0_i32_0 = arith.constant 0 : i32
    %c0_i32_1 = arith.constant 0 : i32
    return %c0_i32, %c0_i32_0 : i32, i32
  }
  func.func @transform_3(%arg0: i32) -> (i32, i32) {
    %c0_i32 = arith.constant 0 : i32
    %c0_i32_0 = arith.constant 0 : i32
    return %c0_i32, %arg0 : i32, i32
  }
}

module attributes {stable_mosaic.version = 11 : i64} {
  func.func @_gemm_kernel(%arg0: i32, %arg1: memref<8x72xf32, #tpu.memory_space<vmem>>, %arg2: memref<72x128xf32, #tpu.memory_space<vmem>>, %arg3: memref<8x1xf32, #tpu.memory_space<vmem>>, %arg4: memref<8x128xf32, #tpu.memory_space<vmem>>) attributes {dimension_semantics = [#tpu.dimension_semantics<parallel>], iteration_bounds = array<i64: 1>, scalar_prefetch = 0 : i64, scratch_operands = 0 : i64, tpu.core_type = #tpu.core_type<tc>, window_params = [{pipeline_mode = #tpu.pipeline_mode<synchronous>, transform_indices = @transform_0, window_bounds = array<i64: 8, 72>}, {transform_indices = @transform_1, window_bounds = array<i64: 72, 128>}, {pipeline_mode = #tpu.pipeline_mode<synchronous>, transform_indices = @transform_2, window_bounds = array<i64: 8, 1>}, {transform_indices = @transform_3, window_bounds = array<i64: 8, 128>}]} {
    %c0 = arith.constant 0 : index
    %c0_0 = arith.constant 0 : index
    %0 = vector.load %arg1[%c0, %c0_0] : memref<8x72xf32, #tpu.memory_space<vmem>>, vector<8x72xf32>
    %c0_1 = arith.constant 0 : index
    %c0_2 = arith.constant 0 : index
    %1 = vector.load %arg2[%c0_1, %c0_2] : memref<72x128xf32, #tpu.memory_space<vmem>>, vector<72x128xf32>
    %cst = arith.constant dense<0.000000e+00> : vector<8x128xf32>
    %2 = tpu.matmul %0, %1, %cst {dimension_numbers = #tpu.dot_dimension_numbers<[1], [0], [0], [1], [0, 0, 1, 1], [], []>} : vector<8x72xf32>, vector<72x128xf32>, vector<8x128xf32> -> vector<8x128xf32>
    %c0_3 = arith.constant 0 : index
    %c0_4 = arith.constant 0 : index
    %3 = vector.load %arg3[%c0_3, %c0_4] : memref<8x1xf32, #tpu.memory_space<vmem>>, vector<8x1xf32>
    %4 = vector.broadcast %3 : vector<8x1xf32> to vector<8x128xf32>
    %5 = arith.addf %2, %4 : vector<8x128xf32>
    %cst_5 = arith.constant 0.000000e+00 : f32
    %6 = vector.broadcast %cst_5 : f32 to vector<8x128xf32>
    %7 = arith.maximumf %5, %6 : vector<8x128xf32>
    %c0_6 = arith.constant 0 : index
    %c0_7 = arith.constant 0 : index
    %8 = vector.load %arg4[%c0_6, %c0_7] : memref<8x128xf32, #tpu.memory_space<vmem>>, vector<8x128xf32>
    tpu.vector_store %arg4[%c0_6, %c0_7], %7 {strides = array<i32>} : memref<8x128xf32, #tpu.memory_space<vmem>>, vector<8x128xf32>,
    return
  }
  func.func @transform_0(%arg0: i32) -> (i32, i32) {
    %c0_i32 = arith.constant 0 : i32
    %c0_i32_0 = arith.constant 0 : i32
    %c0_i32_1 = arith.constant 0 : i32
    return %c0_i32, %c0_i32_0 : i32, i32
  }
  func.func @transform_1(%arg0: i32) -> (i32, i32) {
    %c0_i32 = arith.constant 0 : i32
    %c0_i32_0 = arith.constant 0 : i32
    return %c0_i32, %arg0 : i32, i32
  }
  func.func @transform_2(%arg0: i32) -> (i32, i32) {
    %c0_i32 = arith.constant 0 : i32
    %c0_i32_0 = arith.constant 0 : i32
    %c0_i32_1 = arith.constant 0 : i32
    return %c0_i32, %c0_i32_0 : i32, i32
  }
  func.func @transform_3(%arg0: i32) -> (i32, i32) {
    %c0_i32 = arith.constant 0 : i32
    %c0_i32_0 = arith.constant 0 : i32
    return %c0_i32, %arg0 : i32, i32
  }
}

module attributes {stable_mosaic.version = 11 : i64} {
  func.func @_dyna_mask_kernel(%arg0: i32, %arg1: memref<8x128xf32, #tpu.memory_space<vmem>>, %arg2: memref<8x128xf32, #tpu.memory_space<vmem>>, %arg3: memref<1x1xf32, #tpu.memory_space<vmem>>, %arg4: memref<8x128xf32, #tpu.memory_space<vmem>>) attributes {dimension_semantics = [#tpu.dimension_semantics<parallel>], iteration_bounds = array<i64: 1>, scalar_prefetch = 0 : i64, scratch_operands = 0 : i64, tpu.core_type = #tpu.core_type<tc>, window_params = [{transform_indices = @transform_0, window_bounds = array<i64: 8, 128>}, {transform_indices = @transform_1, window_bounds = array<i64: 8, 128>}, {pipeline_mode = #tpu.pipeline_mode<synchronous>, transform_indices = @transform_2, window_bounds = array<i64: 1, 1>}, {transform_indices = @transform_3, window_bounds = array<i64: 8, 128>}]} {
    %c0 = arith.constant 0 : index
    %c0_0 = arith.constant 0 : index
    %0 = vector.load %arg2[%c0, %c0_0] : memref<8x128xf32, #tpu.memory_space<vmem>>, vector<8x128xf32>
    %1 = math.log %0 : vector<8x128xf32>
    %cst = arith.constant 0.000000e+00 : f32
    %2 = vector.broadcast %cst : f32 to vector<8x128xf32>
    %3 = arith.subf %2, %1 : vector<8x128xf32>
    %cst_1 = arith.constant 1.44269502 : f32
    %4 = vector.broadcast %cst_1 : f32 to vector<8x128xf32>
    %5 = arith.mulf %3, %4 : vector<8x128xf32>
    %cst_2 = arith.constant 0.000000e+00 : f32
    %6 = vector.broadcast %cst_2 : f32 to vector<8x128xf32>
    %7 = arith.maximumf %5, %6 : vector<8x128xf32>
    %c0_3 = arith.constant 0 : index
    %c0_4 = arith.constant 0 : index
    %8 = vector.load %arg3[%c0_3, %c0_4] : memref<1x1xf32, #tpu.memory_space<vmem>>, vector<1x1xf32>
    %9 = vector.broadcast %8 : vector<1x1xf32> to vector<8x128xf32>
    %10 = arith.cmpf oge, %7, %9 : vector<8x128xf32>
    %11 = arith.extui %10 : vector<8x128xi1> to vector<8x128xi32>
    %12 = arith.sitofp %11 : vector<8x128xi32> to vector<8x128xf32>
    %c0_5 = arith.constant 0 : index
    %c0_6 = arith.constant 0 : index
    %13 = vector.load %arg1[%c0_5, %c0_6] : memref<8x128xf32, #tpu.memory_space<vmem>>, vector<8x128xf32>
    %14 = arith.mulf %13, %12 : vector<8x128xf32>
    %c0_7 = arith.constant 0 : index
    %c0_8 = arith.constant 0 : index
    %15 = vector.load %arg4[%c0_7, %c0_8] : memref<8x128xf32, #tpu.memory_space<vmem>>, vector<8x128xf32>
    tpu.vector_store %arg4[%c0_7, %c0_8], %14 {strides = array<i32>} : memref<8x128xf32, #tpu.memory_space<vmem>>, vector<8x128xf32>,
    return
  }
  func.func @transform_0(%arg0: i32) -> (i32, i32) {
    %c0_i32 = arith.constant 0 : i32
    %c0_i32_0 = arith.constant 0 : i32
    return %arg0, %c0_i32 : i32, i32
  }
  func.func @transform_1(%arg0: i32) -> (i32, i32) {
    %c0_i32 = arith.constant 0 : i32
    %c0_i32_0 = arith.constant 0 : i32
    return %arg0, %c0_i32 : i32, i32
  }
  func.func @transform_2(%arg0: i32) -> (i32, i32) {
    %c0_i32 = arith.constant 0 : i32
    %c0_i32_0 = arith.constant 0 : i32
    %c0_i32_1 = arith.constant 0 : i32
    return %c0_i32, %c0_i32_0 : i32, i32
  }
  func.func @transform_3(%arg0: i32) -> (i32, i32) {
    %c0_i32 = arith.constant 0 : i32
    %c0_i32_0 = arith.constant 0 : i32
    return %arg0, %c0_i32 : i32, i32
  }
}

module attributes {stable_mosaic.version = 11 : i64} {
  func.func @_fusion_kernel(%arg0: i32, %arg1: memref<1x16x4xf32, #tpu.memory_space<vmem>>, %arg2: memref<1x16x4xf32, #tpu.memory_space<vmem>>, %arg3: memref<1x16x4xf32, #tpu.memory_space<vmem>>, %arg4: memref<1x16x4xf32, #tpu.memory_space<vmem>>, %arg5: memref<1x16x1xf32, #tpu.memory_space<vmem>>, %arg6: memref<4x4xf32, #tpu.memory_space<vmem>>, %arg7: memref<4x4xf32, #tpu.memory_space<vmem>>, %arg8: memref<4x4xf32, #tpu.memory_space<vmem>>, %arg9: memref<4x4xf32, #tpu.memory_space<vmem>>, %arg10: memref<1x1x4xf32, #tpu.memory_space<vmem>>, %arg11: memref<1x1x4xf32, #tpu.memory_space<vmem>>, %arg12: memref<1x1x4xf32, #tpu.memory_space<vmem>>, %arg13: memref<1x1x4xf32, #tpu.memory_space<vmem>>, %arg14: memref<1x16x4xf32, #tpu.memory_space<vmem>>, %arg15: memref<1x16x4xf32, #tpu.memory_space<vmem>>) attributes {dimension_semantics = [#tpu.dimension_semantics<parallel>], iteration_bounds = array<i64: 1>, scalar_prefetch = 0 : i64, scratch_operands = 0 : i64, tpu.core_type = #tpu.core_type<tc>, window_params = [{transform_indices = @transform_0, window_bounds = array<i64: 1, 16, 4>}, {transform_indices = @transform_1, window_bounds = array<i64: 1, 16, 4>}, {pipeline_mode = #tpu.pipeline_mode<synchronous>, transform_indices = @transform_2, window_bounds = array<i64: 1, 16, 4>}, {pipeline_mode = #tpu.pipeline_mode<synchronous>, transform_indices = @transform_3, window_bounds = array<i64: 1, 16, 4>}, {pipeline_mode = #tpu.pipeline_mode<synchronous>, transform_indices = @transform_4, window_bounds = array<i64: 1, 16, 1>}, {pipeline_mode = #tpu.pipeline_mode<synchronous>, transform_indices = @transform_5, window_bounds = array<i64: 4, 4>}, {pipeline_mode = #tpu.pipeline_mode<synchronous>, transform_indices = @transform_6, window_bounds = array<i64: 4, 4>}, {pipeline_mode = #tpu.pipeline_mode<synchronous>, transform_indices = @transform_7, window_bounds = array<i64: 4, 4>}, {pipeline_mode = #tpu.pipeline_mode<synchronous>, transform_indices = @transform_8, window_bounds = array<i64: 4, 4>}, {pipeline_mode = #tpu.pipeline_mode<synchronous>, transform_indices = @transform_9, window_bounds = array<i64: 1, 1, 4>}, {pipeline_mode = #tpu.pipeline_mode<synchronous>, transform_indices = @transform_10, window_bounds = array<i64: 1, 1, 4>}, {pipeline_mode = #tpu.pipeline_mode<synchronous>, transform_indices = @transform_11, window_bounds = array<i64: 1, 1, 4>}, {pipeline_mode = #tpu.pipeline_mode<synchronous>, transform_indices = @transform_12, window_bounds = array<i64: 1, 1, 4>}, {transform_indices = @transform_13, window_bounds = array<i64: 1, 16, 4>}, {transform_indices = @transform_14, window_bounds = array<i64: 1, 16, 4>}]} {
    %c0 = arith.constant 0 : index
    %c0_0 = arith.constant 0 : index
    %c0_1 = arith.constant 0 : index
    %0 = vector.load %arg1[%c0, %c0_0, %c0_1] : memref<1x16x4xf32, #tpu.memory_space<vmem>>, vector<1x16x4xf32>
    %c0_2 = arith.constant 0 : index
    %c0_3 = arith.constant 0 : index
    %c0_4 = arith.constant 0 : index
    %1 = vector.load %arg2[%c0_2, %c0_3, %c0_4] : memref<1x16x4xf32, #tpu.memory_space<vmem>>, vector<1x16x4xf32>
    %c0_5 = arith.constant 0 : index
    %c0_6 = arith.constant 0 : index
    %c0_7 = arith.constant 0 : index
    %2 = vector.load %arg3[%c0_5, %c0_6, %c0_7] : memref<1x16x4xf32, #tpu.memory_space<vmem>>, vector<1x16x4xf32>
    %c0_8 = arith.constant 0 : index
    %c0_9 = arith.constant 0 : index
    %c0_10 = arith.constant 0 : index
    %3 = vector.load %arg4[%c0_8, %c0_9, %c0_10] : memref<1x16x4xf32, #tpu.memory_space<vmem>>, vector<1x16x4xf32>
    %c0_11 = arith.constant 0 : index
    %c0_12 = arith.constant 0 : index
    %c0_13 = arith.constant 0 : index
    %4 = vector.load %arg5[%c0_11, %c0_12, %c0_13] : memref<1x16x1xf32, #tpu.memory_space<vmem>>, vector<1x16x1xf32>
    %c0_14 = arith.constant 0 : index
    %c0_15 = arith.constant 0 : index
    %c0_16 = arith.constant 0 : index
    %5 = vector.load %arg10[%c0_14, %c0_15, %c0_16] : memref<1x1x4xf32, #tpu.memory_space<vmem>>, vector<1x1x4xf32>
    %c0_17 = arith.constant 0 : index
    %c0_18 = arith.constant 0 : index
    %c0_19 = arith.constant 0 : index
    %6 = vector.load %arg11[%c0_17, %c0_18, %c0_19] : memref<1x1x4xf32, #tpu.memory_space<vmem>>, vector<1x1x4xf32>
    %c0_20 = arith.constant 0 : index
    %c0_21 = arith.constant 0 : index
    %c0_22 = arith.constant 0 : index
    %7 = vector.load %arg12[%c0_20, %c0_21, %c0_22] : memref<1x1x4xf32, #tpu.memory_space<vmem>>, vector<1x1x4xf32>
    %c0_23 = arith.constant 0 : index
    %c0_24 = arith.constant 0 : index
    %c0_25 = arith.constant 0 : index
    %8 = vector.load %arg13[%c0_23, %c0_24, %c0_25] : memref<1x1x4xf32, #tpu.memory_space<vmem>>, vector<1x1x4xf32>
    %c0_26 = arith.constant 0 : index
    %c0_27 = arith.constant 0 : index
    %9 = vector.load %arg6[%c0_26, %c0_27] : memref<4x4xf32, #tpu.memory_space<vmem>>, vector<4x4xf32>
    %c0_28 = arith.constant 0 : index
    %c0_29 = arith.constant 0 : index
    %10 = vector.load %arg7[%c0_28, %c0_29] : memref<4x4xf32, #tpu.memory_space<vmem>>, vector<4x4xf32>
    %c0_30 = arith.constant 0 : index
    %c0_31 = arith.constant 0 : index
    %11 = vector.load %arg8[%c0_30, %c0_31] : memref<4x4xf32, #tpu.memory_space<vmem>>, vector<4x4xf32>
    %c0_32 = arith.constant 0 : index
    %c0_33 = arith.constant 0 : index
    %12 = vector.load %arg9[%c0_32, %c0_33] : memref<4x4xf32, #tpu.memory_space<vmem>>, vector<4x4xf32>
    %cst = arith.constant dense<0.000000e+00> : vector<1x16xf32>
    %13 = vector.multi_reduction <add>, %0, %cst [2] : vector<1x16x4xf32> to vector<1x16xf32>
    %14 = vector.shape_cast %13 : vector<1x16xf32> to vector<1x16x1xf32>
    %cst_34 = arith.constant 4.000000e+00 : f32
    %15 = vector.broadcast %cst_34 : f32 to vector<1x16x1xf32>
    %16 = arith.divf %14, %15 : vector<1x16x1xf32>
    %17 = vector.broadcast %16 : vector<1x16x1xf32> to vector<1x16x4xf32>
    %18 = arith.subf %0, %17 : vector<1x16x4xf32>
    %19 = arith.mulf %18, %18 : vector<1x16x4xf32>
    %cst_35 = arith.constant dense<0.000000e+00> : vector<1x16xf32>
    %20 = vector.multi_reduction <add>, %19, %cst_35 [2] : vector<1x16x4xf32> to vector<1x16xf32>
    %21 = vector.shape_cast %20 : vector<1x16xf32> to vector<1x16x1xf32>
    %cst_36 = arith.constant 4.000000e+00 : f32
    %22 = vector.broadcast %cst_36 : f32 to vector<1x16x1xf32>
    %23 = arith.divf %21, %22 : vector<1x16x1xf32>
    %24 = vector.broadcast %16 : vector<1x16x1xf32> to vector<1x16x4xf32>
    %25 = arith.subf %0, %24 : vector<1x16x4xf32>
    %cst_37 = arith.constant 9.99999974E-6 : f32
    %26 = vector.broadcast %cst_37 : f32 to vector<1x16x1xf32>
    %27 = arith.addf %23, %26 : vector<1x16x1xf32>
    %28 = math.rsqrt %27 : vector<1x16x1xf32>
    %29 = vector.broadcast %28 : vector<1x16x1xf32> to vector<1x16x4xf32>
    %30 = arith.mulf %25, %29 : vector<1x16x4xf32>
    %31 = vector.broadcast %5 : vector<1x1x4xf32> to vector<1x16x4xf32>
    %32 = arith.mulf %30, %31 : vector<1x16x4xf32>
    %33 = vector.broadcast %6 : vector<1x1x4xf32> to vector<1x16x4xf32>
    %34 = arith.addf %32, %33 : vector<1x16x4xf32>
    %cst_38 = arith.constant dense<0.000000e+00> : vector<1x16xf32>
    %35 = vector.multi_reduction <add>, %1, %cst_38 [2] : vector<1x16x4xf32> to vector<1x16xf32>
    %36 = vector.shape_cast %35 : vector<1x16xf32> to vector<1x16x1xf32>
    %cst_39 = arith.constant 4.000000e+00 : f32
    %37 = vector.broadcast %cst_39 : f32 to vector<1x16x1xf32>
    %38 = arith.divf %36, %37 : vector<1x16x1xf32>
    %39 = vector.broadcast %38 : vector<1x16x1xf32> to vector<1x16x4xf32>
    %40 = arith.subf %1, %39 : vector<1x16x4xf32>
    %41 = arith.mulf %40, %40 : vector<1x16x4xf32>
    %cst_40 = arith.constant dense<0.000000e+00> : vector<1x16xf32>
    %42 = vector.multi_reduction <add>, %41, %cst_40 [2] : vector<1x16x4xf32> to vector<1x16xf32>
    %43 = vector.shape_cast %42 : vector<1x16xf32> to vector<1x16x1xf32>
    %cst_41 = arith.constant 4.000000e+00 : f32
    %44 = vector.broadcast %cst_41 : f32 to vector<1x16x1xf32>
    %45 = arith.divf %43, %44 : vector<1x16x1xf32>
    %46 = vector.broadcast %38 : vector<1x16x1xf32> to vector<1x16x4xf32>
    %47 = arith.subf %1, %46 : vector<1x16x4xf32>
    %cst_42 = arith.constant 9.99999974E-6 : f32
    %48 = vector.broadcast %cst_42 : f32 to vector<1x16x1xf32>
    %49 = arith.addf %45, %48 : vector<1x16x1xf32>
    %50 = math.rsqrt %49 : vector<1x16x1xf32>
    %51 = vector.broadcast %50 : vector<1x16x1xf32> to vector<1x16x4xf32>
    %52 = arith.mulf %47, %51 : vector<1x16x4xf32>
    %53 = vector.broadcast %7 : vector<1x1x4xf32> to vector<1x16x4xf32>
    %54 = arith.mulf %52, %53 : vector<1x16x4xf32>
    %55 = vector.broadcast %8 : vector<1x1x4xf32> to vector<1x16x4xf32>
    %56 = arith.addf %54, %55 : vector<1x16x4xf32>
    %cst_43 = arith.constant dense<0.000000e+00> : vector<1x16xf32>
    %57 = vector.multi_reduction <add>, %2, %cst_43 [2] : vector<1x16x4xf32> to vector<1x16xf32>
    %58 = vector.shape_cast %57 : vector<1x16xf32> to vector<1x16x1xf32>
    %cst_44 = arith.constant 4.000000e+00 : f32
    %59 = vector.broadcast %cst_44 : f32 to vector<1x16x1xf32>
    %60 = arith.divf %58, %59 : vector<1x16x1xf32>
    %61 = vector.broadcast %60 : vector<1x16x1xf32> to vector<1x16x4xf32>
    %62 = arith.subf %2, %61 : vector<1x16x4xf32>
    %63 = arith.mulf %62, %62 : vector<1x16x4xf32>
    %cst_45 = arith.constant dense<0.000000e+00> : vector<1x16xf32>
    %64 = vector.multi_reduction <add>, %63, %cst_45 [2] : vector<1x16x4xf32> to vector<1x16xf32>
    %65 = vector.shape_cast %64 : vector<1x16xf32> to vector<1x16x1xf32>
    %cst_46 = arith.constant 4.000000e+00 : f32
    %66 = vector.broadcast %cst_46 : f32 to vector<1x16x1xf32>
    %67 = arith.divf %65, %66 : vector<1x16x1xf32>
    %68 = vector.broadcast %60 : vector<1x16x1xf32> to vector<1x16x4xf32>
    %69 = arith.subf %2, %68 : vector<1x16x4xf32>
    %cst_47 = arith.constant 9.99999974E-6 : f32
    %70 = vector.broadcast %cst_47 : f32 to vector<1x16x1xf32>
    %71 = arith.addf %67, %70 : vector<1x16x1xf32>
    %72 = math.rsqrt %71 : vector<1x16x1xf32>
    %73 = vector.broadcast %72 : vector<1x16x1xf32> to vector<1x16x4xf32>
    %74 = arith.mulf %69, %73 : vector<1x16x4xf32>
    %75 = vector.broadcast %5 : vector<1x1x4xf32> to vector<1x16x4xf32>
    %76 = arith.mulf %74, %75 : vector<1x16x4xf32>
    %77 = vector.broadcast %6 : vector<1x1x4xf32> to vector<1x16x4xf32>
    %78 = arith.addf %76, %77 : vector<1x16x4xf32>
    %cst_48 = arith.constant dense<0.000000e+00> : vector<1x16xf32>
    %79 = vector.multi_reduction <add>, %3, %cst_48 [2] : vector<1x16x4xf32> to vector<1x16xf32>
    %80 = vector.shape_cast %79 : vector<1x16xf32> to vector<1x16x1xf32>
    %cst_49 = arith.constant 4.000000e+00 : f32
    %81 = vector.broadcast %cst_49 : f32 to vector<1x16x1xf32>
    %82 = arith.divf %80, %81 : vector<1x16x1xf32>
    %83 = vector.broadcast %82 : vector<1x16x1xf32> to vector<1x16x4xf32>
    %84 = arith.subf %3, %83 : vector<1x16x4xf32>
    %85 = arith.mulf %84, %84 : vector<1x16x4xf32>
    %cst_50 = arith.constant dense<0.000000e+00> : vector<1x16xf32>
    %86 = vector.multi_reduction <add>, %85, %cst_50 [2] : vector<1x16x4xf32> to vector<1x16xf32>
    %87 = vector.shape_cast %86 : vector<1x16xf32> to vector<1x16x1xf32>
    %cst_51 = arith.constant 4.000000e+00 : f32
    %88 = vector.broadcast %cst_51 : f32 to vector<1x16x1xf32>
    %89 = arith.divf %87, %88 : vector<1x16x1xf32>
    %90 = vector.broadcast %82 : vector<1x16x1xf32> to vector<1x16x4xf32>
    %91 = arith.subf %3, %90 : vector<1x16x4xf32>
    %cst_52 = arith.constant 9.99999974E-6 : f32
    %92 = vector.broadcast %cst_52 : f32 to vector<1x16x1xf32>
    %93 = arith.addf %89, %92 : vector<1x16x1xf32>
    %94 = math.rsqrt %93 : vector<1x16x1xf32>
    %95 = vector.broadcast %94 : vector<1x16x1xf32> to vector<1x16x4xf32>
    %96 = arith.mulf %91, %95 : vector<1x16x4xf32>
    %97 = vector.broadcast %7 : vector<1x1x4xf32> to vector<1x16x4xf32>
    %98 = arith.mulf %96, %97 : vector<1x16x4xf32>
    %99 = vector.broadcast %8 : vector<1x1x4xf32> to vector<1x16x4xf32>
    %100 = arith.addf %98, %99 : vector<1x16x4xf32>
    %101 = vector.shape_cast %34 : vector<1x16x4xf32> to vector<16x4xf32>
    %cst_53 = arith.constant dense<0.000000e+00> : vector<16x4xf32>
    %102 = tpu.matmul %101, %9, %cst_53 {dimension_numbers = #tpu.dot_dimension_numbers<[1], [0], [0], [1], [0, 0, 1, 1], [], []>} : vector<16x4xf32>, vector<4x4xf32>, vector<16x4xf32> -> vector<16x4xf32>
    %103 = vector.shape_cast %102 : vector<16x4xf32> to vector<1x16x4xf32>
    %104 = vector.shape_cast %56 : vector<1x16x4xf32> to vector<16x4xf32>
    %cst_54 = arith.constant dense<0.000000e+00> : vector<16x4xf32>
    %105 = tpu.matmul %104, %9, %cst_54 {dimension_numbers = #tpu.dot_dimension_numbers<[1], [0], [0], [1], [0, 0, 1, 1], [], []>} : vector<16x4xf32>, vector<4x4xf32>, vector<16x4xf32> -> vector<16x4xf32>
    %106 = vector.shape_cast %105 : vector<16x4xf32> to vector<1x16x4xf32>
    %107 = vector.shape_cast %78 : vector<1x16x4xf32> to vector<16x4xf32>
    %cst_55 = arith.constant dense<0.000000e+00> : vector<16x4xf32>
    %108 = tpu.matmul %107, %10, %cst_55 {dimension_numbers = #tpu.dot_dimension_numbers<[1], [0], [0], [1], [0, 0, 1, 1], [], []>} : vector<16x4xf32>, vector<4x4xf32>, vector<16x4xf32> -> vector<16x4xf32>
    %109 = vector.shape_cast %108 : vector<16x4xf32> to vector<1x16x4xf32>
    %110 = vector.shape_cast %100 : vector<1x16x4xf32> to vector<16x4xf32>
    %cst_56 = arith.constant dense<0.000000e+00> : vector<16x4xf32>
    %111 = tpu.matmul %110, %10, %cst_56 {dimension_numbers = #tpu.dot_dimension_numbers<[1], [0], [0], [1], [0, 0, 1, 1], [], []>} : vector<16x4xf32>, vector<4x4xf32>, vector<16x4xf32> -> vector<16x4xf32>
    %112 = vector.shape_cast %111 : vector<16x4xf32> to vector<1x16x4xf32>
    %113 = vector.shape_cast %78 : vector<1x16x4xf32> to vector<16x4xf32>
    %cst_57 = arith.constant dense<0.000000e+00> : vector<16x4xf32>
    %114 = tpu.matmul %113, %11, %cst_57 {dimension_numbers = #tpu.dot_dimension_numbers<[1], [0], [0], [1], [0, 0, 1, 1], [], []>} : vector<16x4xf32>, vector<4x4xf32>, vector<16x4xf32> -> vector<16x4xf32>
    %115 = vector.shape_cast %114 : vector<16x4xf32> to vector<1x16x4xf32>
    %116 = vector.broadcast %4 : vector<1x16x1xf32> to vector<1x16x4xf32>
    %117 = arith.mulf %115, %116 : vector<1x16x4xf32>
    %118 = vector.shape_cast %100 : vector<1x16x4xf32> to vector<16x4xf32>
    %cst_58 = arith.constant dense<0.000000e+00> : vector<16x4xf32>
    %119 = tpu.matmul %118, %11, %cst_58 {dimension_numbers = #tpu.dot_dimension_numbers<[1], [0], [0], [1], [0, 0, 1, 1], [], []>} : vector<16x4xf32>, vector<4x4xf32>, vector<16x4xf32> -> vector<16x4xf32>
    %120 = vector.shape_cast %119 : vector<16x4xf32> to vector<1x16x4xf32>
    %121 = vector.broadcast %4 : vector<1x16x1xf32> to vector<1x16x4xf32>
    %122 = arith.mulf %120, %121 : vector<1x16x4xf32>
    "tpu.trace_start"() <{level = 10 : i32, message = "btc,bsc->bts"}> : () -> ()
    %cst_59 = arith.constant dense<0.000000e+00> : vector<1x16x16xf32>
    %123 = tpu.matmul %103, %112, %cst_59 {dimension_numbers = #tpu.dot_dimension_numbers<[2], [2], [1], [1], [0, 0, 0, 1, 1, 1], [0], [0]>} : vector<1x16x4xf32>, vector<1x16x4xf32>, vector<1x16x16xf32> -> vector<1x16x16xf32>
    "tpu.trace_stop"() : () -> ()
    %cst_60 = arith.constant 5.000000e-01 : f32
    %124 = vector.broadcast %cst_60 : f32 to vector<1x16x16xf32>
    %125 = arith.mulf %123, %124 : vector<1x16x16xf32>
    "tpu.trace_start"() <{level = 10 : i32, message = "btc,bsc->bts"}> : () -> ()
    %cst_61 = arith.constant dense<0.000000e+00> : vector<1x16x16xf32>
    %126 = tpu.matmul %106, %109, %cst_61 {dimension_numbers = #tpu.dot_dimension_numbers<[2], [2], [1], [1], [0, 0, 0, 1, 1, 1], [0], [0]>} : vector<1x16x4xf32>, vector<1x16x4xf32>, vector<1x16x16xf32> -> vector<1x16x16xf32>
    "tpu.trace_stop"() : () -> ()
    %cst_62 = arith.constant 5.000000e-01 : f32
    %127 = vector.broadcast %cst_62 : f32 to vector<1x16x16xf32>
    %128 = arith.mulf %126, %127 : vector<1x16x16xf32>
    %cst_63 = arith.constant dense<0xFF800000> : vector<16x16xf32>
    %129 = vector.multi_reduction <maximumf>, %125, %cst_63 [0] : vector<1x16x16xf32> to vector<16x16xf32>
    %130 = vector.shape_cast %129 : vector<16x16xf32> to vector<1x16x16xf32>
    %131 = arith.subf %125, %130 : vector<1x16x16xf32>
    %132 = math.exp %131 : vector<1x16x16xf32>
    %cst_64 = arith.constant dense<0.000000e+00> : vector<16x16xf32>
    %133 = vector.multi_reduction <add>, %132, %cst_64 [0] : vector<1x16x16xf32> to vector<16x16xf32>
    %134 = vector.shape_cast %133 : vector<16x16xf32> to vector<1x16x16xf32>
    %135 = arith.divf %132, %134 : vector<1x16x16xf32>
    %cst_65 = arith.constant dense<0xFF800000> : vector<16x16xf32>
    %136 = vector.multi_reduction <maximumf>, %128, %cst_65 [0] : vector<1x16x16xf32> to vector<16x16xf32>
    %137 = vector.shape_cast %136 : vector<16x16xf32> to vector<1x16x16xf32>
    %138 = arith.subf %128, %137 : vector<1x16x16xf32>
    %139 = math.exp %138 : vector<1x16x16xf32>
    %cst_66 = arith.constant dense<0.000000e+00> : vector<16x16xf32>
    %140 = vector.multi_reduction <add>, %139, %cst_66 [0] : vector<1x16x16xf32> to vector<16x16xf32>
    %141 = vector.shape_cast %140 : vector<16x16xf32> to vector<1x16x16xf32>
    %142 = arith.divf %139, %141 : vector<1x16x16xf32>
    "tpu.trace_start"() <{level = 10 : i32, message = "bts,bsc->btc"}> : () -> ()
    %cst_67 = arith.constant dense<0.000000e+00> : vector<1x16x4xf32>
    %143 = tpu.matmul %135, %117, %cst_67 {dimension_numbers = #tpu.dot_dimension_numbers<[2], [1], [1], [2], [0, 0, 0, 1, 1, 2], [0], [0]>} : vector<1x16x16xf32>, vector<1x16x4xf32>, vector<1x16x4xf32> -> vector<1x16x4xf32>
    %cst_68 = arith.constant dense<0.000000e+00> : vector<1x16x4xf32>
    %144 = tpu.matmul %142, %122, %cst_68 {dimension_numbers = #tpu.dot_dimension_numbers<[2], [1], [1], [2], [0, 0, 0, 1, 1, 2], [0], [0]>} : vector<1x16x16xf32>, vector<1x16x4xf32>, vector<1x16x4xf32> -> vector<1x16x4xf32>
    "tpu.trace_stop"() : () -> ()
    %145 = vector.shape_cast %143 : vector<1x16x4xf32> to vector<16x4xf32>
    %cst_69 = arith.constant dense<0.000000e+00> : vector<16x4xf32>
    %146 = tpu.matmul %145, %12, %cst_69 {dimension_numbers = #tpu.dot_dimension_numbers<[1], [0], [0], [1], [0, 0, 1, 1], [], []>} : vector<16x4xf32>, vector<4x4xf32>, vector<16x4xf32> -> vector<16x4xf32>
    %147 = vector.shape_cast %146 : vector<16x4xf32> to vector<1x16x4xf32>
    %148 = arith.addf %147, %0 : vector<1x16x4xf32>
    %c0_70 = arith.constant 0 : index
    %c0_71 = arith.constant 0 : index
    %c0_72 = arith.constant 0 : index
    %149 = vector.load %arg14[%c0_70, %c0_71, %c0_72] : memref<1x16x4xf32, #tpu.memory_space<vmem>>, vector<1x16x4xf32>
    tpu.vector_store %arg14[%c0_70, %c0_71, %c0_72], %148 {strides = array<i32>} : memref<1x16x4xf32, #tpu.memory_space<vmem>>, vector<1x16x4xf32>,
    %150 = vector.shape_cast %144 : vector<1x16x4xf32> to vector<16x4xf32>
    %cst_73 = arith.constant dense<0.000000e+00> : vector<16x4xf32>
    %151 = tpu.matmul %150, %12, %cst_73 {dimension_numbers = #tpu.dot_dimension_numbers<[1], [0], [0], [1], [0, 0, 1, 1], [], []>} : vector<16x4xf32>, vector<4x4xf32>, vector<16x4xf32> -> vector<16x4xf32>
    %152 = vector.shape_cast %151 : vector<16x4xf32> to vector<1x16x4xf32>
    %153 = arith.addf %152, %1 : vector<1x16x4xf32>
    %c0_74 = arith.constant 0 : index
    %c0_75 = arith.constant 0 : index
    %c0_76 = arith.constant 0 : index
    %154 = vector.load %arg15[%c0_74, %c0_75, %c0_76] : memref<1x16x4xf32, #tpu.memory_space<vmem>>, vector<1x16x4xf32>
    tpu.vector_store %arg15[%c0_74, %c0_75, %c0_76], %153 {strides = array<i32>} : memref<1x16x4xf32, #tpu.memory_space<vmem>>, vector<1x16x4xf32>,
    return
  }
  func.func @transform_0(%arg0: i32) -> (i32, i32, i32) {
    %c0_i32 = arith.constant 0 : i32
    %c0_i32_0 = arith.constant 0 : i32
    %c0_i32_1 = arith.constant 0 : i32
    return %c0_i32, %arg0, %c0_i32_0 : i32, i32, i32
  }
  func.func @transform_1(%arg0: i32) -> (i32, i32, i32) {
    %c0_i32 = arith.constant 0 : i32
    %c0_i32_0 = arith.constant 0 : i32
    %c0_i32_1 = arith.constant 0 : i32
    return %c0_i32, %arg0, %c0_i32_0 : i32, i32, i32
  }
  func.func @transform_2(%arg0: i32) -> (i32, i32, i32) {
    %c0_i32 = arith.constant 0 : i32
    %c0_i32_0 = arith.constant 0 : i32
    %c0_i32_1 = arith.constant 0 : i32
    %c0_i32_2 = arith.constant 0 : i32
    return %c0_i32, %c0_i32_0, %c0_i32_1 : i32, i32, i32
  }
  func.func @transform_3(%arg0: i32) -> (i32, i32, i32) {
    %c0_i32 = arith.constant 0 : i32
    %c0_i32_0 = arith.constant 0 : i32
    %c0_i32_1 = arith.constant 0 : i32
    %c0_i32_2 = arith.constant 0 : i32
    return %c0_i32, %c0_i32_0, %c0_i32_1 : i32, i32, i32
  }
  func.func @transform_4(%arg0: i32) -> (i32, i32, i32) {
    %c0_i32 = arith.constant 0 : i32
    %c0_i32_0 = arith.constant 0 : i32
    %c0_i32_1 = arith.constant 0 : i32
    %c0_i32_2 = arith.constant 0 : i32
    return %c0_i32, %c0_i32_0, %c0_i32_1 : i32, i32, i32
  }
  func.func @transform_5(%arg0: i32) -> (i32, i32) {
    %c0_i32 = arith.constant 0 : i32
    %c0_i32_0 = arith.constant 0 : i32
    %c0_i32_1 = arith.constant 0 : i32
    return %c0_i32, %c0_i32_0 : i32, i32
  }
  func.func @transform_6(%arg0: i32) -> (i32, i32) {
    %c0_i32 = arith.constant 0 : i32
    %c0_i32_0 = arith.constant 0 : i32
    %c0_i32_1 = arith.constant 0 : i32
    return %c0_i32, %c0_i32_0 : i32, i32
  }
  func.func @transform_7(%arg0: i32) -> (i32, i32) {
    %c0_i32 = arith.constant 0 : i32
    %c0_i32_0 = arith.constant 0 : i32
    %c0_i32_1 = arith.constant 0 : i32
    return %c0_i32, %c0_i32_0 : i32, i32
  }
  func.func @transform_8(%arg0: i32) -> (i32, i32) {
    %c0_i32 = arith.constant 0 : i32
    %c0_i32_0 = arith.constant 0 : i32
    %c0_i32_1 = arith.constant 0 : i32
    return %c0_i32, %c0_i32_0 : i32, i32
  }
  func.func @transform_9(%arg0: i32) -> (i32, i32, i32) {
    %c0_i32 = arith.constant 0 : i32
    %c0_i32_0 = arith.constant 0 : i32
    %c0_i32_1 = arith.constant 0 : i32
    %c0_i32_2 = arith.constant 0 : i32
    return %c0_i32, %c0_i32_0, %c0_i32_1 : i32, i32, i32
  }
  func.func @transform_10(%arg0: i32) -> (i32, i32, i32) {
    %c0_i32 = arith.constant 0 : i32
    %c0_i32_0 = arith.constant 0 : i32
    %c0_i32_1 = arith.constant 0 : i32
    %c0_i32_2 = arith.constant 0 : i32
    return %c0_i32, %c0_i32_0, %c0_i32_1 : i32, i32, i32
  }
  func.func @transform_11(%arg0: i32) -> (i32, i32, i32) {
    %c0_i32 = arith.constant 0 : i32
    %c0_i32_0 = arith.constant 0 : i32
    %c0_i32_1 = arith.constant 0 : i32
    %c0_i32_2 = arith.constant 0 : i32
    return %c0_i32, %c0_i32_0, %c0_i32_1 : i32, i32, i32
  }
  func.func @transform_12(%arg0: i32) -> (i32, i32, i32) {
    %c0_i32 = arith.constant 0 : i32
    %c0_i32_0 = arith.constant 0 : i32
    %c0_i32_1 = arith.constant 0 : i32
    %c0_i32_2 = arith.constant 0 : i32
    return %c0_i32, %c0_i32_0, %c0_i32_1 : i32, i32, i32
  }
  func.func @transform_13(%arg0: i32) -> (i32, i32, i32) {
    %c0_i32 = arith.constant 0 : i32
    %c0_i32_0 = arith.constant 0 : i32
    %c0_i32_1 = arith.constant 0 : i32
    return %c0_i32, %arg0, %c0_i32_0 : i32, i32, i32
  }
  func.func @transform_14(%arg0: i32) -> (i32, i32, i32) {
    %c0_i32 = arith.constant 0 : i32
    %c0_i32_0 = arith.constant 0 : i32
    %c0_i32_1 = arith.constant 0 : i32
    return %c0_i32, %arg0, %c0_i32_0 : i32, i32, i32
  }
}

module attributes {stable_mosaic.version = 11 : i64} {
  func.func @_gemm_kernel(%arg0: i32, %arg1: memref<32x36xf32, #tpu.memory_space<vmem>>, %arg2: memref<36x128xf32, #tpu.memory_space<vmem>>, %arg3: memref<32x1xf32, #tpu.memory_space<vmem>>, %arg4: memref<32x128xf32, #tpu.memory_space<vmem>>) attributes {dimension_semantics = [#tpu.dimension_semantics<parallel>], iteration_bounds = array<i64: 1>, scalar_prefetch = 0 : i64, scratch_operands = 0 : i64, tpu.core_type = #tpu.core_type<tc>, window_params = [{pipeline_mode = #tpu.pipeline_mode<synchronous>, transform_indices = @transform_0, window_bounds = array<i64: 32, 36>}, {transform_indices = @transform_1, window_bounds = array<i64: 36, 128>}, {pipeline_mode = #tpu.pipeline_mode<synchronous>, transform_indices = @transform_2, window_bounds = array<i64: 32, 1>}, {transform_indices = @transform_3, window_bounds = array<i64: 32, 128>}]} {
    %c0 = arith.constant 0 : index
    %c0_0 = arith.constant 0 : index
    %0 = vector.load %arg1[%c0, %c0_0] : memref<32x36xf32, #tpu.memory_space<vmem>>, vector<32x36xf32>
    %c0_1 = arith.constant 0 : index
    %c0_2 = arith.constant 0 : index
    %1 = vector.load %arg2[%c0_1, %c0_2] : memref<36x128xf32, #tpu.memory_space<vmem>>, vector<36x128xf32>
    %cst = arith.constant dense<0.000000e+00> : vector<32x128xf32>
    %2 = tpu.matmul %0, %1, %cst {dimension_numbers = #tpu.dot_dimension_numbers<[1], [0], [0], [1], [0, 0, 1, 1], [], []>} : vector<32x36xf32>, vector<36x128xf32>, vector<32x128xf32> -> vector<32x128xf32>
    %c0_3 = arith.constant 0 : index
    %c0_4 = arith.constant 0 : index
    %3 = vector.load %arg3[%c0_3, %c0_4] : memref<32x1xf32, #tpu.memory_space<vmem>>, vector<32x1xf32>
    %4 = vector.broadcast %3 : vector<32x1xf32> to vector<32x128xf32>
    %5 = arith.addf %2, %4 : vector<32x128xf32>
    %cst_5 = arith.constant 0.000000e+00 : f32
    %6 = vector.broadcast %cst_5 : f32 to vector<32x128xf32>
    %7 = arith.cmpf oge, %5, %6 : vector<32x128xf32>
    %cst_6 = arith.constant 0.00999999977 : f32
    %8 = vector.broadcast %cst_6 : f32 to vector<32x128xf32>
    %9 = arith.mulf %8, %5 : vector<32x128xf32>
    %10 = arith.select %7, %5, %9 : vector<32x128xi1>, vector<32x128xf32>
    %c0_7 = arith.constant 0 : index
    %c0_8 = arith.constant 0 : index
    %11 = vector.load %arg4[%c0_7, %c0_8] : memref<32x128xf32, #tpu.memory_space<vmem>>, vector<32x128xf32>
    tpu.vector_store %arg4[%c0_7, %c0_8], %10 {strides = array<i32>} : memref<32x128xf32, #tpu.memory_space<vmem>>, vector<32x128xf32>,
    return
  }
  func.func @transform_0(%arg0: i32) -> (i32, i32) {
    %c0_i32 = arith.constant 0 : i32
    %c0_i32_0 = arith.constant 0 : i32
    %c0_i32_1 = arith.constant 0 : i32
    return %c0_i32, %c0_i32_0 : i32, i32
  }
  func.func @transform_1(%arg0: i32) -> (i32, i32) {
    %c0_i32 = arith.constant 0 : i32
    %c0_i32_0 = arith.constant 0 : i32
    return %c0_i32, %arg0 : i32, i32
  }
  func.func @transform_2(%arg0: i32) -> (i32, i32) {
    %c0_i32 = arith.constant 0 : i32
    %c0_i32_0 = arith.constant 0 : i32
    %c0_i32_1 = arith.constant 0 : i32
    return %c0_i32, %c0_i32_0 : i32, i32
  }
  func.func @transform_3(%arg0: i32) -> (i32, i32) {
    %c0_i32 = arith.constant 0 : i32
    %c0_i32_0 = arith.constant 0 : i32
    return %c0_i32, %arg0 : i32, i32
  }
}

module attributes {stable_mosaic.version = 11 : i64} {
  func.func @_gemm_kernel(%arg0: i32, %arg1: memref<32x72xf32, #tpu.memory_space<vmem>>, %arg2: memref<72x128xf32, #tpu.memory_space<vmem>>, %arg3: memref<32x1xf32, #tpu.memory_space<vmem>>, %arg4: memref<32x128xf32, #tpu.memory_space<vmem>>) attributes {dimension_semantics = [#tpu.dimension_semantics<parallel>], iteration_bounds = array<i64: 1>, scalar_prefetch = 0 : i64, scratch_operands = 0 : i64, tpu.core_type = #tpu.core_type<tc>, window_params = [{pipeline_mode = #tpu.pipeline_mode<synchronous>, transform_indices = @transform_0, window_bounds = array<i64: 32, 72>}, {transform_indices = @transform_1, window_bounds = array<i64: 72, 128>}, {pipeline_mode = #tpu.pipeline_mode<synchronous>, transform_indices = @transform_2, window_bounds = array<i64: 32, 1>}, {transform_indices = @transform_3, window_bounds = array<i64: 32, 128>}]} {
    %c0 = arith.constant 0 : index
    %c0_0 = arith.constant 0 : index
    %0 = vector.load %arg1[%c0, %c0_0] : memref<32x72xf32, #tpu.memory_space<vmem>>, vector<32x72xf32>
    %c0_1 = arith.constant 0 : index
    %c0_2 = arith.constant 0 : index
    %1 = vector.load %arg2[%c0_1, %c0_2] : memref<72x128xf32, #tpu.memory_space<vmem>>, vector<72x128xf32>
    %cst = arith.constant dense<0.000000e+00> : vector<32x128xf32>
    %2 = tpu.matmul %0, %1, %cst {dimension_numbers = #tpu.dot_dimension_numbers<[1], [0], [0], [1], [0, 0, 1, 1], [], []>} : vector<32x72xf32>, vector<72x128xf32>, vector<32x128xf32> -> vector<32x128xf32>
    %c0_3 = arith.constant 0 : index
    %c0_4 = arith.constant 0 : index
    %3 = vector.load %arg3[%c0_3, %c0_4] : memref<32x1xf32, #tpu.memory_space<vmem>>, vector<32x1xf32>
    %4 = vector.broadcast %3 : vector<32x1xf32> to vector<32x128xf32>
    %5 = arith.addf %2, %4 : vector<32x128xf32>
    %cst_5 = arith.constant 0.000000e+00 : f32
    %6 = vector.broadcast %cst_5 : f32 to vector<32x128xf32>
    %7 = arith.cmpf oge, %5, %6 : vector<32x128xf32>
    %cst_6 = arith.constant 0.00999999977 : f32
    %8 = vector.broadcast %cst_6 : f32 to vector<32x128xf32>
    %9 = arith.mulf %8, %5 : vector<32x128xf32>
    %10 = arith.select %7, %5, %9 : vector<32x128xi1>, vector<32x128xf32>
    %c0_7 = arith.constant 0 : index
    %c0_8 = arith.constant 0 : index
    %11 = vector.load %arg4[%c0_7, %c0_8] : memref<32x128xf32, #tpu.memory_space<vmem>>, vector<32x128xf32>
    tpu.vector_store %arg4[%c0_7, %c0_8], %10 {strides = array<i32>} : memref<32x128xf32, #tpu.memory_space<vmem>>, vector<32x128xf32>,
    return
  }
  func.func @transform_0(%arg0: i32) -> (i32, i32) {
    %c0_i32 = arith.constant 0 : i32
    %c0_i32_0 = arith.constant 0 : i32
    %c0_i32_1 = arith.constant 0 : i32
    return %c0_i32, %c0_i32_0 : i32, i32
  }
  func.func @transform_1(%arg0: i32) -> (i32, i32) {
    %c0_i32 = arith.constant 0 : i32
    %c0_i32_0 = arith.constant 0 : i32
    return %c0_i32, %arg0 : i32, i32
  }
  func.func @transform_2(%arg0: i32) -> (i32, i32) {
    %c0_i32 = arith.constant 0 : i32
    %c0_i32_0 = arith.constant 0 : i32
    %c0_i32_1 = arith.constant 0 : i32
    return %c0_i32, %c0_i32_0 : i32, i32
  }
  func.func @transform_3(%arg0: i32) -> (i32, i32) {
    %c0_i32 = arith.constant 0 : i32
    %c0_i32_0 = arith.constant 0 : i32
    return %c0_i32, %arg0 : i32, i32
  }
}

module attributes {stable_mosaic.version = 11 : i64} {
  func.func @_gemm_kernel(%arg0: i32, %arg1: memref<32x72xf32, #tpu.memory_space<vmem>>, %arg2: memref<72x256xf32, #tpu.memory_space<vmem>>, %arg3: memref<32x1xf32, #tpu.memory_space<vmem>>, %arg4: memref<32x256xf32, #tpu.memory_space<vmem>>) attributes {dimension_semantics = [#tpu.dimension_semantics<parallel>], iteration_bounds = array<i64: 1>, scalar_prefetch = 0 : i64, scratch_operands = 0 : i64, tpu.core_type = #tpu.core_type<tc>, window_params = [{pipeline_mode = #tpu.pipeline_mode<synchronous>, transform_indices = @transform_0, window_bounds = array<i64: 32, 72>}, {transform_indices = @transform_1, window_bounds = array<i64: 72, 256>}, {pipeline_mode = #tpu.pipeline_mode<synchronous>, transform_indices = @transform_2, window_bounds = array<i64: 32, 1>}, {transform_indices = @transform_3, window_bounds = array<i64: 32, 256>}]} {
    %c0 = arith.constant 0 : index
    %c0_0 = arith.constant 0 : index
    %0 = vector.load %arg1[%c0, %c0_0] : memref<32x72xf32, #tpu.memory_space<vmem>>, vector<32x72xf32>
    %c0_1 = arith.constant 0 : index
    %c0_2 = arith.constant 0 : index
    %1 = vector.load %arg2[%c0_1, %c0_2] : memref<72x256xf32, #tpu.memory_space<vmem>>, vector<72x256xf32>
    %cst = arith.constant dense<0.000000e+00> : vector<32x256xf32>
    %2 = tpu.matmul %0, %1, %cst {dimension_numbers = #tpu.dot_dimension_numbers<[1], [0], [0], [1], [0, 0, 1, 1], [], []>} : vector<32x72xf32>, vector<72x256xf32>, vector<32x256xf32> -> vector<32x256xf32>
    %c0_3 = arith.constant 0 : index
    %c0_4 = arith.constant 0 : index
    %3 = vector.load %arg3[%c0_3, %c0_4] : memref<32x1xf32, #tpu.memory_space<vmem>>, vector<32x1xf32>
    %4 = vector.broadcast %3 : vector<32x1xf32> to vector<32x256xf32>
    %5 = arith.addf %2, %4 : vector<32x256xf32>
    %cst_5 = arith.constant 0.000000e+00 : f32
    %6 = vector.broadcast %cst_5 : f32 to vector<32x256xf32>
    %7 = arith.cmpf oge, %5, %6 : vector<32x256xf32>
    %cst_6 = arith.constant 0.00999999977 : f32
    %8 = vector.broadcast %cst_6 : f32 to vector<32x256xf32>
    %9 = arith.mulf %8, %5 : vector<32x256xf32>
    %10 = arith.select %7, %5, %9 : vector<32x256xi1>, vector<32x256xf32>
    %c0_7 = arith.constant 0 : index
    %c0_8 = arith.constant 0 : index
    %11 = vector.load %arg4[%c0_7, %c0_8] : memref<32x256xf32, #tpu.memory_space<vmem>>, vector<32x256xf32>
    tpu.vector_store %arg4[%c0_7, %c0_8], %10 {strides = array<i32>} : memref<32x256xf32, #tpu.memory_space<vmem>>, vector<32x256xf32>,
    return
  }
  func.func @transform_0(%arg0: i32) -> (i32, i32) {
    %c0_i32 = arith.constant 0 : i32
    %c0_i32_0 = arith.constant 0 : i32
    %c0_i32_1 = arith.constant 0 : i32
    return %c0_i32, %c0_i32_0 : i32, i32
  }
  func.func @transform_1(%arg0: i32) -> (i32, i32) {
    %c0_i32 = arith.constant 0 : i32
    %c0_i32_0 = arith.constant 0 : i32
    return %c0_i32, %arg0 : i32, i32
  }
  func.func @transform_2(%arg0: i32) -> (i32, i32) {
    %c0_i32 = arith.constant 0 : i32
    %c0_i32_0 = arith.constant 0 : i32
    %c0_i32_1 = arith.constant 0 : i32
    return %c0_i32, %c0_i32_0 : i32, i32
  }
  func.func @transform_3(%arg0: i32) -> (i32, i32) {
    %c0_i32 = arith.constant 0 : i32
    %c0_i32_0 = arith.constant 0 : i32
    return %c0_i32, %arg0 : i32, i32
  }
}

module attributes {stable_mosaic.version = 11 : i64} {
  func.func @_gemm_kernel(%arg0: i32, %arg1: memref<12x72xf32, #tpu.memory_space<vmem>>, %arg2: memref<72x512xf32, #tpu.memory_space<vmem>>, %arg3: memref<12x1xf32, #tpu.memory_space<vmem>>, %arg4: memref<12x512xf32, #tpu.memory_space<vmem>>) attributes {dimension_semantics = [#tpu.dimension_semantics<parallel>], iteration_bounds = array<i64: 2>, scalar_prefetch = 0 : i64, scratch_operands = 0 : i64, tpu.core_type = #tpu.core_type<tc>, window_params = [{pipeline_mode = #tpu.pipeline_mode<synchronous>, transform_indices = @transform_0, window_bounds = array<i64: 12, 72>}, {transform_indices = @transform_1, window_bounds = array<i64: 72, 512>}, {pipeline_mode = #tpu.pipeline_mode<synchronous>, transform_indices = @transform_2, window_bounds = array<i64: 12, 1>}, {transform_indices = @transform_3, window_bounds = array<i64: 12, 512>}]} {
    %c0 = arith.constant 0 : index
    %c0_0 = arith.constant 0 : index
    %0 = vector.load %arg1[%c0, %c0_0] : memref<12x72xf32, #tpu.memory_space<vmem>>, vector<12x72xf32>
    %c0_1 = arith.constant 0 : index
    %c0_2 = arith.constant 0 : index
    %1 = vector.load %arg2[%c0_1, %c0_2] : memref<72x512xf32, #tpu.memory_space<vmem>>, vector<72x512xf32>
    %cst = arith.constant dense<0.000000e+00> : vector<12x512xf32>
    %2 = tpu.matmul %0, %1, %cst {dimension_numbers = #tpu.dot_dimension_numbers<[1], [0], [0], [1], [0, 0, 1, 1], [], []>} : vector<12x72xf32>, vector<72x512xf32>, vector<12x512xf32> -> vector<12x512xf32>
    %c0_3 = arith.constant 0 : index
    %c0_4 = arith.constant 0 : index
    %3 = vector.load %arg3[%c0_3, %c0_4] : memref<12x1xf32, #tpu.memory_space<vmem>>, vector<12x1xf32>
    %4 = vector.broadcast %3 : vector<12x1xf32> to vector<12x512xf32>
    %5 = arith.addf %2, %4 : vector<12x512xf32>
    %c0_5 = arith.constant 0 : index
    %c0_6 = arith.constant 0 : index
    %6 = vector.load %arg4[%c0_5, %c0_6] : memref<12x512xf32, #tpu.memory_space<vmem>>, vector<12x512xf32>
    tpu.vector_store %arg4[%c0_5, %c0_6], %5 {strides = array<i32>} : memref<12x512xf32, #tpu.memory_space<vmem>>, vector<12x512xf32>,
    return
  }
  func.func @transform_0(%arg0: i32) -> (i32, i32) {
    %c0_i32 = arith.constant 0 : i32
    %c0_i32_0 = arith.constant 0 : i32
    %c0_i32_1 = arith.constant 0 : i32
    return %c0_i32, %c0_i32_0 : i32, i32
  }
  func.func @transform_1(%arg0: i32) -> (i32, i32) {
    %c0_i32 = arith.constant 0 : i32
    %c0_i32_0 = arith.constant 0 : i32
    return %c0_i32, %arg0 : i32, i32
  }
  func.func @transform_2(%arg0: i32) -> (i32, i32) {
    %c0_i32 = arith.constant 0 : i32
    %c0_i32_0 = arith.constant 0 : i32
    %c0_i32_1 = arith.constant 0 : i32
    return %c0_i32, %c0_i32_0 : i32, i32
  }
  func.func @transform_3(%arg0: i32) -> (i32, i32) {
    %c0_i32 = arith.constant 0 : i32
    %c0_i32_0 = arith.constant 0 : i32
    return %c0_i32, %arg0 : i32, i32
  }
}

</mosaic_0001>

<llo_original>
// kernel: tile.83
$region0: #{tile.83}
  #allocation2 [shape = 's32[1]{0}', space=sflag, size = 0x4, scoped, tag = 'scoped memory for tile.83']
  %s0 = inlined_call_operand.hbm [shape: f32[8], index: 0, kind: input, shape index: {}]
  %s1 = inlined_call_operand.vmem [shape: f32[4,8], index: 1, kind: output, shape index: {}]
  $region1: #{tile.83} parent=0
    #allocation0 [shape = 'u8[512]{0}', space=vmem, size = 0x400, scoped, tag = 'operand span for operand 0']
    #allocation1 [shape = 's32[1]{0}', space=sflag, size = 0x4, scoped, tag = 'scoped memory for tile.83']
    %2 = vsyncpa [#allocation1], 0
    // Predicated region
    $region2: #{tile.83} parent=1 // pred_check
      _
    $region3: #{tile.83} parent=1 // pred_check_branch
      %4 = sbr.rel (0) target = $region5
    $region4: #{tile.83} parent=1 // pred_region
      %6 = vsyncadd [#allocation1], 0
      %s8 = sshll.u32 %s0, 4
      %s9 = int_to_ptr.hbm [resolvable:$true] %s8
      %s10 = sshll.u32 [#allocation0], 4
      %s11 = int_to_ptr.vmem [resolvable:$true] %s10
      %13 = dma.hbm_to_vmem [thread:$0]  %s9, 16, %s11, [#allocation1]
    $region5: #{tile.83} parent=1 // pred_fallthru
      _
    // Predicated region
    $region6: #{tile.83} parent=1 // pred_check
      _
    $region7: #{tile.83} parent=1 // pred_check_branch
      %15 = sbr.rel (0) target = $region9
    $region8: #{tile.83} parent=1 // pred_region
      %17 = dma.done [#allocation1], 16
    $region9: #{tile.83} parent=1 // pred_fallthru
      _
    %v18 = vld [vmem:[#allocation0] ss:$0 sm:$0xff]
    %19 = vst [vmem:[%s1] sm:$0xf] %v18
    %20 = vsyncpa [#allocation1], 1

// kernel: tile.98
$region0: #{tile.98}
  #allocation2 [shape = 's32[1]{0}', space=sflag, size = 0x4, scoped, tag = 'scoped memory for tile.98']
  %s0 = inlined_call_operand.hbm [shape: f32[3], index: 0, kind: input, shape index: {}]
  %s1 = inlined_call_operand.vmem [shape: f32[4,3], index: 1, kind: output, shape index: {}]
  $region1: #{tile.98} parent=0
    #allocation0 [shape = 'u8[512]{0}', space=vmem, size = 0x400, scoped, tag = 'operand span for operand 0']
    #allocation1 [shape = 's32[1]{0}', space=sflag, size = 0x4, scoped, tag = 'scoped memory for tile.98']
    %2 = vsyncpa [#allocation1], 0
    // Predicated region
    $region2: #{tile.98} parent=1 // pred_check
      _
    $region3: #{tile.98} parent=1 // pred_check_branch
      %4 = sbr.rel (0) target = $region5
    $region4: #{tile.98} parent=1 // pred_region
      %6 = vsyncadd [#allocation1], 0
      %s8 = sshll.u32 %s0, 4
      %s9 = int_to_ptr.hbm [resolvable:$true] %s8
      %s10 = sshll.u32 [#allocation0], 4
      %s11 = int_to_ptr.vmem [resolvable:$true] %s10
      %13 = dma.hbm_to_vmem [thread:$0]  %s9, 16, %s11, [#allocation1]
    $region5: #{tile.98} parent=1 // pred_fallthru
      _
    // Predicated region
    $region6: #{tile.98} parent=1 // pred_check
      _
    $region7: #{tile.98} parent=1 // pred_check_branch
      %15 = sbr.rel (0) target = $region9
    $region8: #{tile.98} parent=1 // pred_region
      %17 = dma.done [#allocation1], 16
    $region9: #{tile.98} parent=1 // pred_fallthru
      _
    %v18 = vld [vmem:[#allocation0] ss:$0 sm:$0xff]
    %19 = vst [vmem:[%s1] sm:$0xf] %v18
    %20 = vsyncpa [#allocation1], 1

// kernel: tile.11
$region0: #{tile.11}
  %s0 = inlined_call_operand.vmem [shape: f32[4,3], index: 0, kind: input, shape index: {}]
  %s1 = inlined_call_operand.vmem [shape: f32[12,1], index: 1, kind: output, shape index: {}]
  $region1: #{tile.11} parent=0
    #allocation0 [shape = 'u8[4096]{0}', space=vmem, size = 0x1000, scoped, tag = 'scoped mem for input reshape']
    %s3 = ssub.s32 16, 1
    %v4 = vld [vmem:[%s0] sm:%s3]
    %5 = vst [vmem:[#allocation0] sm:%s3] %v4
    %v6 = vld [vmem:[#allocation0] sm:$0xf]
    %vm7 = vcmask 7168
    %8 = vst.msk [vmem:[%s1] ss:$3 sm:$0xf] %vm7, %v6
    %v9 = vld [vmem:[#allocation0] sm:$0xf]
    %10 = vrot.lane.b32.xlu0 %v9, 127
    %v11 = vpop.permute.xlu0 %10
    %vm12 = vcmask 7168
    %s13 = scalar_lea.vmem %s1, 1
    %14 = vst.msk [vmem:[%s13] ss:$3 sm:$0xf] %vm12, %v11
    %v15 = vld [vmem:[#allocation0] sm:$0xf]
    %16 = vrot.lane.b32.xlu0 %v15, 126
    %v17 = vpop.permute.xlu0 %16
    %vm18 = vcmask 7168
    %s19 = scalar_lea.vmem %s1, 2
    %20 = vst.msk [vmem:[%s19] ss:$3 sm:$0xf] %vm18, %v17

// kernel: tile.3
$region0: #{tile.3}
  %s0 = inlined_call_operand.vmem [shape: f32[4,8], index: 0, kind: input, shape index: {}]
  %s1 = inlined_call_operand.vmem [shape: f32[32,1], index: 1, kind: output, shape index: {}]
  $region1: #{tile.3} parent=0
    #allocation0 [shape = 'u8[4096]{0}', space=vmem, size = 0x1000, scoped, tag = 'scoped mem for input reshape']
    %s3 = ssub.s32 16, 1
    %v4 = vld [vmem:[%s0] sm:%s3]
    %5 = vst [vmem:[#allocation0] sm:%s3] %v4
    %v6 = vld [vmem:[#allocation0] sm:$0xf]
    %vm7 = vcmask 7168
    %8 = vst.msk [vmem:[%s1] ss:$8 sm:$0xf] %vm7, %v6
    %v9 = vld [vmem:[#allocation0] sm:$0xf]
    %10 = vrot.lane.b32.xlu0 %v9, 127
    %v11 = vpop.permute.xlu0 %10
    %vm12 = vcmask 7168
    %s13 = scalar_lea.vmem %s1, 1
    %14 = vst.msk [vmem:[%s13] ss:$8 sm:$0xf] %vm12, %v11
    %v15 = vld [vmem:[#allocation0] sm:$0xf]
    %16 = vrot.lane.b32.xlu0 %v15, 126
    %v17 = vpop.permute.xlu0 %16
    %vm18 = vcmask 7168
    %s19 = scalar_lea.vmem %s1, 2
    %20 = vst.msk [vmem:[%s19] ss:$8 sm:$0xf] %vm18, %v17
    %v21 = vld [vmem:[#allocation0] sm:$0xf]
    %22 = vrot.lane.b32.xlu0 %v21, 125
    %v23 = vpop.permute.xlu0 %22
    %vm24 = vcmask 7168
    %s25 = scalar_lea.vmem %s1, 3
    %26 = vst.msk [vmem:[%s25] ss:$8 sm:$0xf] %vm24, %v23
    %v27 = vld [vmem:[#allocation0] sm:$0xf]
    %28 = vrot.lane.b32.xlu0 %v27, 124
    %v29 = vpop.permute.xlu0 %28
    %vm30 = vcmask 7168
    %s31 = scalar_lea.vmem %s1, 4
    %32 = vst.msk [vmem:[%s31] ss:$8 sm:$0xf] %vm30, %v29
    %v33 = vld [vmem:[#allocation0] sm:$0xf]
    %34 = vrot.lane.b32.xlu0 %v33, 123
    %v35 = vpop.permute.xlu0 %34
    %vm36 = vcmask 7168
    %s37 = scalar_lea.vmem %s1, 5
    %38 = vst.msk [vmem:[%s37] ss:$8 sm:$0xf] %vm36, %v35
    %v39 = vld [vmem:[#allocation0] sm:$0xf]
    %40 = vrot.lane.b32.xlu0 %v39, 122
    %v41 = vpop.permute.xlu0 %40
    %vm42 = vcmask 7168
    %s43 = scalar_lea.vmem %s1, 6
    %44 = vst.msk [vmem:[%s43] ss:$8 sm:$0xf] %vm42, %v41
    %v45 = vld [vmem:[#allocation0] sm:$0xf]
    %46 = vrot.lane.b32.xlu0 %v45, 121
    %v47 = vpop.permute.xlu0 %46
    %vm48 = vcmask 7168
    %s49 = scalar_lea.vmem %s1, 7
    %50 = vst.msk [vmem:[%s49] ss:$8 sm:$0xf] %vm48, %v47

// kernel: image_coding_forward.49
$region0: #{image_coding_forward.49}
  #allocation0 [shape = 'u32[]', space=smem, size = 0x4, offset = 0x4, fixed_abs, tag = 'smem constant byte address 0x4 - core index']
  #allocation1 [shape = 'u32[72,128]{1,0:T(1,128)}', space=vmem, size = 0x9000, scoped, tag = 'internal scratch']
  %s0 = inlined_call_operand.vmem [shape: f32[8,75], index: 0, kind: input, shape index: {}]
  %s1 = inlined_call_operand.vmem [shape: f32[75,256], index: 1, kind: input, shape index: {}]
  %s2 = inlined_call_operand.vmem [shape: f32[8,1], index: 2, kind: input, shape index: {}]
  %s3 = inlined_call_operand.vmem [shape: f32[8,256], index: 3, kind: output, shape index: {}]
  %s4 = sld [smem:[#allocation0]]
  $region22: #{image_coding_forward.49} parent=0
    _
  %s6 = ssub.s32 1, %s4
  %s7 = scalar_select 0, %s6, %s4
  // Predicated region
  $region2: #{image_coding_forward.49} parent=0 // pred_check
    _
  $region3: #{image_coding_forward.49} parent=0 // pred_check_branch
    %9 = sbr.rel (0) target = $region5
  $region4: #{image_coding_forward.49} parent=0 // pred_region
    _
  $region5: #{image_coding_forward.49} parent=0 // pred_fallthru
    _
  // Predicated region
  $region6: #{image_coding_forward.49} parent=0 // pred_check
    _
  $region7: #{image_coding_forward.49} parent=0 // pred_check_branch
    %11 = sbr.rel (0) target = $region9
  $region8: #{image_coding_forward.49} parent=0 // pred_region
    _
  $region9: #{image_coding_forward.49} parent=0 // pred_fallthru
    _
  // Predicated region
  $region10: #{image_coding_forward.49} parent=0 // pred_check
    _
  $region11: #{image_coding_forward.49} parent=0 // pred_check_branch
    %13 = sbr.rel (0) target = $region13
  $region12: #{image_coding_forward.49} parent=0 // pred_region
    _
  $region13: #{image_coding_forward.49} parent=0 // pred_fallthru
    _
  %v14 = vld [vmem:[%s0] sm:$0xff]
  %v15 = vld [vmem:[%s1] sm:$0xff]
  %v16 = vld [vmem:[%s1 + $0x8] sm:$0xff]
  %v17 = vld [vmem:[%s1 + $0x10] sm:$0xff]
  %v18 = vld [vmem:[%s1 + $0x18] sm:$0xff]
  %v19 = vld [vmem:[%s1 + $0x20] sm:$0xff]
  %v20 = vld [vmem:[%s1 + $0x28] sm:$0xff]
  %v21 = vld [vmem:[%s1 + $0x30] sm:$0xff]
  %v22 = vld [vmem:[%s1 + $0x38] sm:$0xff]
  %v23 = vld [vmem:[%s1 + $0x40] sm:$0xff]
  %v24 = vld [vmem:[%s1 + $0x48] sm:$0xff]
  %v25 = vld [vmem:[%s1 + $0x50] sm:$0xff]
  %v26 = vld [vmem:[%s1 + $0x58] sm:$0xff]
  %v27 = vld [vmem:[%s1 + $0x60] sm:$0xff]
  %v28 = vld [vmem:[%s1 + $0x68] sm:$0xff]
  %v29 = vld [vmem:[%s1 + $0x70] sm:$0xff]
  %v30 = vld [vmem:[%s1 + $0x78] sm:$0xff]
  %v31 = vld [vmem:[%s1 + $0x80] sm:$0xff]
  %v32 = vld [vmem:[%s1 + $0x88] sm:$0xff]
  %v33 = vld [vmem:[%s1 + $0x90] sm:$0x7]
  %v34 = vld [vmem:[%s1 + $0x98] sm:$0x7]
  %v35 = vld [vmem:[%s2] sm:$0xff]
  %37 = vset.pattern.permute.xlu0 0
  %38 = vperm.xlu0 %37, %v35
  %v39 = vpop.permute.xlu0 %38
  %vm41 = vcmask 613376
  %v43 = vsel %vm41, %v14, 0
  %vm45 = vcmask 1042432
  %v47 = vsel %vm45, %v33, 0
  %v50 = vsel %vm45, %v34, 0
  %52 = vmatpush.msra.mxu0 0.0
  %53 = vmatpush.msra.mxu0 0.0
  %54 = vmatpush.msra.mxu0 0.0
  %55 = vmatpush.msra.mxu0 0.0
  %56 = vmatpush.msra.mxu0 0.0
  %57 = vmatpush.msra.mxu0 0.0
  %58 = vmatpush.msra.mxu0 %v47
  %59 = vmatpush.msra.mxu0 %v31
  %60 = vmatpush.msra.mxu0 %v29
  %61 = vmatpush.msra.mxu0 %v27
  %62 = vmatpush.msra.mxu0 %v25
  %63 = vmatpush.msra.mxu0 %v23
  %64 = vmatpush.msra.mxu0 %v21
  %65 = vmatpush.msra.mxu0 %v19
  %66 = vmatpush.msra.mxu0 %v17
  %67 = vmatpush.msra.mxu0 %v15
  %68 = vmatmul.f32.gmra.mxu0 %v43
  %v69 = vpop.f32.mrf.mxu0
  %v70 = vadd.f32 %v39, %v69
  %71 = vdwg.mxu0
  %72 = vmatpush.msra.mxu0 0.0
  %73 = vmatpush.msra.mxu0 0.0
  %74 = vmatpush.msra.mxu0 0.0
  %75 = vmatpush.msra.mxu0 0.0
  %76 = vmatpush.msra.mxu0 0.0
  %77 = vmatpush.msra.mxu0 0.0
  %78 = vmatpush.msra.mxu0 %v50
  %79 = vmatpush.msra.mxu0 %v32
  %80 = vmatpush.msra.mxu0 %v30
  %81 = vmatpush.msra.mxu0 %v28
  %82 = vmatpush.msra.mxu0 %v26
  %83 = vmatpush.msra.mxu0 %v24
  %84 = vmatpush.msra.mxu0 %v22
  %85 = vmatpush.msra.mxu0 %v20
  %86 = vmatpush.msra.mxu0 %v18
  %87 = vmatpush.msra.mxu0 %v16
  %88 = vmatmul.f32.gmra.mxu0 %v43
  %v89 = vpop.f32.mrf.mxu0
  %v90 = vadd.f32 %v39, %v89
  %91 = vdwg.mxu0
  %v92 = vmax.f32 %v70, 0.0
  %v93 = vmax.f32 %v90, 0.0
  %94 = vst [vmem:[%s3] sm:$0xff] %v92
  %95 = vst [vmem:[%s3 + $0x8] sm:$0xff] %v93
  // Predicated region
  $region14: #{image_coding_forward.49} parent=0 // pred_check
    _
  $region15: #{image_coding_forward.49} parent=0 // pred_check_branch
    %97 = sbr.rel (0) target = $region17
  $region16: #{image_coding_forward.49} parent=0 // pred_region
    _
  $region17: #{image_coding_forward.49} parent=0 // pred_fallthru
    _
  // Predicated region
  $region18: #{image_coding_forward.49} parent=0 // pred_check
    _
  $region19: #{image_coding_forward.49} parent=0 // pred_check_branch
    %99 = sbr.rel (0) target = $region21
  $region20: #{image_coding_forward.49} parent=0 // pred_region
    _
  $region21: #{image_coding_forward.49} parent=0 // pred_fallthru
    _

// kernel: image_coding_forward.38
$region0: #{image_coding_forward.38}
  #allocation0 [shape = 'u32[]', space=smem, size = 0x4, offset = 0x4, fixed_abs, tag = 'smem constant byte address 0x4 - core index']
  #allocation1 [shape = 'u32[72,128]{1,0:T(1,128)}', space=vmem, size = 0x9000, scoped, tag = 'internal scratch']
  %s0 = inlined_call_operand.vmem [shape: f32[8,200], index: 0, kind: input, shape index: {}]
  %s1 = inlined_call_operand.vmem [shape: f32[200,128], index: 1, kind: input, shape index: {}]
  %s2 = inlined_call_operand.vmem [shape: f32[8,1], index: 2, kind: input, shape index: {}]
  %s3 = inlined_call_operand.vmem [shape: f32[8,128], index: 3, kind: output, shape index: {}]
  %s4 = sld [smem:[#allocation0]]
  $region22: #{image_coding_forward.38} parent=0
    _
  %s6 = ssub.s32 1, %s4
  %s7 = scalar_select 0, %s6, %s4
  // Predicated region
  $region2: #{image_coding_forward.38} parent=0 // pred_check
    _
  $region3: #{image_coding_forward.38} parent=0 // pred_check_branch
    %9 = sbr.rel (0) target = $region5
  $region4: #{image_coding_forward.38} parent=0 // pred_region
    _
  $region5: #{image_coding_forward.38} parent=0 // pred_fallthru
    _
  // Predicated region
  $region6: #{image_coding_forward.38} parent=0 // pred_check
    _
  $region7: #{image_coding_forward.38} parent=0 // pred_check_branch
    %11 = sbr.rel (0) target = $region9
  $region8: #{image_coding_forward.38} parent=0 // pred_region
    _
  $region9: #{image_coding_forward.38} parent=0 // pred_fallthru
    _
  // Predicated region
  $region10: #{image_coding_forward.38} parent=0 // pred_check
    _
  $region11: #{image_coding_forward.38} parent=0 // pred_check_branch
    %13 = sbr.rel (0) target = $region13
  $region12: #{image_coding_forward.38} parent=0 // pred_region
    _
  $region13: #{image_coding_forward.38} parent=0 // pred_fallthru
    _
  %v14 = vld [vmem:[%s0] sm:$0xff]
  %v15 = vld [vmem:[%s0 + $0x8] sm:$0xff]
  %v16 = vld [vmem:[%s1] sm:$0xff]
  %v17 = vld [vmem:[%s1 + $0x8] sm:$0xff]
  %v18 = vld [vmem:[%s1 + $0x10] sm:$0xff]
  %v19 = vld [vmem:[%s1 + $0x18] sm:$0xff]
  %v20 = vld [vmem:[%s1 + $0x20] sm:$0xff]
  %v21 = vld [vmem:[%s1 + $0x28] sm:$0xff]
  %v22 = vld [vmem:[%s1 + $0x30] sm:$0xff]
  %v23 = vld [vmem:[%s1 + $0x38] sm:$0xff]
  %v24 = vld [vmem:[%s1 + $0x40] sm:$0xff]
  %v25 = vld [vmem:[%s1 + $0x48] sm:$0xff]
  %v26 = vld [vmem:[%s1 + $0x50] sm:$0xff]
  %v27 = vld [vmem:[%s1 + $0x58] sm:$0xff]
  %v28 = vld [vmem:[%s1 + $0x60] sm:$0xff]
  %v29 = vld [vmem:[%s1 + $0x68] sm:$0xff]
  %v30 = vld [vmem:[%s1 + $0x70] sm:$0xff]
  %v31 = vld [vmem:[%s1 + $0x78] sm:$0xff]
  %v32 = vld [vmem:[%s1 + $0x80] sm:$0xff]
  %v33 = vld [vmem:[%s1 + $0x88] sm:$0xff]
  %v34 = vld [vmem:[%s1 + $0x90] sm:$0xff]
  %v35 = vld [vmem:[%s1 + $0x98] sm:$0xff]
  %v36 = vld [vmem:[%s1 + $0xa0] sm:$0xff]
  %v37 = vld [vmem:[%s1 + $0xa8] sm:$0xff]
  %v38 = vld [vmem:[%s1 + $0xb0] sm:$0xff]
  %v39 = vld [vmem:[%s1 + $0xb8] sm:$0xff]
  %v40 = vld [vmem:[%s1 + $0xc0] sm:$0xff]
  %v41 = vld [vmem:[%s2] sm:$0xff]
  %43 = vset.pattern.permute.xlu0 0
  %44 = vperm.xlu0 %43, %v41
  %v45 = vpop.permute.xlu0 %44
  %vm47 = vcmask 588800
  %v49 = vsel %vm47, %v15, 0
  %51 = vmatpush.msra.mxu0 %v31
  %52 = vmatpush.msra.mxu0 %v30
  %53 = vmatpush.msra.mxu0 %v29
  %54 = vmatpush.msra.mxu0 %v28
  %55 = vmatpush.msra.mxu0 %v27
  %56 = vmatpush.msra.mxu0 %v26
  %57 = vmatpush.msra.mxu0 %v25
  %58 = vmatpush.msra.mxu0 %v24
  %59 = vmatpush.msra.mxu0 %v23
  %60 = vmatpush.msra.mxu0 %v22
  %61 = vmatpush.msra.mxu0 %v21
  %62 = vmatpush.msra.mxu0 %v20
  %63 = vmatpush.msra.mxu0 %v19
  %64 = vmatpush.msra.mxu0 %v18
  %65 = vmatpush.msra.mxu0 %v17
  %66 = vmatpush.msra.mxu0 %v16
  %67 = vmatmul.f32.gmra.mxu0 %v14
  %v68 = vpop.f32.mrf.mxu0
  %v69 = vadd.f32 %v45, %v68
  %70 = vdwg.mxu0
  %71 = vmatpush.msra.mxu0 0.0
  %72 = vmatpush.msra.mxu0 0.0
  %73 = vmatpush.msra.mxu0 0.0
  %74 = vmatpush.msra.mxu0 0.0
  %75 = vmatpush.msra.mxu0 0.0
  %76 = vmatpush.msra.mxu0 0.0
  %77 = vmatpush.msra.mxu0 0.0
  %78 = vmatpush.msra.mxu0 %v40
  %79 = vmatpush.msra.mxu0 %v39
  %80 = vmatpush.msra.mxu0 %v38
  %81 = vmatpush.msra.mxu0 %v37
  %82 = vmatpush.msra.mxu0 %v36
  %83 = vmatpush.msra.mxu0 %v35
  %84 = vmatpush.msra.mxu0 %v34
  %85 = vmatpush.msra.mxu0 %v33
  %86 = vmatpush.msra.mxu0 %v32
  %87 = vmatmul.f32.gmra.mxu0 %v49
  %v88 = vpop.f32.mrf.mxu0
  %v89 = vadd.f32 %v69, %v88
  %90 = vdwg.mxu0
  %v91 = vmax.f32 %v89, 0.0
  %92 = vst [vmem:[%s3] sm:$0xff] %v91
  // Predicated region
  $region14: #{image_coding_forward.38} parent=0 // pred_check
    _
  $region15: #{image_coding_forward.38} parent=0 // pred_check_branch
    %94 = sbr.rel (0) target = $region17
  $region16: #{image_coding_forward.38} parent=0 // pred_region
    _
  $region17: #{image_coding_forward.38} parent=0 // pred_fallthru
    _
  // Predicated region
  $region18: #{image_coding_forward.38} parent=0 // pred_check
    _
  $region19: #{image_coding_forward.38} parent=0 // pred_check_branch
    %96 = sbr.rel (0) target = $region21
  $region20: #{image_coding_forward.38} parent=0 // pred_region
    _
  $region21: #{image_coding_forward.38} parent=0 // pred_fallthru
    _

// kernel: image_coding_forward.40
$region0: #{image_coding_forward.40}
  #allocation0 [shape = 'u32[]', space=smem, size = 0x4, offset = 0x4, fixed_abs, tag = 'smem constant byte address 0x4 - core index']
  #allocation1 [shape = 'u32[72,128]{1,0:T(1,128)}', space=vmem, size = 0x9000, scoped, tag = 'internal scratch']
  %s0 = inlined_call_operand.vmem [shape: f32[4,72], index: 0, kind: input, shape index: {}]
  %s1 = inlined_call_operand.vmem [shape: f32[72,128], index: 1, kind: input, shape index: {}]
  %s2 = inlined_call_operand.vmem [shape: f32[4,1], index: 2, kind: input, shape index: {}]
  %s3 = inlined_call_operand.vmem [shape: f32[4,128], index: 3, kind: output, shape index: {}]
  %s4 = sld [smem:[#allocation0]]
  $region22: #{image_coding_forward.40} parent=0
    _
  %s6 = ssub.s32 1, %s4
  %s7 = scalar_select 0, %s6, %s4
  // Predicated region
  $region2: #{image_coding_forward.40} parent=0 // pred_check
    _
  $region3: #{image_coding_forward.40} parent=0 // pred_check_branch
    %9 = sbr.rel (0) target = $region5
  $region4: #{image_coding_forward.40} parent=0 // pred_region
    _
  $region5: #{image_coding_forward.40} parent=0 // pred_fallthru
    _
  // Predicated region
  $region6: #{image_coding_forward.40} parent=0 // pred_check
    _
  $region7: #{image_coding_forward.40} parent=0 // pred_check_branch
    %11 = sbr.rel (0) target = $region9
  $region8: #{image_coding_forward.40} parent=0 // pred_region
    _
  $region9: #{image_coding_forward.40} parent=0 // pred_fallthru
    _
  // Predicated region
  $region10: #{image_coding_forward.40} parent=0 // pred_check
    _
  $region11: #{image_coding_forward.40} parent=0 // pred_check_branch
    %13 = sbr.rel (0) target = $region13
  $region12: #{image_coding_forward.40} parent=0 // pred_region
    _
  $region13: #{image_coding_forward.40} parent=0 // pred_fallthru
    _
  %v14 = vld [vmem:[%s0] sm:$0xf]
  %v15 = vld [vmem:[%s1] sm:$0xff]
  %v16 = vld [vmem:[%s1 + $0x8] sm:$0xff]
  %v17 = vld [vmem:[%s1 + $0x10] sm:$0xff]
  %v18 = vld [vmem:[%s1 + $0x18] sm:$0xff]
  %v19 = vld [vmem:[%s1 + $0x20] sm:$0xff]
  %v20 = vld [vmem:[%s1 + $0x28] sm:$0xff]
  %v21 = vld [vmem:[%s1 + $0x30] sm:$0xff]
  %v22 = vld [vmem:[%s1 + $0x38] sm:$0xff]
  %v23 = vld [vmem:[%s1 + $0x40] sm:$0xff]
  %v24 = vld [vmem:[%s2] sm:$0xf]
  %26 = vset.pattern.permute.xlu0 0
  %27 = vperm.xlu0 %26, %v24
  %v28 = vpop.permute.xlu0 %27
  %vm30 = vcmask 588800
  %v32 = vsel %vm30, %v14, 0
  %34 = vmatpush.msra.mxu0 0.0
  %35 = vmatpush.msra.mxu0 0.0
  %36 = vmatpush.msra.mxu0 0.0
  %37 = vmatpush.msra.mxu0 0.0
  %38 = vmatpush.msra.mxu0 0.0
  %39 = vmatpush.msra.mxu0 0.0
  %40 = vmatpush.msra.mxu0 0.0
  %41 = vmatpush.msra.mxu0 %v23
  %42 = vmatpush.msra.mxu0 %v22
  %43 = vmatpush.msra.mxu0 %v21
  %44 = vmatpush.msra.mxu0 %v20
  %45 = vmatpush.msra.mxu0 %v19
  %46 = vmatpush.msra.mxu0 %v18
  %47 = vmatpush.msra.mxu0 %v17
  %48 = vmatpush.msra.mxu0 %v16
  %49 = vmatpush.msra.mxu0 %v15
  %50 = vmatmul.f32.gmra.mxu0 %v32
  %v51 = vpop.f32.mrf.mxu0
  %v52 = vadd.f32 %v28, %v51
  %53 = vdwg.mxu0
  %54 = vst [vmem:[%s3] sm:$0xf] %v52
  // Predicated region
  $region14: #{image_coding_forward.40} parent=0 // pred_check
    _
  $region15: #{image_coding_forward.40} parent=0 // pred_check_branch
    %56 = sbr.rel (0) target = $region17
  $region16: #{image_coding_forward.40} parent=0 // pred_region
    _
  $region17: #{image_coding_forward.40} parent=0 // pred_fallthru
    _
  // Predicated region
  $region18: #{image_coding_forward.40} parent=0 // pred_check
    _
  $region19: #{image_coding_forward.40} parent=0 // pred_check_branch
    %58 = sbr.rel (0) target = $region21
  $region20: #{image_coding_forward.40} parent=0 // pred_region
    _
  $region21: #{image_coding_forward.40} parent=0 // pred_fallthru
    _

// kernel: image_coding_forward.41
$region0: #{image_coding_forward.41}
  #allocation0 [shape = 'u32[]', space=smem, size = 0x4, offset = 0x4, fixed_abs, tag = 'smem constant byte address 0x4 - core index']
  #allocation1 [shape = 'u32[72,128]{1,0:T(1,128)}', space=vmem, size = 0x9000, scoped, tag = 'internal scratch']
  %s0 = inlined_call_operand.vmem [shape: f32[8,36], index: 0, kind: input, shape index: {}]
  %s1 = inlined_call_operand.vmem [shape: f32[36,128], index: 1, kind: input, shape index: {}]
  %s2 = inlined_call_operand.vmem [shape: f32[8,1], index: 2, kind: input, shape index: {}]
  %s3 = inlined_call_operand.vmem [shape: f32[8,128], index: 3, kind: output, shape index: {}]
  %s4 = sld [smem:[#allocation0]]
  $region22: #{image_coding_forward.41} parent=0
    _
  %s6 = ssub.s32 1, %s4
  %s7 = scalar_select 0, %s6, %s4
  // Predicated region
  $region2: #{image_coding_forward.41} parent=0 // pred_check
    _
  $region3: #{image_coding_forward.41} parent=0 // pred_check_branch
    %9 = sbr.rel (0) target = $region5
  $region4: #{image_coding_forward.41} parent=0 // pred_region
    _
  $region5: #{image_coding_forward.41} parent=0 // pred_fallthru
    _
  // Predicated region
  $region6: #{image_coding_forward.41} parent=0 // pred_check
    _
  $region7: #{image_coding_forward.41} parent=0 // pred_check_branch
    %11 = sbr.rel (0) target = $region9
  $region8: #{image_coding_forward.41} parent=0 // pred_region
    _
  $region9: #{image_coding_forward.41} parent=0 // pred_fallthru
    _
  // Predicated region
  $region10: #{image_coding_forward.41} parent=0 // pred_check
    _
  $region11: #{image_coding_forward.41} parent=0 // pred_check_branch
    %13 = sbr.rel (0) target = $region13
  $region12: #{image_coding_forward.41} parent=0 // pred_region
    _
  $region13: #{image_coding_forward.41} parent=0 // pred_fallthru
    _
  %v14 = vld [vmem:[%s0] sm:$0xff]
  %v15 = vld [vmem:[%s1] sm:$0xff]
  %v16 = vld [vmem:[%s1 + $0x8] sm:$0xff]
  %v17 = vld [vmem:[%s1 + $0x10] sm:$0xff]
  %v18 = vld [vmem:[%s1 + $0x18] sm:$0xff]
  %v19 = vld [vmem:[%s1 + $0x20] sm:$0xf]
  %v20 = vld [vmem:[%s2] sm:$0xff]
  %22 = vset.pattern.permute.xlu0 0
  %23 = vperm.xlu0 %22, %v20
  %v24 = vpop.permute.xlu0 %23
  %vm26 = vcmask 293888
  %v28 = vsel %vm26, %v14, 0
  %vm30 = vcmask 1043456
  %v32 = vsel %vm30, %v19, 0
  %34 = vmatpush.msra.mxu0 0.0
  %35 = vmatpush.msra.mxu0 0.0
  %36 = vmatpush.msra.mxu0 0.0
  %37 = vmatpush.msra.mxu0 0.0
  %38 = vmatpush.msra.mxu0 0.0
  %39 = vmatpush.msra.mxu0 0.0
  %40 = vmatpush.msra.mxu0 0.0
  %41 = vmatpush.msra.mxu0 0.0
  %42 = vmatpush.msra.mxu0 0.0
  %43 = vmatpush.msra.mxu0 0.0
  %44 = vmatpush.msra.mxu0 0.0
  %45 = vmatpush.msra.mxu0 %v32
  %46 = vmatpush.msra.mxu0 %v18
  %47 = vmatpush.msra.mxu0 %v17
  %48 = vmatpush.msra.mxu0 %v16
  %49 = vmatpush.msra.mxu0 %v15
  %50 = vmatmul.f32.gmra.mxu0 %v28
  %v51 = vpop.f32.mrf.mxu0
  %v52 = vadd.f32 %v24, %v51
  %53 = vdwg.mxu0
  %v54 = vmax.f32 %v52, 0.0
  %55 = vst [vmem:[%s3] sm:$0xff] %v54
  // Predicated region
  $region14: #{image_coding_forward.41} parent=0 // pred_check
    _
  $region15: #{image_coding_forward.41} parent=0 // pred_check_branch
    %57 = sbr.rel (0) target = $region17
  $region16: #{image_coding_forward.41} parent=0 // pred_region
    _
  $region17: #{image_coding_forward.41} parent=0 // pred_fallthru
    _
  // Predicated region
  $region18: #{image_coding_forward.41} parent=0 // pred_check
    _
  $region19: #{image_coding_forward.41} parent=0 // pred_check_branch
    %59 = sbr.rel (0) target = $region21
  $region20: #{image_coding_forward.41} parent=0 // pred_region
    _
  $region21: #{image_coding_forward.41} parent=0 // pred_fallthru
    _

// kernel: image_coding_forward.45
$region0: #{image_coding_forward.45}
  #allocation0 [shape = 'u32[]', space=smem, size = 0x4, offset = 0x4, fixed_abs, tag = 'smem constant byte address 0x4 - core index']
  #allocation1 [shape = 'u32[72,128]{1,0:T(1,128)}', space=vmem, size = 0x9000, scoped, tag = 'internal scratch']
  %s0 = inlined_call_operand.vmem [shape: f32[32,36], index: 0, kind: input, shape index: {}]
  %s1 = inlined_call_operand.vmem [shape: f32[36,128], index: 1, kind: input, shape index: {}]
  %s2 = inlined_call_operand.vmem [shape: f32[32,1], index: 2, kind: input, shape index: {}]
  %s3 = inlined_call_operand.vmem [shape: f32[32,128], index: 3, kind: output, shape index: {}]
  %s4 = sld [smem:[#allocation0]]
  $region22: #{image_coding_forward.45} parent=0
    _
  %s6 = ssub.s32 1, %s4
  %s7 = scalar_select 0, %s6, %s4
  // Predicated region
  $region2: #{image_coding_forward.45} parent=0 // pred_check
    _
  $region3: #{image_coding_forward.45} parent=0 // pred_check_branch
    %9 = sbr.rel (0) target = $region5
  $region4: #{image_coding_forward.45} parent=0 // pred_region
    _
  $region5: #{image_coding_forward.45} parent=0 // pred_fallthru
    _
  // Predicated region
  $region6: #{image_coding_forward.45} parent=0 // pred_check
    _
  $region7: #{image_coding_forward.45} parent=0 // pred_check_branch
    %11 = sbr.rel (0) target = $region9
  $region8: #{image_coding_forward.45} parent=0 // pred_region
    _
  $region9: #{image_coding_forward.45} parent=0 // pred_fallthru
    _
  // Predicated region
  $region10: #{image_coding_forward.45} parent=0 // pred_check
    _
  $region11: #{image_coding_forward.45} parent=0 // pred_check_branch
    %13 = sbr.rel (0) target = $region13
  $region12: #{image_coding_forward.45} parent=0 // pred_region
    _
  $region13: #{image_coding_forward.45} parent=0 // pred_fallthru
    _
  %v14 = vld [vmem:[%s0] sm:$0xff]
  %v15 = vld [vmem:[%s0 + $0x8] sm:$0xff]
  %v16 = vld [vmem:[%s0 + $0x10] sm:$0xff]
  %v17 = vld [vmem:[%s0 + $0x18] sm:$0xff]
  %v18 = vld [vmem:[%s1] sm:$0xff]
  %v19 = vld [vmem:[%s1 + $0x8] sm:$0xff]
  %v20 = vld [vmem:[%s1 + $0x10] sm:$0xff]
  %v21 = vld [vmem:[%s1 + $0x18] sm:$0xff]
  %v22 = vld [vmem:[%s1 + $0x20] sm:$0xf]
  %v23 = vld [vmem:[%s2] sm:$0xff]
  %v24 = vld [vmem:[%s2 + $0x8] sm:$0xff]
  %v25 = vld [vmem:[%s2 + $0x10] sm:$0xff]
  %v26 = vld [vmem:[%s2 + $0x18] sm:$0xff]
  %28 = vset.pattern.permute.xlu0 0
  %29 = vperm.xlu0 %28, %v23
  %v30 = vpop.permute.xlu0 %29
  %33 = vset.pattern.permute.xlu0 0
  %34 = vperm.xlu0 %33, %v24
  %v35 = vpop.permute.xlu0 %34
  %38 = vset.pattern.permute.xlu0 0
  %39 = vperm.xlu0 %38, %v25
  %v40 = vpop.permute.xlu0 %39
  %43 = vset.pattern.permute.xlu0 0
  %44 = vperm.xlu0 %43, %v26
  %v45 = vpop.permute.xlu0 %44
  %vm47 = vcmask 293888
  %v49 = vsel %vm47, %v14, 0
  %v52 = vsel %vm47, %v15, 0
  %v55 = vsel %vm47, %v16, 0
  %v58 = vsel %vm47, %v17, 0
  %vm60 = vcmask 1043456
  %v62 = vsel %vm60, %v22, 0
  %64 = vmatpush.msra.mxu0 0.0
  %65 = vmatpush.msra.mxu0 0.0
  %66 = vmatpush.msra.mxu0 0.0
  %67 = vmatpush.msra.mxu0 0.0
  %68 = vmatpush.msra.mxu0 0.0
  %69 = vmatpush.msra.mxu0 0.0
  %70 = vmatpush.msra.mxu0 0.0
  %71 = vmatpush.msra.mxu0 0.0
  %72 = vmatpush.msra.mxu0 0.0
  %73 = vmatpush.msra.mxu0 0.0
  %74 = vmatpush.msra.mxu0 0.0
  %75 = vmatpush.msra.mxu0 %v62
  %76 = vmatpush.msra.mxu0 %v21
  %77 = vmatpush.msra.mxu0 %v20
  %78 = vmatpush.msra.mxu0 %v19
  %79 = vmatpush.msra.mxu0 %v18
  %80 = vmatmul.f32.gmra.mxu0 %v49
  %v81 = vpop.f32.mrf.mxu0
  %v82 = vadd.f32 %v30, %v81
  %83 = vmatmul.f32.gmra.mxu0 %v52
  %v84 = vpop.f32.mrf.mxu0
  %v85 = vadd.f32 %v35, %v84
  %86 = vmatmul.f32.gmra.mxu0 %v55
  %v87 = vpop.f32.mrf.mxu0
  %v88 = vadd.f32 %v40, %v87
  %89 = vmatmul.f32.gmra.mxu0 %v58
  %v90 = vpop.f32.mrf.mxu0
  %v91 = vadd.f32 %v45, %v90
  %92 = vdwg.mxu0
  %v93 = vmax.f32 %v82, 0.0
  %v94 = vmax.f32 %v85, 0.0
  %v95 = vmax.f32 %v88, 0.0
  %v96 = vmax.f32 %v91, 0.0
  %97 = vst [vmem:[%s3] sm:$0xff] %v93
  %98 = vst [vmem:[%s3 + $0x8] sm:$0xff] %v94
  %99 = vst [vmem:[%s3 + $0x10] sm:$0xff] %v95
  %100 = vst [vmem:[%s3 + $0x18] sm:$0xff] %v96
  // Predicated region
  $region14: #{image_coding_forward.45} parent=0 // pred_check
    _
  $region15: #{image_coding_forward.45} parent=0 // pred_check_branch
    %102 = sbr.rel (0) target = $region17
  $region16: #{image_coding_forward.45} parent=0 // pred_region
    _
  $region17: #{image_coding_forward.45} parent=0 // pred_fallthru
    _
  // Predicated region
  $region18: #{image_coding_forward.45} parent=0 // pred_check
    _
  $region19: #{image_coding_forward.45} parent=0 // pred_check_branch
    %104 = sbr.rel (0) target = $region21
  $region20: #{image_coding_forward.45} parent=0 // pred_region
    _
  $region21: #{image_coding_forward.45} parent=0 // pred_fallthru
    _

// kernel: image_coding_forward.43
$region0: #{image_coding_forward.43}
  #allocation0 [shape = 'u32[]', space=smem, size = 0x4, offset = 0x4, fixed_abs, tag = 'smem constant byte address 0x4 - core index']
  #allocation1 [shape = 'u32[72,128]{1,0:T(1,128)}', space=vmem, size = 0x9000, scoped, tag = 'internal scratch']
  %s0 = inlined_call_operand.vmem [shape: f32[4,200], index: 0, kind: input, shape index: {}]
  %s1 = inlined_call_operand.vmem [shape: f32[200,128], index: 1, kind: input, shape index: {}]
  %s2 = inlined_call_operand.vmem [shape: f32[4,1], index: 2, kind: input, shape index: {}]
  %s3 = inlined_call_operand.vmem [shape: f32[4,128], index: 3, kind: output, shape index: {}]
  %s4 = sld [smem:[#allocation0]]
  $region22: #{image_coding_forward.43} parent=0
    _
  %s6 = ssub.s32 1, %s4
  %s7 = scalar_select 0, %s6, %s4
  // Predicated region
  $region2: #{image_coding_forward.43} parent=0 // pred_check
    _
  $region3: #{image_coding_forward.43} parent=0 // pred_check_branch
    %9 = sbr.rel (0) target = $region5
  $region4: #{image_coding_forward.43} parent=0 // pred_region
    _
  $region5: #{image_coding_forward.43} parent=0 // pred_fallthru
    _
  // Predicated region
  $region6: #{image_coding_forward.43} parent=0 // pred_check
    _
  $region7: #{image_coding_forward.43} parent=0 // pred_check_branch
    %11 = sbr.rel (0) target = $region9
  $region8: #{image_coding_forward.43} parent=0 // pred_region
    _
  $region9: #{image_coding_forward.43} parent=0 // pred_fallthru
    _
  // Predicated region
  $region10: #{image_coding_forward.43} parent=0 // pred_check
    _
  $region11: #{image_coding_forward.43} parent=0 // pred_check_branch
    %13 = sbr.rel (0) target = $region13
  $region12: #{image_coding_forward.43} parent=0 // pred_region
    _
  $region13: #{image_coding_forward.43} parent=0 // pred_fallthru
    _
  %v14 = vld [vmem:[%s0] sm:$0xff]
  %v15 = vld [vmem:[%s1] sm:$0xff]
  %v16 = vld [vmem:[%s1 + $0x8] sm:$0xff]
  %v17 = vld [vmem:[%s1 + $0x10] sm:$0xff]
  %v18 = vld [vmem:[%s1 + $0x18] sm:$0xff]
  %v19 = vld [vmem:[%s1 + $0x20] sm:$0xff]
  %v20 = vld [vmem:[%s1 + $0x28] sm:$0xff]
  %v21 = vld [vmem:[%s1 + $0x30] sm:$0xff]
  %v22 = vld [vmem:[%s1 + $0x38] sm:$0xff]
  %v23 = vld [vmem:[%s1 + $0x40] sm:$0xff]
  %v24 = vld [vmem:[%s1 + $0x48] sm:$0xff]
  %v25 = vld [vmem:[%s1 + $0x50] sm:$0xff]
  %v26 = vld [vmem:[%s1 + $0x58] sm:$0xff]
  %v27 = vld [vmem:[%s1 + $0x60] sm:$0xff]
  %v28 = vld [vmem:[%s1 + $0x68] sm:$0xff]
  %v29 = vld [vmem:[%s1 + $0x70] sm:$0xff]
  %v30 = vld [vmem:[%s1 + $0x78] sm:$0xff]
  %v31 = vld [vmem:[%s1 + $0x80] sm:$0xff]
  %v32 = vld [vmem:[%s1 + $0x88] sm:$0xff]
  %v33 = vld [vmem:[%s1 + $0x90] sm:$0xff]
  %v34 = vld [vmem:[%s1 + $0x98] sm:$0xff]
  %v35 = vld [vmem:[%s1 + $0xa0] sm:$0xff]
  %v36 = vld [vmem:[%s1 + $0xa8] sm:$0xff]
  %v37 = vld [vmem:[%s1 + $0xb0] sm:$0xff]
  %v38 = vld [vmem:[%s1 + $0xb8] sm:$0xff]
  %v39 = vld [vmem:[%s1 + $0xc0] sm:$0xff]
  %v40 = vld [vmem:[%s2] sm:$0xf]
  %42 = vset.pattern.permute.xlu0 0
  %43 = vperm.xlu0 %42, %v40
  %v44 = vpop.permute.xlu0 %43
  %47 = vst [vmem:[#allocation1] ss:$2 sm:$0xff] %v14
  %v48 = vld.sshfl [vmem:[#allocation1] sm:$0xff pattern:$0x75316420]
  %v49 = vld.sshfl [vmem:[#allocation1 + $0x8] sm:$0xff pattern:$0x75316420]
  %vm51 = vcmask 588800
  %v52 = vsel %vm51, %v49, 0
  %54 = vmatpush.msra.mxu0 %v30
  %55 = vmatpush.msra.mxu0 %v29
  %56 = vmatpush.msra.mxu0 %v28
  %57 = vmatpush.msra.mxu0 %v27
  %58 = vmatpush.msra.mxu0 %v26
  %59 = vmatpush.msra.mxu0 %v25
  %60 = vmatpush.msra.mxu0 %v24
  %61 = vmatpush.msra.mxu0 %v23
  %62 = vmatpush.msra.mxu0 %v22
  %63 = vmatpush.msra.mxu0 %v21
  %64 = vmatpush.msra.mxu0 %v20
  %65 = vmatpush.msra.mxu0 %v19
  %66 = vmatpush.msra.mxu0 %v18
  %67 = vmatpush.msra.mxu0 %v17
  %68 = vmatpush.msra.mxu0 %v16
  %69 = vmatpush.msra.mxu0 %v15
  %70 = vmatmul.f32.gmra.mxu0 %v48
  %v71 = vpop.f32.mrf.mxu0
  %v72 = vadd.f32 %v44, %v71
  %73 = vdwg.mxu0
  %74 = vmatpush.msra.mxu0 0.0
  %75 = vmatpush.msra.mxu0 0.0
  %76 = vmatpush.msra.mxu0 0.0
  %77 = vmatpush.msra.mxu0 0.0
  %78 = vmatpush.msra.mxu0 0.0
  %79 = vmatpush.msra.mxu0 0.0
  %80 = vmatpush.msra.mxu0 0.0
  %81 = vmatpush.msra.mxu0 %v39
  %82 = vmatpush.msra.mxu0 %v38
  %83 = vmatpush.msra.mxu0 %v37
  %84 = vmatpush.msra.mxu0 %v36
  %85 = vmatpush.msra.mxu0 %v35
  %86 = vmatpush.msra.mxu0 %v34
  %87 = vmatpush.msra.mxu0 %v33
  %88 = vmatpush.msra.mxu0 %v32
  %89 = vmatpush.msra.mxu0 %v31
  %90 = vmatmul.f32.gmra.mxu0 %v52
  %v91 = vpop.f32.mrf.mxu0
  %v92 = vadd.f32 %v72, %v91
  %93 = vdwg.mxu0
  %94 = vst [vmem:[%s3] sm:$0xf] %v92
  // Predicated region
  $region14: #{image_coding_forward.43} parent=0 // pred_check
    _
  $region15: #{image_coding_forward.43} parent=0 // pred_check_branch
    %96 = sbr.rel (0) target = $region17
  $region16: #{image_coding_forward.43} parent=0 // pred_region
    _
  $region17: #{image_coding_forward.43} parent=0 // pred_fallthru
    _
  // Predicated region
  $region18: #{image_coding_forward.43} parent=0 // pred_check
    _
  $region19: #{image_coding_forward.43} parent=0 // pred_check_branch
    %98 = sbr.rel (0) target = $region21
  $region20: #{image_coding_forward.43} parent=0 // pred_region
    _
  $region21: #{image_coding_forward.43} parent=0 // pred_fallthru
    _

// kernel: image_coding_forward.44
$region0: #{image_coding_forward.44}
  #allocation0 [shape = 'u32[]', space=smem, size = 0x4, offset = 0x4, fixed_abs, tag = 'smem constant byte address 0x4 - core index']
  #allocation1 [shape = 'u32[72,128]{1,0:T(1,128)}', space=vmem, size = 0x9000, scoped, tag = 'internal scratch']
  %s0 = inlined_call_operand.vmem [shape: f32[8,128], index: 0, kind: input, shape index: {}]
  %s1 = inlined_call_operand.vmem [shape: f32[8,128], index: 1, kind: input, shape index: {}]
  %s2 = inlined_call_operand.vmem [shape: f32[8,128], index: 2, kind: input, shape index: {}]
  %s3 = inlined_call_operand.vmem [shape: f32[8,128], index: 3, kind: output, shape index: {}]
  %s4 = sld [smem:[#allocation0]]
  $region22: #{image_coding_forward.44} parent=0
    _
  %s6 = ssub.s32 1, %s4
  %s7 = scalar_select 0, %s6, %s4
  // Predicated region
  $region2: #{image_coding_forward.44} parent=0 // pred_check
    _
  $region3: #{image_coding_forward.44} parent=0 // pred_check_branch
    %9 = sbr.rel (0) target = $region5
  $region4: #{image_coding_forward.44} parent=0 // pred_region
    _
  $region5: #{image_coding_forward.44} parent=0 // pred_fallthru
    _
  // Predicated region
  $region6: #{image_coding_forward.44} parent=0 // pred_check
    _
  $region7: #{image_coding_forward.44} parent=0 // pred_check_branch
    %11 = sbr.rel (0) target = $region9
  $region8: #{image_coding_forward.44} parent=0 // pred_region
    _
  $region9: #{image_coding_forward.44} parent=0 // pred_fallthru
    _
  // Predicated region
  $region10: #{image_coding_forward.44} parent=0 // pred_check
    _
  $region11: #{image_coding_forward.44} parent=0 // pred_check_branch
    %13 = sbr.rel (0) target = $region13
  $region12: #{image_coding_forward.44} parent=0 // pred_region
    _
  $region13: #{image_coding_forward.44} parent=0 // pred_fallthru
    _
  %v14 = vld [vmem:[%s0] sm:$0xff]
  %v15 = vld [vmem:[%s1] sm:$0xff]
  %v16 = vld [vmem:[%s2] sm:$0xff]
  %v17 = vand.u32 2147483647, %v16
  %v18 = vmax.f32 %v17, 1e-06
  %v19 = vrcp.pop %v18
  %v20 = vsub.f32 %v14, %v15
  %v21 = vmul.f32 %v20, %v19
  %v22 = vmul.f32 %v19, 0.5
  %v23 = vadd.f32 %v21, %v22
  %v24 = vmul.f32 %v23, 0.044715
  %v25 = vmul.f32 %v24, %v23
  %v26 = vmul.f32 %v25, %v23
  %v27 = vadd.f32 %v23, %v26
  %v28 = vmul.f32 %v27, 0.7978846
  %v29 = vtanh.pop %v28
  %v30 = vadd.f32 %v29, 1.0
  %v31 = vmul.f32 %v30, 0.5
  %v32 = vsub.f32 %v21, %v22
  %v33 = vmul.f32 %v32, 0.044715
  %v34 = vmul.f32 %v33, %v32
  %v35 = vmul.f32 %v34, %v32
  %v36 = vadd.f32 %v32, %v35
  %v37 = vmul.f32 %v36, 0.7978846
  %v38 = vtanh.pop %v37
  %v39 = vadd.f32 %v38, 1.0
  %v40 = vmul.f32 %v39, 0.5
  %v41 = vsub.f32 %v31, %v40
  %v42 = vmax.f32 %v41, 1e-09
  %43 = vst [vmem:[%s3] sm:$0xff] %v42
  // Predicated region
  $region14: #{image_coding_forward.44} parent=0 // pred_check
    _
  $region15: #{image_coding_forward.44} parent=0 // pred_check_branch
    %45 = sbr.rel (0) target = $region17
  $region16: #{image_coding_forward.44} parent=0 // pred_region
    _
  $region17: #{image_coding_forward.44} parent=0 // pred_fallthru
    _
  // Predicated region
  $region18: #{image_coding_forward.44} parent=0 // pred_check
    _
  $region19: #{image_coding_forward.44} parent=0 // pred_check_branch
    %47 = sbr.rel (0) target = $region21
  $region20: #{image_coding_forward.44} parent=0 // pred_region
    _
  $region21: #{image_coding_forward.44} parent=0 // pred_fallthru
    _

// kernel: image_coding_forward.61
$region0: #{image_coding_forward.61}
  #allocation0 [shape = 'u32[]', space=smem, size = 0x4, offset = 0x4, fixed_abs, tag = 'smem constant byte address 0x4 - core index']
  #allocation1 [shape = 'u32[72,128]{1,0:T(1,128)}', space=vmem, size = 0x9000, scoped, tag = 'internal scratch']
  %s0 = inlined_call_operand.vmem [shape: f32[8,128], index: 0, kind: input, shape index: {}]
  %s1 = inlined_call_operand.hbm [shape: f32[1,1], index: 1, kind: output, shape index: {}]
  %s2 = sld [smem:[#allocation0]]
  $region18: #{image_coding_forward.61} parent=0
    _
  %s4 = ssub.s32 1, %s2
  %s5 = scalar_select 0, %s4, %s2
  $region1: #{image_coding_forward.61} parent=0
    #allocation2 [shape = 'u8[512]{0}', space=vmem, size = 0x400, scoped, tag = 'output window, operand 0, single buffered']
    #allocation3 [shape = 's32[1]{0}', space=sflag, size = 0x4, scoped, tag = 'scoped memory for image_coding_forward.61']
    %6 = vsyncpa [#allocation3], 0
    // Predicated region
    $region2: #{image_coding_forward.61} parent=1 // pred_check
      _
    $region3: #{image_coding_forward.61} parent=1 // pred_check_branch
      %8 = sbr.rel (0) target = $region5
    $region4: #{image_coding_forward.61} parent=1 // pred_region
      _
    $region5: #{image_coding_forward.61} parent=1 // pred_fallthru
      _
    %p9 = scmp.eq.s32.totalorder 0, 0
    // Predicated region
    $region6: #{image_coding_forward.61} parent=1 // pred_check
      %p10 = pneg %p9
    $region7: #{image_coding_forward.61} parent=1 // pred_check_branch
      %12 = sbr.rel (%p10) target = $region9
    $region8: #{image_coding_forward.61} parent=1 // pred_region
      %vm13 = vcmask 0
      %14 = vst.msk [vmem:[#allocation2] sm:$0x1] %vm13, -inf
    $region9: #{image_coding_forward.61} parent=1 // pred_fallthru
      _
    %v15 = vld [vmem:[%s0] sm:$0xff]
    %v16 = vlog2.pop %v15
    %v17 = vmul.f32 %v16, 0.6931472
    %v18 = vsub.f32 0.0, %v17
    %v19 = vmul.f32 %v18, 1.442695
    %v20 = vmax.f32 %v19, 0.0
    %21 = vmax.xlane.f32.xlu0 %v20
    %v22 = vpop.xlane.xlu0 %21
    %v23 = vrot.slane %v22, 4
    %v24 = vmax.f32 %v22, %v23
    %v25 = vrot.slane %v24, 2
    %v26 = vmax.f32 %v24, %v25
    %v27 = vrot.slane %v26, 1
    %v28 = vmax.f32 %v26, %v27
    %v29 = vld [vmem:[#allocation2] sm:$0x1]
    %v30 = vmax.f32 %v29, %v28
    %vm31 = vcmask 0
    %32 = vst.msk [vmem:[#allocation2] sm:$0x1] %vm31, %v30
    // Predicated region
    $region10: #{image_coding_forward.61} parent=1 // pred_check
      _
    $region11: #{image_coding_forward.61} parent=1 // pred_check_branch
      %34 = sbr.rel (0) target = $region13
    $region12: #{image_coding_forward.61} parent=1 // pred_region
      %36 = vsyncadd [#allocation3], 0
      %s38 = sshll.u32 [#allocation2], 4
      %s39 = int_to_ptr.vmem [resolvable:$true] %s38
      %s40 = sshll.u32 %s1, 4
      %s41 = int_to_ptr.hbm [resolvable:$true] %s40
      %43 = dma.vmem_to_hbm [thread:$0]  %s39, 16, %s41, [#allocation3]
    $region13: #{image_coding_forward.61} parent=1 // pred_fallthru
      _
    // Predicated region
    $region14: #{image_coding_forward.61} parent=1 // pred_check
      _
    $region15: #{image_coding_forward.61} parent=1 // pred_check_branch
      %45 = sbr.rel (0) target = $region17
    $region16: #{image_coding_forward.61} parent=1 // pred_region
      %47 = dma.done [#allocation3], 16
    $region17: #{image_coding_forward.61} parent=1 // pred_fallthru
      _
    %48 = vsyncpa [#allocation3], 1

// kernel: image_coding_forward.46
$region0: #{image_coding_forward.46}
  #allocation0 [shape = 'u32[]', space=smem, size = 0x4, offset = 0x4, fixed_abs, tag = 'smem constant byte address 0x4 - core index']
  #allocation1 [shape = 'u32[72,128]{1,0:T(1,128)}', space=vmem, size = 0x9000, scoped, tag = 'internal scratch']
  %s0 = inlined_call_operand.vmem [shape: f32[32,72], index: 0, kind: input, shape index: {}]
  %s1 = inlined_call_operand.vmem [shape: f32[72,128], index: 1, kind: input, shape index: {}]
  %s2 = inlined_call_operand.vmem [shape: f32[32,1], index: 2, kind: input, shape index: {}]
  %s3 = inlined_call_operand.vmem [shape: f32[32,128], index: 3, kind: output, shape index: {}]
  %s4 = sld [smem:[#allocation0]]
  $region22: #{image_coding_forward.46} parent=0
    _
  %s6 = ssub.s32 1, %s4
  %s7 = scalar_select 0, %s6, %s4
  // Predicated region
  $region2: #{image_coding_forward.46} parent=0 // pred_check
    _
  $region3: #{image_coding_forward.46} parent=0 // pred_check_branch
    %9 = sbr.rel (0) target = $region5
  $region4: #{image_coding_forward.46} parent=0 // pred_region
    _
  $region5: #{image_coding_forward.46} parent=0 // pred_fallthru
    _
  // Predicated region
  $region6: #{image_coding_forward.46} parent=0 // pred_check
    _
  $region7: #{image_coding_forward.46} parent=0 // pred_check_branch
    %11 = sbr.rel (0) target = $region9
  $region8: #{image_coding_forward.46} parent=0 // pred_region
    _
  $region9: #{image_coding_forward.46} parent=0 // pred_fallthru
    _
  // Predicated region
  $region10: #{image_coding_forward.46} parent=0 // pred_check
    _
  $region11: #{image_coding_forward.46} parent=0 // pred_check_branch
    %13 = sbr.rel (0) target = $region13
  $region12: #{image_coding_forward.46} parent=0 // pred_region
    _
  $region13: #{image_coding_forward.46} parent=0 // pred_fallthru
    _
  %v14 = vld [vmem:[%s0] sm:$0xff]
  %v15 = vld [vmem:[%s0 + $0x8] sm:$0xff]
  %v16 = vld [vmem:[%s0 + $0x10] sm:$0xff]
  %v17 = vld [vmem:[%s0 + $0x18] sm:$0xff]
  %v18 = vld [vmem:[%s1] sm:$0xff]
  %v19 = vld [vmem:[%s1 + $0x8] sm:$0xff]
  %v20 = vld [vmem:[%s1 + $0x10] sm:$0xff]
  %v21 = vld [vmem:[%s1 + $0x18] sm:$0xff]
  %v22 = vld [vmem:[%s1 + $0x20] sm:$0xff]
  %v23 = vld [vmem:[%s1 + $0x28] sm:$0xff]
  %v24 = vld [vmem:[%s1 + $0x30] sm:$0xff]
  %v25 = vld [vmem:[%s1 + $0x38] sm:$0xff]
  %v26 = vld [vmem:[%s1 + $0x40] sm:$0xff]
  %v27 = vld [vmem:[%s2] sm:$0xff]
  %v28 = vld [vmem:[%s2 + $0x8] sm:$0xff]
  %v29 = vld [vmem:[%s2 + $0x10] sm:$0xff]
  %v30 = vld [vmem:[%s2 + $0x18] sm:$0xff]
  %32 = vset.pattern.permute.xlu0 0
  %33 = vperm.xlu0 %32, %v27
  %v34 = vpop.permute.xlu0 %33
  %37 = vset.pattern.permute.xlu0 0
  %38 = vperm.xlu0 %37, %v28
  %v39 = vpop.permute.xlu0 %38
  %42 = vset.pattern.permute.xlu0 0
  %43 = vperm.xlu0 %42, %v29
  %v44 = vpop.permute.xlu0 %43
  %47 = vset.pattern.permute.xlu0 0
  %48 = vperm.xlu0 %47, %v30
  %v49 = vpop.permute.xlu0 %48
  %vm51 = vcmask 588800
  %v53 = vsel %vm51, %v14, 0
  %v56 = vsel %vm51, %v15, 0
  %v59 = vsel %vm51, %v16, 0
  %v62 = vsel %vm51, %v17, 0
  %64 = vmatpush.msra.mxu0 0.0
  %65 = vmatpush.msra.mxu0 0.0
  %66 = vmatpush.msra.mxu0 0.0
  %67 = vmatpush.msra.mxu0 0.0
  %68 = vmatpush.msra.mxu0 0.0
  %69 = vmatpush.msra.mxu0 0.0
  %70 = vmatpush.msra.mxu0 0.0
  %71 = vmatpush.msra.mxu0 %v26
  %72 = vmatpush.msra.mxu0 %v25
  %73 = vmatpush.msra.mxu0 %v24
  %74 = vmatpush.msra.mxu0 %v23
  %75 = vmatpush.msra.mxu0 %v22
  %76 = vmatpush.msra.mxu0 %v21
  %77 = vmatpush.msra.mxu0 %v20
  %78 = vmatpush.msra.mxu0 %v19
  %79 = vmatpush.msra.mxu0 %v18
  %80 = vmatmul.f32.gmra.mxu0 %v53
  %v81 = vpop.f32.mrf.mxu0
  %v82 = vadd.f32 %v34, %v81
  %83 = vmatmul.f32.gmra.mxu0 %v56
  %v84 = vpop.f32.mrf.mxu0
  %v85 = vadd.f32 %v39, %v84
  %86 = vmatmul.f32.gmra.mxu0 %v59
  %v87 = vpop.f32.mrf.mxu0
  %v88 = vadd.f32 %v44, %v87
  %89 = vmatmul.f32.gmra.mxu0 %v62
  %v90 = vpop.f32.mrf.mxu0
  %v91 = vadd.f32 %v49, %v90
  %92 = vdwg.mxu0
  %v93 = vmax.f32 %v82, 0.0
  %v94 = vmax.f32 %v85, 0.0
  %v95 = vmax.f32 %v88, 0.0
  %v96 = vmax.f32 %v91, 0.0
  %97 = vst [vmem:[%s3] sm:$0xff] %v93
  %98 = vst [vmem:[%s3 + $0x8] sm:$0xff] %v94
  %99 = vst [vmem:[%s3 + $0x10] sm:$0xff] %v95
  %100 = vst [vmem:[%s3 + $0x18] sm:$0xff] %v96
  // Predicated region
  $region14: #{image_coding_forward.46} parent=0 // pred_check
    _
  $region15: #{image_coding_forward.46} parent=0 // pred_check_branch
    %102 = sbr.rel (0) target = $region17
  $region16: #{image_coding_forward.46} parent=0 // pred_region
    _
  $region17: #{image_coding_forward.46} parent=0 // pred_fallthru
    _
  // Predicated region
  $region18: #{image_coding_forward.46} parent=0 // pred_check
    _
  $region19: #{image_coding_forward.46} parent=0 // pred_check_branch
    %104 = sbr.rel (0) target = $region21
  $region20: #{image_coding_forward.46} parent=0 // pred_region
    _
  $region21: #{image_coding_forward.46} parent=0 // pred_fallthru
    _

// kernel: image_coding_forward.47
$region0: #{image_coding_forward.47}
  #allocation0 [shape = 'u32[]', space=smem, size = 0x4, offset = 0x4, fixed_abs, tag = 'smem constant byte address 0x4 - core index']
  #allocation1 [shape = 'u32[72,128]{1,0:T(1,128)}', space=vmem, size = 0x9000, scoped, tag = 'internal scratch']
  %s0 = inlined_call_operand.vmem [shape: f32[8,72], index: 0, kind: input, shape index: {}]
  %s1 = inlined_call_operand.vmem [shape: f32[72,128], index: 1, kind: input, shape index: {}]
  %s2 = inlined_call_operand.vmem [shape: f32[8,1], index: 2, kind: input, shape index: {}]
  %s3 = inlined_call_operand.vmem [shape: f32[8,128], index: 3, kind: output, shape index: {}]
  %s4 = sld [smem:[#allocation0]]
  $region22: #{image_coding_forward.47} parent=0
    _
  %s6 = ssub.s32 1, %s4
  %s7 = scalar_select 0, %s6, %s4
  // Predicated region
  $region2: #{image_coding_forward.47} parent=0 // pred_check
    _
  $region3: #{image_coding_forward.47} parent=0 // pred_check_branch
    %9 = sbr.rel (0) target = $region5
  $region4: #{image_coding_forward.47} parent=0 // pred_region
    _
  $region5: #{image_coding_forward.47} parent=0 // pred_fallthru
    _
  // Predicated region
  $region6: #{image_coding_forward.47} parent=0 // pred_check
    _
  $region7: #{image_coding_forward.47} parent=0 // pred_check_branch
    %11 = sbr.rel (0) target = $region9
  $region8: #{image_coding_forward.47} parent=0 // pred_region
    _
  $region9: #{image_coding_forward.47} parent=0 // pred_fallthru
    _
  // Predicated region
  $region10: #{image_coding_forward.47} parent=0 // pred_check
    _
  $region11: #{image_coding_forward.47} parent=0 // pred_check_branch
    %13 = sbr.rel (0) target = $region13
  $region12: #{image_coding_forward.47} parent=0 // pred_region
    _
  $region13: #{image_coding_forward.47} parent=0 // pred_fallthru
    _
  %v14 = vld [vmem:[%s0] sm:$0xff]
  %v15 = vld [vmem:[%s1] sm:$0xff]
  %v16 = vld [vmem:[%s1 + $0x8] sm:$0xff]
  %v17 = vld [vmem:[%s1 + $0x10] sm:$0xff]
  %v18 = vld [vmem:[%s1 + $0x18] sm:$0xff]
  %v19 = vld [vmem:[%s1 + $0x20] sm:$0xff]
  %v20 = vld [vmem:[%s1 + $0x28] sm:$0xff]
  %v21 = vld [vmem:[%s1 + $0x30] sm:$0xff]
  %v22 = vld [vmem:[%s1 + $0x38] sm:$0xff]
  %v23 = vld [vmem:[%s1 + $0x40] sm:$0xff]
  %v24 = vld [vmem:[%s2] sm:$0xff]
  %26 = vset.pattern.permute.xlu0 0
  %27 = vperm.xlu0 %26, %v24
  %v28 = vpop.permute.xlu0 %27
  %vm30 = vcmask 588800
  %v32 = vsel %vm30, %v14, 0
  %34 = vmatpush.msra.mxu0 0.0
  %35 = vmatpush.msra.mxu0 0.0
  %36 = vmatpush.msra.mxu0 0.0
  %37 = vmatpush.msra.mxu0 0.0
  %38 = vmatpush.msra.mxu0 0.0
  %39 = vmatpush.msra.mxu0 0.0
  %40 = vmatpush.msra.mxu0 0.0
  %41 = vmatpush.msra.mxu0 %v23
  %42 = vmatpush.msra.mxu0 %v22
  %43 = vmatpush.msra.mxu0 %v21
  %44 = vmatpush.msra.mxu0 %v20
  %45 = vmatpush.msra.mxu0 %v19
  %46 = vmatpush.msra.mxu0 %v18
  %47 = vmatpush.msra.mxu0 %v17
  %48 = vmatpush.msra.mxu0 %v16
  %49 = vmatpush.msra.mxu0 %v15
  %50 = vmatmul.f32.gmra.mxu0 %v32
  %v51 = vpop.f32.mrf.mxu0
  %v52 = vadd.f32 %v28, %v51
  %53 = vdwg.mxu0
  %v54 = vmax.f32 %v52, 0.0
  %55 = vst [vmem:[%s3] sm:$0xff] %v54
  // Predicated region
  $region14: #{image_coding_forward.47} parent=0 // pred_check
    _
  $region15: #{image_coding_forward.47} parent=0 // pred_check_branch
    %57 = sbr.rel (0) target = $region17
  $region16: #{image_coding_forward.47} parent=0 // pred_region
    _
  $region17: #{image_coding_forward.47} parent=0 // pred_fallthru
    _
  // Predicated region
  $region18: #{image_coding_forward.47} parent=0 // pred_check
    _
  $region19: #{image_coding_forward.47} parent=0 // pred_check_branch
    %59 = sbr.rel (0) target = $region21
  $region20: #{image_coding_forward.47} parent=0 // pred_region
    _
  $region21: #{image_coding_forward.47} parent=0 // pred_fallthru
    _

// kernel: image_coding_forward.62
$region0: #{image_coding_forward.62}
  #allocation0 [shape = 'u32[]', space=smem, size = 0x4, offset = 0x4, fixed_abs, tag = 'smem constant byte address 0x4 - core index']
  #allocation1 [shape = 'u32[72,128]{1,0:T(1,128)}', space=vmem, size = 0x9000, scoped, tag = 'internal scratch']
  #allocation2 [shape = 'f32[1,1]{1,0:T(1,128)S(1)}', space=vmem, size = 0x200, scoped, tag = 'scoped memory for image_coding_forward.62']
  %s0 = inlined_call_operand.vmem [shape: f32[8,128], index: 0, kind: input, shape index: {}]
  %s1 = inlined_call_operand.vmem [shape: f32[8,128], index: 1, kind: input, shape index: {}]
  %s2 = inlined_call_operand.<no memory space> [shape: f32[1,1], index: 2, kind: input, shape index: {}]
  %s3 = inlined_call_operand.vmem [shape: f32[8,128], index: 3, kind: output, shape index: {}]
  %s4 = sld [smem:[#allocation0]]
  $region22: #{image_coding_forward.62} parent=0
    _
  %s6 = ssub.s32 1, %s4
  %s7 = scalar_select 0, %s6, %s4
  %v8 = vstv %s2
  %9 = vst [vmem:[#allocation2] sm:$0x1] %v8
  // Predicated region
  $region2: #{image_coding_forward.62} parent=0 // pred_check
    _
  $region3: #{image_coding_forward.62} parent=0 // pred_check_branch
    %11 = sbr.rel (0) target = $region5
  $region4: #{image_coding_forward.62} parent=0 // pred_region
    _
  $region5: #{image_coding_forward.62} parent=0 // pred_fallthru
    _
  // Predicated region
  $region6: #{image_coding_forward.62} parent=0 // pred_check
    _
  $region7: #{image_coding_forward.62} parent=0 // pred_check_branch
    %13 = sbr.rel (0) target = $region9
  $region8: #{image_coding_forward.62} parent=0 // pred_region
    _
  $region9: #{image_coding_forward.62} parent=0 // pred_fallthru
    _
  // Predicated region
  $region10: #{image_coding_forward.62} parent=0 // pred_check
    _
  $region11: #{image_coding_forward.62} parent=0 // pred_check_branch
    %15 = sbr.rel (0) target = $region13
  $region12: #{image_coding_forward.62} parent=0 // pred_region
    _
  $region13: #{image_coding_forward.62} parent=0 // pred_fallthru
    _
  %v16 = vld [vmem:[%s1] sm:$0xff]
  %v17 = vlog2.pop %v16
  %v18 = vmul.f32 %v17, 0.6931472
  %v19 = vsub.f32 0.0, %v18
  %v20 = vmul.f32 %v19, 1.442695
  %v21 = vmax.f32 %v20, 0.0
  %v22 = vld [vmem:[#allocation2] sm:$0x1]
  %v24 = vperm.slane %v22, 0
  %25 = vset.pattern.permute.xlu0 0
  %26 = vperm.xlu0 %25, %v24
  %v27 = vpop.permute.xlu0 %26
  %vm29 = vcmp.ge.f32.partialorder %v21, %v27
  %v30 = vsel %vm29, 1, 0
  %v31 = vcvt.s32.f32 %v30
  %v32 = vld [vmem:[%s0] sm:$0xff]
  %v33 = vmul.f32 %v32, %v31
  %34 = vst [vmem:[%s3] sm:$0xff] %v33
  // Predicated region
  $region14: #{image_coding_forward.62} parent=0 // pred_check
    _
  $region15: #{image_coding_forward.62} parent=0 // pred_check_branch
    %36 = sbr.rel (0) target = $region17
  $region16: #{image_coding_forward.62} parent=0 // pred_region
    _
  $region17: #{image_coding_forward.62} parent=0 // pred_fallthru
    _
  // Predicated region
  $region18: #{image_coding_forward.62} parent=0 // pred_check
    _
  $region19: #{image_coding_forward.62} parent=0 // pred_check_branch
    %38 = sbr.rel (0) target = $region21
  $region20: #{image_coding_forward.62} parent=0 // pred_region
    _
  $region21: #{image_coding_forward.62} parent=0 // pred_fallthru
    _

// kernel: image_coding_forward.65
$region0: #{image_coding_forward.65}
  #allocation0 [shape = 'u32[]', space=smem, size = 0x4, offset = 0x4, fixed_abs, tag = 'smem constant byte address 0x4 - core index']
  #allocation1 [shape = 'u32[72,128]{1,0:T(1,128)}', space=vmem, size = 0x9000, scoped, tag = 'internal scratch']
  %s0 = inlined_call_operand.vmem [shape: f32[1,16,4], index: 0, kind: input, shape index: {}, may-alias: {0,2}]
  %s1 = inlined_call_operand.vmem [shape: f32[1,16,4], index: 1, kind: input, shape index: {}, may-alias: {1,3}]
  %s2 = inlined_call_operand.vmem [shape: f32[1,16,4], index: 2, kind: input, shape index: {}, may-alias: {0,2}]
  %s3 = inlined_call_operand.vmem [shape: f32[1,16,4], index: 3, kind: input, shape index: {}, may-alias: {1,3}]
  %s4 = inlined_call_operand.vmem [shape: f32[1,16,1], index: 4, kind: input, shape index: {}]
  %s5 = inlined_call_operand.vmem [shape: f32[4,4], index: 5, kind: input, shape index: {}]
  %s6 = inlined_call_operand.vmem [shape: f32[4,4], index: 6, kind: input, shape index: {}]
  %s7 = inlined_call_operand.vmem [shape: f32[4,4], index: 7, kind: input, shape index: {}]
  %s8 = inlined_call_operand.vmem [shape: f32[4,4], index: 8, kind: input, shape index: {}]
  %s9 = inlined_call_operand.vmem [shape: f32[1,1,4], index: 9, kind: input, shape index: {}]
  %s10 = inlined_call_operand.vmem [shape: f32[1,1,4], index: 10, kind: input, shape index: {}]
  %s11 = inlined_call_operand.vmem [shape: f32[1,1,4], index: 11, kind: input, shape index: {}]
  %s12 = inlined_call_operand.vmem [shape: f32[1,1,4], index: 12, kind: input, shape index: {}]
  %s13 = inlined_call_operand.vmem [shape: f32[1,16,4], index: 13, kind: output, shape index: {0}]
  %s14 = inlined_call_operand.vmem [shape: f32[1,16,4], index: 14, kind: output, shape index: {1}]
  %15 = xla_tuple %s13, %s14
  %s16 = sld [smem:[#allocation0]]
  $region70: #{image_coding_forward.65} parent=0
    _
  %s18 = ssub.s32 1, %s16
  %s19 = scalar_select 0, %s18, %s16
  // Predicated region
  $region2: #{image_coding_forward.65} parent=0 // pred_check
    _
  $region3: #{image_coding_forward.65} parent=0 // pred_check_branch
    %21 = sbr.rel (0) target = $region5
  $region4: #{image_coding_forward.65} parent=0 // pred_region
    _
  $region5: #{image_coding_forward.65} parent=0 // pred_fallthru
    _
  // Predicated region
  $region6: #{image_coding_forward.65} parent=0 // pred_check
    _
  $region7: #{image_coding_forward.65} parent=0 // pred_check_branch
    %23 = sbr.rel (0) target = $region9
  $region8: #{image_coding_forward.65} parent=0 // pred_region
    _
  $region9: #{image_coding_forward.65} parent=0 // pred_fallthru
    _
  // Predicated region
  $region10: #{image_coding_forward.65} parent=0 // pred_check
    _
  $region11: #{image_coding_forward.65} parent=0 // pred_check_branch
    %25 = sbr.rel (0) target = $region13
  $region12: #{image_coding_forward.65} parent=0 // pred_region
    _
  $region13: #{image_coding_forward.65} parent=0 // pred_fallthru
    _
  // Predicated region
  $region14: #{image_coding_forward.65} parent=0 // pred_check
    _
  $region15: #{image_coding_forward.65} parent=0 // pred_check_branch
    %27 = sbr.rel (0) target = $region17
  $region16: #{image_coding_forward.65} parent=0 // pred_region
    _
  $region17: #{image_coding_forward.65} parent=0 // pred_fallthru
    _
  // Predicated region
  $region18: #{image_coding_forward.65} parent=0 // pred_check
    _
  $region19: #{image_coding_forward.65} parent=0 // pred_check_branch
    %29 = sbr.rel (0) target = $region21
  $region20: #{image_coding_forward.65} parent=0 // pred_region
    _
  $region21: #{image_coding_forward.65} parent=0 // pred_fallthru
    _
  // Predicated region
  $region22: #{image_coding_forward.65} parent=0 // pred_check
    _
  $region23: #{image_coding_forward.65} parent=0 // pred_check_branch
    %31 = sbr.rel (0) target = $region25
  $region24: #{image_coding_forward.65} parent=0 // pred_region
    _
  $region25: #{image_coding_forward.65} parent=0 // pred_fallthru
    _
  // Predicated region
  $region26: #{image_coding_forward.65} parent=0 // pred_check
    _
  $region27: #{image_coding_forward.65} parent=0 // pred_check_branch
    %33 = sbr.rel (0) target = $region29
  $region28: #{image_coding_forward.65} parent=0 // pred_region
    _
  $region29: #{image_coding_forward.65} parent=0 // pred_fallthru
    _
  // Predicated region
  $region30: #{image_coding_forward.65} parent=0 // pred_check
    _
  $region31: #{image_coding_forward.65} parent=0 // pred_check_branch
    %35 = sbr.rel (0) target = $region33
  $region32: #{image_coding_forward.65} parent=0 // pred_region
    _
  $region33: #{image_coding_forward.65} parent=0 // pred_fallthru
    _
  // Predicated region
  $region34: #{image_coding_forward.65} parent=0 // pred_check
    _
  $region35: #{image_coding_forward.65} parent=0 // pred_check_branch
    %37 = sbr.rel (0) target = $region37
  $region36: #{image_coding_forward.65} parent=0 // pred_region
    _
  $region37: #{image_coding_forward.65} parent=0 // pred_fallthru
    _
  // Predicated region
  $region38: #{image_coding_forward.65} parent=0 // pred_check
    _
  $region39: #{image_coding_forward.65} parent=0 // pred_check_branch
    %39 = sbr.rel (0) target = $region41
  $region40: #{image_coding_forward.65} parent=0 // pred_region
    _
  $region41: #{image_coding_forward.65} parent=0 // pred_fallthru
    _
  // Predicated region
  $region42: #{image_coding_forward.65} parent=0 // pred_check
    _
  $region43: #{image_coding_forward.65} parent=0 // pred_check_branch
    %41 = sbr.rel (0) target = $region45
  $region44: #{image_coding_forward.65} parent=0 // pred_region
    _
  $region45: #{image_coding_forward.65} parent=0 // pred_fallthru
    _
  // Predicated region
  $region46: #{image_coding_forward.65} parent=0 // pred_check
    _
  $region47: #{image_coding_forward.65} parent=0 // pred_check_branch
    %43 = sbr.rel (0) target = $region49
  $region48: #{image_coding_forward.65} parent=0 // pred_region
    _
  $region49: #{image_coding_forward.65} parent=0 // pred_fallthru
    _
  // Predicated region
  $region50: #{image_coding_forward.65} parent=0 // pred_check
    _
  $region51: #{image_coding_forward.65} parent=0 // pred_check_branch
    %45 = sbr.rel (0) target = $region53
  $region52: #{image_coding_forward.65} parent=0 // pred_region
    _
  $region53: #{image_coding_forward.65} parent=0 // pred_fallthru
    _
  %v46 = vld [vmem:[%s0] sm:$0xff]
  %v47 = vld [vmem:[%s0 + $0x8] sm:$0xff]
  %v48 = vld [vmem:[%s1] sm:$0xff]
  %v49 = vld [vmem:[%s1 + $0x8] sm:$0xff]
  %v50 = vld [vmem:[%s2] sm:$0xff]
  %v51 = vld [vmem:[%s2 + $0x8] sm:$0xff]
  %v52 = vld [vmem:[%s3] sm:$0xff]
  %v53 = vld [vmem:[%s3 + $0x8] sm:$0xff]
  %v54 = vld [vmem:[%s4] sm:$0xff]
  %v55 = vld [vmem:[%s4 + $0x8] sm:$0xff]
  %v56 = vld [vmem:[%s9] sm:$0x1]
  %v57 = vld [vmem:[%s10] sm:$0x1]
  %v58 = vld [vmem:[%s11] sm:$0x1]
  %v59 = vld [vmem:[%s12] sm:$0x1]
  %v60 = vld [vmem:[%s5] sm:$0xf]
  %v61 = vld [vmem:[%s6] sm:$0xf]
  %v62 = vld [vmem:[%s7] sm:$0xf]
  %v63 = vld [vmem:[%s8] sm:$0xf]
  %vm64 = vcmask 31744
  %v65 = vsel %vm64, %v46, 0.0
  %66 = vadd.xlane.f32.xlu0 %v65
  %v67 = vpop.xlane.xlu0 %66
  %v68 = vsel %vm64, %v47, 0.0
  %69 = vadd.xlane.f32.xlu0 %v68
  %v70 = vpop.xlane.xlu0 %69
  %v71 = vrcp.pop 4.0
  %v72 = vmul.f32 4.0, %v71
  %v73 = vsub.f32 1.0, %v72
  %v74 = vmul.f32 %v71, %v73
  %v75 = vadd.f32 %v71, %v74
  %vm76 = vweird.f32 %v71
  %v77 = vsel %vm76, %v71, %v75
  %v78 = vmul.f32 %v67, %v77
  %v79 = vmul.f32 %v70, %v77
  %v80 = vsub.f32 %v46, %v78
  %v81 = vsub.f32 %v47, %v79
  %v82 = vmul.f32 %v80, %v80
  %v83 = vmul.f32 %v81, %v81
  %v84 = vsel %vm64, %v82, 0.0
  %85 = vadd.xlane.f32.xlu0 %v84
  %v86 = vpop.xlane.xlu0 %85
  %v87 = vsel %vm64, %v83, 0.0
  %88 = vadd.xlane.f32.xlu0 %v87
  %v89 = vpop.xlane.xlu0 %88
  %v90 = vmul.f32 %v86, %v77
  %v91 = vmul.f32 %v89, %v77
  %v92 = vadd.f32 %v90, 1e-05
  %v93 = vadd.f32 %v91, 1e-05
  %v94 = vrsqrt.pop %v92
  %v95 = vmul.f32 %v94, %v92
  %v96 = vmul.f32 %v95, %v94
  %v97 = vmul.f32 0.5, %v96
  %v98 = vsub.f32 1.5, %v97
  %v99 = vmul.f32 %v94, %v98
  %vm100 = vweird.f32 %v92
  %vm101 = vweird.f32 %v94
  %vm102 = vmor %vm100, %vm101
  %v103 = vsel %vm102, %v94, %v99
  %v104 = vrsqrt.pop %v93
  %v105 = vmul.f32 %v104, %v93
  %v106 = vmul.f32 %v105, %v104
  %v107 = vmul.f32 0.5, %v106
  %v108 = vsub.f32 1.5, %v107
  %v109 = vmul.f32 %v104, %v108
  %vm110 = vweird.f32 %v93
  %vm111 = vweird.f32 %v104
  %vm112 = vmor %vm110, %vm111
  %v113 = vsel %vm112, %v104, %v109
  %v114 = vmul.f32 %v80, %v103
  %v115 = vmul.f32 %v81, %v113
  %v117 = vperm.slane %v56, 0
  %v119 = vmul.f32 %v114, %v117
  %v120 = vmul.f32 %v115, %v117
  %v122 = vperm.slane %v57, 0
  %v124 = vadd.f32 %v119, %v122
  %v125 = vadd.f32 %v120, %v122
  %v126 = vsel %vm64, %v48, 0.0
  %127 = vadd.xlane.f32.xlu0 %v126
  %v128 = vpop.xlane.xlu0 %127
  %v129 = vsel %vm64, %v49, 0.0
  %130 = vadd.xlane.f32.xlu0 %v129
  %v131 = vpop.xlane.xlu0 %130
  %v132 = vmul.f32 %v128, %v77
  %v133 = vmul.f32 %v131, %v77
  %v134 = vsub.f32 %v48, %v132
  %v135 = vsub.f32 %v49, %v133
  %v136 = vmul.f32 %v134, %v134
  %v137 = vmul.f32 %v135, %v135
  %v138 = vsel %vm64, %v136, 0.0
  %139 = vadd.xlane.f32.xlu0 %v138
  %v140 = vpop.xlane.xlu0 %139
  %v141 = vsel %vm64, %v137, 0.0
  %142 = vadd.xlane.f32.xlu0 %v141
  %v143 = vpop.xlane.xlu0 %142
  %v144 = vmul.f32 %v140, %v77
  %v145 = vmul.f32 %v143, %v77
  %v146 = vadd.f32 %v144, 1e-05
  %v147 = vadd.f32 %v145, 1e-05
  %v148 = vrsqrt.pop %v146
  %v149 = vmul.f32 %v148, %v146
  %v150 = vmul.f32 %v149, %v148
  %v151 = vmul.f32 0.5, %v150
  %v152 = vsub.f32 1.5, %v151
  %v153 = vmul.f32 %v148, %v152
  %vm154 = vweird.f32 %v146
  %vm155 = vweird.f32 %v148
  %vm156 = vmor %vm154, %vm155
  %v157 = vsel %vm156, %v148, %v153
  %v158 = vrsqrt.pop %v147
  %v159 = vmul.f32 %v158, %v147
  %v160 = vmul.f32 %v159, %v158
  %v161 = vmul.f32 0.5, %v160
  %v162 = vsub.f32 1.5, %v161
  %v163 = vmul.f32 %v158, %v162
  %vm164 = vweird.f32 %v147
  %vm165 = vweird.f32 %v158
  %vm166 = vmor %vm164, %vm165
  %v167 = vsel %vm166, %v158, %v163
  %v168 = vmul.f32 %v134, %v157
  %v169 = vmul.f32 %v135, %v167
  %v171 = vperm.slane %v58, 0
  %v173 = vmul.f32 %v168, %v171
  %v174 = vmul.f32 %v169, %v171
  %v176 = vperm.slane %v59, 0
  %v178 = vadd.f32 %v173, %v176
  %v179 = vadd.f32 %v174, %v176
  %v180 = vsel %vm64, %v50, 0.0
  %181 = vadd.xlane.f32.xlu0 %v180
  %v182 = vpop.xlane.xlu0 %181
  %v183 = vsel %vm64, %v51, 0.0
  %184 = vadd.xlane.f32.xlu0 %v183
  %v185 = vpop.xlane.xlu0 %184
  %v186 = vmul.f32 %v182, %v77
  %v187 = vmul.f32 %v185, %v77
  %v188 = vsub.f32 %v50, %v186
  %v189 = vsub.f32 %v51, %v187
  %v190 = vmul.f32 %v188, %v188
  %v191 = vmul.f32 %v189, %v189
  %v192 = vsel %vm64, %v190, 0.0
  %193 = vadd.xlane.f32.xlu0 %v192
  %v194 = vpop.xlane.xlu0 %193
  %v195 = vsel %vm64, %v191, 0.0
  %196 = vadd.xlane.f32.xlu0 %v195
  %v197 = vpop.xlane.xlu0 %196
  %v198 = vmul.f32 %v194, %v77
  %v199 = vmul.f32 %v197, %v77
  %v200 = vadd.f32 %v198, 1e-05
  %v201 = vadd.f32 %v199, 1e-05
  %v202 = vrsqrt.pop %v200
  %v203 = vmul.f32 %v202, %v200
  %v204 = vmul.f32 %v203, %v202
  %v205 = vmul.f32 0.5, %v204
  %v206 = vsub.f32 1.5, %v205
  %v207 = vmul.f32 %v202, %v206
  %vm208 = vweird.f32 %v200
  %vm209 = vweird.f32 %v202
  %vm210 = vmor %vm208, %vm209
  %v211 = vsel %vm210, %v202, %v207
  %v212 = vrsqrt.pop %v201
  %v213 = vmul.f32 %v212, %v201
  %v214 = vmul.f32 %v213, %v212
  %v215 = vmul.f32 0.5, %v214
  %v216 = vsub.f32 1.5, %v215
  %v217 = vmul.f32 %v212, %v216
  %vm218 = vweird.f32 %v201
  %vm219 = vweird.f32 %v212
  %vm220 = vmor %vm218, %vm219
  %v221 = vsel %vm220, %v212, %v217
  %v222 = vmul.f32 %v188, %v211
  %v223 = vmul.f32 %v189, %v221
  %v224 = vmul.f32 %v222, %v117
  %v225 = vmul.f32 %v223, %v117
  %v226 = vadd.f32 %v224, %v122
  %v227 = vadd.f32 %v225, %v122
  %v228 = vsel %vm64, %v52, 0.0
  %229 = vadd.xlane.f32.xlu0 %v228
  %v230 = vpop.xlane.xlu0 %229
  %v231 = vsel %vm64, %v53, 0.0
  %232 = vadd.xlane.f32.xlu0 %v231
  %v233 = vpop.xlane.xlu0 %232
  %v234 = vmul.f32 %v230, %v77
  %v235 = vmul.f32 %v233, %v77
  %v236 = vsub.f32 %v52, %v234
  %v237 = vsub.f32 %v53, %v235
  %v238 = vmul.f32 %v236, %v236
  %v239 = vmul.f32 %v237, %v237
  %v240 = vsel %vm64, %v238, 0.0
  %241 = vadd.xlane.f32.xlu0 %v240
  %v242 = vpop.xlane.xlu0 %241
  %v243 = vsel %vm64, %v239, 0.0
  %244 = vadd.xlane.f32.xlu0 %v243
  %v245 = vpop.xlane.xlu0 %244
  %v246 = vmul.f32 %v242, %v77
  %v247 = vmul.f32 %v245, %v77
  %v248 = vadd.f32 %v246, 1e-05
  %v249 = vadd.f32 %v247, 1e-05
  %v250 = vrsqrt.pop %v248
  %v251 = vmul.f32 %v250, %v248
  %v252 = vmul.f32 %v251, %v250
  %v253 = vmul.f32 0.5, %v252
  %v254 = vsub.f32 1.5, %v253
  %v255 = vmul.f32 %v250, %v254
  %vm256 = vweird.f32 %v248
  %vm257 = vweird.f32 %v250
  %vm258 = vmor %vm256, %vm257
  %v259 = vsel %vm258, %v250, %v255
  %v260 = vrsqrt.pop %v249
  %v261 = vmul.f32 %v260, %v249
  %v262 = vmul.f32 %v261, %v260
  %v263 = vmul.f32 0.5, %v262
  %v264 = vsub.f32 1.5, %v263
  %v265 = vmul.f32 %v260, %v264
  %vm266 = vweird.f32 %v249
  %vm267 = vweird.f32 %v260
  %vm268 = vmor %vm266, %vm267
  %v269 = vsel %vm268, %v260, %v265
  %v270 = vmul.f32 %v236, %v259
  %v271 = vmul.f32 %v237, %v269
  %v272 = vmul.f32 %v270, %v171
  %v273 = vmul.f32 %v271, %v171
  %v274 = vadd.f32 %v272, %v176
  %v275 = vadd.f32 %v273, %v176
  %v277 = vsel %vm64, %v124, 0
  %v280 = vsel %vm64, %v125, 0
  %vm282 = vcmask 1043456
  %v284 = vsel %vm282, %v60, 0
  %286 = vmatpush.msra.mxu0 0.0
  %287 = vmatpush.msra.mxu0 0.0
  %288 = vmatpush.msra.mxu0 0.0
  %289 = vmatpush.msra.mxu0 0.0
  %290 = vmatpush.msra.mxu0 0.0
  %291 = vmatpush.msra.mxu0 0.0
  %292 = vmatpush.msra.mxu0 0.0
  %293 = vmatpush.msra.mxu0 0.0
  %294 = vmatpush.msra.mxu0 0.0
  %295 = vmatpush.msra.mxu0 0.0
  %296 = vmatpush.msra.mxu0 0.0
  %297 = vmatpush.msra.mxu0 0.0
  %298 = vmatpush.msra.mxu0 0.0
  %299 = vmatpush.msra.mxu0 0.0
  %300 = vmatpush.msra.mxu0 0.0
  %301 = vmatpush.msra.mxu0 %v284
  %302 = vmatmul.f32.gmra.mxu0 %v277
  %v303 = vpop.f32.mrf.mxu0
  %v304 = vadd.f32 0.0, %v303
  %305 = vmatmul.f32.gmra.mxu0 %v280
  %v306 = vpop.f32.mrf.mxu0
  %v307 = vadd.f32 0.0, %v306
  %308 = vdwg.mxu0
  %v310 = vsel %vm64, %v178, 0
  %v313 = vsel %vm64, %v179, 0
  %315 = vmatpush.msra.mxu0 0.0
  %316 = vmatpush.msra.mxu0 0.0
  %317 = vmatpush.msra.mxu0 0.0
  %318 = vmatpush.msra.mxu0 0.0
  %319 = vmatpush.msra.mxu0 0.0
  %320 = vmatpush.msra.mxu0 0.0
  %321 = vmatpush.msra.mxu0 0.0
  %322 = vmatpush.msra.mxu0 0.0
  %323 = vmatpush.msra.mxu0 0.0
  %324 = vmatpush.msra.mxu0 0.0
  %325 = vmatpush.msra.mxu0 0.0
  %326 = vmatpush.msra.mxu0 0.0
  %327 = vmatpush.msra.mxu0 0.0
  %328 = vmatpush.msra.mxu0 0.0
  %329 = vmatpush.msra.mxu0 0.0
  %330 = vmatpush.msra.mxu0 %v284
  %331 = vmatmul.f32.gmra.mxu0 %v310
  %v332 = vpop.f32.mrf.mxu0
  %v333 = vadd.f32 0.0, %v332
  %334 = vmatmul.f32.gmra.mxu0 %v313
  %v335 = vpop.f32.mrf.mxu0
  %v336 = vadd.f32 0.0, %v335
  %337 = vdwg.mxu0
  %v339 = vsel %vm64, %v226, 0
  %v342 = vsel %vm64, %v227, 0
  %v345 = vsel %vm282, %v61, 0
  %347 = vmatpush.msra.mxu0 0.0
  %348 = vmatpush.msra.mxu0 0.0
  %349 = vmatpush.msra.mxu0 0.0
  %350 = vmatpush.msra.mxu0 0.0
  %351 = vmatpush.msra.mxu0 0.0
  %352 = vmatpush.msra.mxu0 0.0
  %353 = vmatpush.msra.mxu0 0.0
  %354 = vmatpush.msra.mxu0 0.0
  %355 = vmatpush.msra.mxu0 0.0
  %356 = vmatpush.msra.mxu0 0.0
  %357 = vmatpush.msra.mxu0 0.0
  %358 = vmatpush.msra.mxu0 0.0
  %359 = vmatpush.msra.mxu0 0.0
  %360 = vmatpush.msra.mxu0 0.0
  %361 = vmatpush.msra.mxu0 0.0
  %362 = vmatpush.msra.mxu0 %v345
  %363 = vmatmul.f32.gmra.mxu0 %v339
  %v364 = vpop.f32.mrf.mxu0
  %v365 = vadd.f32 0.0, %v364
  %366 = vmatmul.f32.gmra.mxu0 %v342
  %v367 = vpop.f32.mrf.mxu0
  %v368 = vadd.f32 0.0, %v367
  %369 = vdwg.mxu0
  %v371 = vsel %vm64, %v274, 0
  %v374 = vsel %vm64, %v275, 0
  %376 = vmatpush.msra.mxu0 0.0
  %377 = vmatpush.msra.mxu0 0.0
  %378 = vmatpush.msra.mxu0 0.0
  %379 = vmatpush.msra.mxu0 0.0
  %380 = vmatpush.msra.mxu0 0.0
  %381 = vmatpush.msra.mxu0 0.0
  %382 = vmatpush.msra.mxu0 0.0
  %383 = vmatpush.msra.mxu0 0.0
  %384 = vmatpush.msra.mxu0 0.0
  %385 = vmatpush.msra.mxu0 0.0
  %386 = vmatpush.msra.mxu0 0.0
  %387 = vmatpush.msra.mxu0 0.0
  %388 = vmatpush.msra.mxu0 0.0
  %389 = vmatpush.msra.mxu0 0.0
  %390 = vmatpush.msra.mxu0 0.0
  %391 = vmatpush.msra.mxu0 %v345
  %392 = vmatmul.f32.gmra.mxu0 %v371
  %v393 = vpop.f32.mrf.mxu0
  %v394 = vadd.f32 0.0, %v393
  %395 = vmatmul.f32.gmra.mxu0 %v374
  %v396 = vpop.f32.mrf.mxu0
  %v397 = vadd.f32 0.0, %v396
  %398 = vdwg.mxu0
  %v400 = vsel %vm282, %v62, 0
  %402 = vmatpush.msra.mxu0 0.0
  %403 = vmatpush.msra.mxu0 0.0
  %404 = vmatpush.msra.mxu0 0.0
  %405 = vmatpush.msra.mxu0 0.0
  %406 = vmatpush.msra.mxu0 0.0
  %407 = vmatpush.msra.mxu0 0.0
  %408 = vmatpush.msra.mxu0 0.0
  %409 = vmatpush.msra.mxu0 0.0
  %410 = vmatpush.msra.mxu0 0.0
  %411 = vmatpush.msra.mxu0 0.0
  %412 = vmatpush.msra.mxu0 0.0
  %413 = vmatpush.msra.mxu0 0.0
  %414 = vmatpush.msra.mxu0 0.0
  %415 = vmatpush.msra.mxu0 0.0
  %416 = vmatpush.msra.mxu0 0.0
  %417 = vmatpush.msra.mxu0 %v400
  %418 = vmatmul.f32.gmra.mxu0 %v339
  %v419 = vpop.f32.mrf.mxu0
  %v420 = vadd.f32 0.0, %v419
  %421 = vmatmul.f32.gmra.mxu0 %v342
  %v422 = vpop.f32.mrf.mxu0
  %v423 = vadd.f32 0.0, %v422
  %424 = vdwg.mxu0
  %426 = vset.pattern.permute.xlu0 0
  %427 = vperm.xlu0 %426, %v54
  %v428 = vpop.permute.xlu0 %427
  %431 = vset.pattern.permute.xlu0 0
  %432 = vperm.xlu0 %431, %v55
  %v433 = vpop.permute.xlu0 %432
  %v435 = vmul.f32 %v420, %v428
  %v436 = vmul.f32 %v423, %v433
  %437 = vmatpush.msra.mxu0 0.0
  %438 = vmatpush.msra.mxu0 0.0
  %439 = vmatpush.msra.mxu0 0.0
  %440 = vmatpush.msra.mxu0 0.0
  %441 = vmatpush.msra.mxu0 0.0
  %442 = vmatpush.msra.mxu0 0.0
  %443 = vmatpush.msra.mxu0 0.0
  %444 = vmatpush.msra.mxu0 0.0
  %445 = vmatpush.msra.mxu0 0.0
  %446 = vmatpush.msra.mxu0 0.0
  %447 = vmatpush.msra.mxu0 0.0
  %448 = vmatpush.msra.mxu0 0.0
  %449 = vmatpush.msra.mxu0 0.0
  %450 = vmatpush.msra.mxu0 0.0
  %451 = vmatpush.msra.mxu0 0.0
  %452 = vmatpush.msra.mxu0 %v400
  %453 = vmatmul.f32.gmra.mxu0 %v371
  %v454 = vpop.f32.mrf.mxu0
  %v455 = vadd.f32 0.0, %v454
  %456 = vmatmul.f32.gmra.mxu0 %v374
  %v457 = vpop.f32.mrf.mxu0
  %v458 = vadd.f32 0.0, %v457
  %459 = vdwg.mxu0
  %v460 = vmul.f32 %v455, %v428
  %v461 = vmul.f32 %v458, %v433
  %v463 = vsel %vm64, %v304, 0
  %v466 = vsel %vm64, %v307, 0
  %v469 = vsel %vm64, %v394, 0
  %v472 = vsel %vm64, %v397, 0
  %474 = vmatpush.xpose.msra.mxu0 0.0
  %475 = vmatpush.xpose.msra.mxu0 0.0
  %476 = vmatpush.xpose.msra.mxu0 0.0
  %477 = vmatpush.xpose.msra.mxu0 0.0
  %478 = vmatpush.xpose.msra.mxu0 0.0
  %479 = vmatpush.xpose.msra.mxu0 0.0
  %480 = vmatpush.xpose.msra.mxu0 0.0
  %481 = vmatpush.xpose.msra.mxu0 0.0
  %482 = vmatpush.xpose.msra.mxu0 0.0
  %483 = vmatpush.xpose.msra.mxu0 0.0
  %484 = vmatpush.xpose.msra.mxu0 0.0
  %485 = vmatpush.xpose.msra.mxu0 0.0
  %486 = vmatpush.xpose.msra.mxu0 0.0
  %487 = vmatpush.xpose.msra.mxu0 0.0
  %488 = vmatpush.xpose.msra.mxu0 %v472
  %489 = vmatpush.xpose.msra.mxu0 %v469
  %490 = vmatmul.f32.gmra.mxu0 %v463
  %v491 = vpop.f32.mrf.mxu0
  %v492 = vadd.f32 0.0, %v491
  %493 = vmatmul.f32.gmra.mxu0 %v466
  %v494 = vpop.f32.mrf.mxu0
  %v495 = vadd.f32 0.0, %v494
  %496 = vdwg.mxu0
  %v497 = vmul.f32 %v492, 0.5
  %v498 = vmul.f32 %v495, 0.5
  %v500 = vsel %vm64, %v333, 0
  %v503 = vsel %vm64, %v336, 0
  %v506 = vsel %vm64, %v365, 0
  %v509 = vsel %vm64, %v368, 0
  %511 = vmatpush.xpose.msra.mxu0 0.0
  %512 = vmatpush.xpose.msra.mxu0 0.0
  %513 = vmatpush.xpose.msra.mxu0 0.0
  %514 = vmatpush.xpose.msra.mxu0 0.0
  %515 = vmatpush.xpose.msra.mxu0 0.0
  %516 = vmatpush.xpose.msra.mxu0 0.0
  %517 = vmatpush.xpose.msra.mxu0 0.0
  %518 = vmatpush.xpose.msra.mxu0 0.0
  %519 = vmatpush.xpose.msra.mxu0 0.0
  %520 = vmatpush.xpose.msra.mxu0 0.0
  %521 = vmatpush.xpose.msra.mxu0 0.0
  %522 = vmatpush.xpose.msra.mxu0 0.0
  %523 = vmatpush.xpose.msra.mxu0 0.0
  %524 = vmatpush.xpose.msra.mxu0 0.0
  %525 = vmatpush.xpose.msra.mxu0 %v509
  %526 = vmatpush.xpose.msra.mxu0 %v506
  %527 = vmatmul.f32.gmra.mxu0 %v500
  %v528 = vpop.f32.mrf.mxu0
  %v529 = vadd.f32 0.0, %v528
  %530 = vmatmul.f32.gmra.mxu0 %v503
  %v531 = vpop.f32.mrf.mxu0
  %v532 = vadd.f32 0.0, %v531
  %533 = vdwg.mxu0
  %v534 = vmul.f32 %v529, 0.5
  %v535 = vmul.f32 %v532, 0.5
  %v536 = vsub.f32 %v497, %v497
  %v537 = vsub.f32 %v498, %v498
  %v538 = vmul.f32 %v536, 1.442695
  %v539 = vpow.pop %v538
  %v540 = vmul.f32 %v537, 1.442695
  %v541 = vpow.pop %v540
  %v542 = vadd.f32 %v539, 0.0
  %v543 = vadd.f32 %v541, 0.0
  %v544 = vrcp.pop %v542
  %v545 = vmul.f32 %v542, %v544
  %v546 = vsub.f32 1.0, %v545
  %v547 = vmul.f32 %v544, %v546
  %v548 = vadd.f32 %v544, %v547
  %vm549 = vweird.f32 %v542
  %vm550 = vweird.f32 %v544
  %vm551 = vmor %vm549, %vm550
  %v552 = vsel %vm551, %v544, %v548
  %v553 = vand.u32 2147483647, %v542
  %vm554 = vcmp.eq.f32.partialorder %v553, 8.507059e+37
  %v555 = vand.u32 %v542, 2147483648
  %v556 = vor.u32 1.1754944e-38, %v555
  %v557 = vsel %vm554, %v556, %v552
  %v558 = vmul.f32 %v539, %v557
  %v559 = vrcp.pop %v543
  %v560 = vmul.f32 %v543, %v559
  %v561 = vsub.f32 1.0, %v560
  %v562 = vmul.f32 %v559, %v561
  %v563 = vadd.f32 %v559, %v562
  %vm564 = vweird.f32 %v543
  %vm565 = vweird.f32 %v559
  %vm566 = vmor %vm564, %vm565
  %v567 = vsel %vm566, %v559, %v563
  %v568 = vand.u32 2147483647, %v543
  %vm569 = vcmp.eq.f32.partialorder %v568, 8.507059e+37
  %v570 = vand.u32 %v543, 2147483648
  %v571 = vor.u32 1.1754944e-38, %v570
  %v572 = vsel %vm569, %v571, %v567
  %v573 = vmul.f32 %v541, %v572
  %v574 = vsub.f32 %v534, %v534
  %v575 = vsub.f32 %v535, %v535
  %v576 = vmul.f32 %v574, 1.442695
  %v577 = vpow.pop %v576
  %v578 = vmul.f32 %v575, 1.442695
  %v579 = vpow.pop %v578
  %v580 = vadd.f32 %v577, 0.0
  %v581 = vadd.f32 %v579, 0.0
  %v582 = vrcp.pop %v580
  %v583 = vmul.f32 %v580, %v582
  %v584 = vsub.f32 1.0, %v583
  %v585 = vmul.f32 %v582, %v584
  %v586 = vadd.f32 %v582, %v585
  %vm587 = vweird.f32 %v580
  %vm588 = vweird.f32 %v582
  %vm589 = vmor %vm587, %vm588
  %v590 = vsel %vm589, %v582, %v586
  %v591 = vand.u32 2147483647, %v580
  %vm592 = vcmp.eq.f32.partialorder %v591, 8.507059e+37
  %v593 = vand.u32 %v580, 2147483648
  %v594 = vor.u32 1.1754944e-38, %v593
  %v595 = vsel %vm592, %v594, %v590
  %v596 = vmul.f32 %v577, %v595
  %v597 = vrcp.pop %v581
  %v598 = vmul.f32 %v581, %v597
  %v599 = vsub.f32 1.0, %v598
  %v600 = vmul.f32 %v597, %v599
  %v601 = vadd.f32 %v597, %v600
  %vm602 = vweird.f32 %v581
  %vm603 = vweird.f32 %v597
  %vm604 = vmor %vm602, %vm603
  %v605 = vsel %vm604, %v597, %v601
  %v606 = vand.u32 2147483647, %v581
  %vm607 = vcmp.eq.f32.partialorder %v606, 8.507059e+37
  %v608 = vand.u32 %v581, 2147483648
  %v609 = vor.u32 1.1754944e-38, %v608
  %v610 = vsel %vm607, %v609, %v605
  %v611 = vmul.f32 %v579, %v610
  %vm612 = vcmask 130048
  %v614 = vsel %vm612, %v558, 0
  %v617 = vsel %vm612, %v573, 0
  %619 = vmatpush.msra.mxu0 0.0
  %620 = vmatpush.msra.mxu0 0.0
  %621 = vmatpush.msra.mxu0 0.0
  %622 = vmatpush.msra.mxu0 0.0
  %623 = vmatpush.msra.mxu0 0.0
  %624 = vmatpush.msra.mxu0 0.0
  %625 = vmatpush.msra.mxu0 0.0
  %626 = vmatpush.msra.mxu0 0.0
  %627 = vmatpush.msra.mxu0 0.0
  %628 = vmatpush.msra.mxu0 0.0
  %629 = vmatpush.msra.mxu0 0.0
  %630 = vmatpush.msra.mxu0 0.0
  %631 = vmatpush.msra.mxu0 0.0
  %632 = vmatpush.msra.mxu0 0.0
  %633 = vmatpush.msra.mxu0 %v436
  %634 = vmatpush.msra.mxu0 %v435
  %635 = vmatmul.f32.gmra.mxu0 %v614
  %v636 = vpop.f32.mrf.mxu0
  %v637 = vadd.f32 0.0, %v636
  %638 = vmatmul.f32.gmra.mxu0 %v617
  %v639 = vpop.f32.mrf.mxu0
  %v640 = vadd.f32 0.0, %v639
  %641 = vdwg.mxu0
  %v643 = vsel %vm612, %v596, 0
  %v646 = vsel %vm612, %v611, 0
  %648 = vmatpush.msra.mxu0 0.0
  %649 = vmatpush.msra.mxu0 0.0
  %650 = vmatpush.msra.mxu0 0.0
  %651 = vmatpush.msra.mxu0 0.0
  %652 = vmatpush.msra.mxu0 0.0
  %653 = vmatpush.msra.mxu0 0.0
  %654 = vmatpush.msra.mxu0 0.0
  %655 = vmatpush.msra.mxu0 0.0
  %656 = vmatpush.msra.mxu0 0.0
  %657 = vmatpush.msra.mxu0 0.0
  %658 = vmatpush.msra.mxu0 0.0
  %659 = vmatpush.msra.mxu0 0.0
  %660 = vmatpush.msra.mxu0 0.0
  %661 = vmatpush.msra.mxu0 0.0
  %662 = vmatpush.msra.mxu0 %v461
  %663 = vmatpush.msra.mxu0 %v460
  %664 = vmatmul.f32.gmra.mxu0 %v643
  %v665 = vpop.f32.mrf.mxu0
  %v666 = vadd.f32 0.0, %v665
  %667 = vmatmul.f32.gmra.mxu0 %v646
  %v668 = vpop.f32.mrf.mxu0
  %v669 = vadd.f32 0.0, %v668
  %670 = vdwg.mxu0
  %v672 = vsel %vm64, %v637, 0
  %v675 = vsel %vm64, %v640, 0
  %v678 = vsel %vm282, %v63, 0
  %680 = vmatpush.msra.mxu0 0.0
  %681 = vmatpush.msra.mxu0 0.0
  %682 = vmatpush.msra.mxu0 0.0
  %683 = vmatpush.msra.mxu0 0.0
  %684 = vmatpush.msra.mxu0 0.0
  %685 = vmatpush.msra.mxu0 0.0
  %686 = vmatpush.msra.mxu0 0.0
  %687 = vmatpush.msra.mxu0 0.0
  %688 = vmatpush.msra.mxu0 0.0
  %689 = vmatpush.msra.mxu0 0.0
  %690 = vmatpush.msra.mxu0 0.0
  %691 = vmatpush.msra.mxu0 0.0
  %692 = vmatpush.msra.mxu0 0.0
  %693 = vmatpush.msra.mxu0 0.0
  %694 = vmatpush.msra.mxu0 0.0
  %695 = vmatpush.msra.mxu0 %v678
  %696 = vmatmul.f32.gmra.mxu0 %v672
  %v697 = vpop.f32.mrf.mxu0
  %v698 = vadd.f32 0.0, %v697
  %699 = vmatmul.f32.gmra.mxu0 %v675
  %v700 = vpop.f32.mrf.mxu0
  %v701 = vadd.f32 0.0, %v700
  %702 = vdwg.mxu0
  %v703 = vadd.f32 %v698, %v46
  %v704 = vadd.f32 %v701, %v47
  %705 = vst.msk [vmem:[%s13] sm:$0xff] %vm64, %v703
  %706 = vst.msk [vmem:[%s13 + $0x8] sm:$0xff] %vm64, %v704
  %v708 = vsel %vm64, %v666, 0
  %v711 = vsel %vm64, %v669, 0
  %713 = vmatpush.msra.mxu0 0.0
  %714 = vmatpush.msra.mxu0 0.0
  %715 = vmatpush.msra.mxu0 0.0
  %716 = vmatpush.msra.mxu0 0.0
  %717 = vmatpush.msra.mxu0 0.0
  %718 = vmatpush.msra.mxu0 0.0
  %719 = vmatpush.msra.mxu0 0.0
  %720 = vmatpush.msra.mxu0 0.0
  %721 = vmatpush.msra.mxu0 0.0
  %722 = vmatpush.msra.mxu0 0.0
  %723 = vmatpush.msra.mxu0 0.0
  %724 = vmatpush.msra.mxu0 0.0
  %725 = vmatpush.msra.mxu0 0.0
  %726 = vmatpush.msra.mxu0 0.0
  %727 = vmatpush.msra.mxu0 0.0
  %728 = vmatpush.msra.mxu0 %v678
  %729 = vmatmul.f32.gmra.mxu0 %v708
  %v730 = vpop.f32.mrf.mxu0
  %v731 = vadd.f32 0.0, %v730
  %732 = vmatmul.f32.gmra.mxu0 %v711
  %v733 = vpop.f32.mrf.mxu0
  %v734 = vadd.f32 0.0, %v733
  %735 = vdwg.mxu0
  %v736 = vadd.f32 %v731, %v48
  %v737 = vadd.f32 %v734, %v49
  %738 = vst.msk [vmem:[%s14] sm:$0xff] %vm64, %v736
  %739 = vst.msk [vmem:[%s14 + $0x8] sm:$0xff] %vm64, %v737
  // Predicated region
  $region54: #{image_coding_forward.65} parent=0 // pred_check
    _
  $region55: #{image_coding_forward.65} parent=0 // pred_check_branch
    %741 = sbr.rel (0) target = $region57
  $region56: #{image_coding_forward.65} parent=0 // pred_region
    _
  $region57: #{image_coding_forward.65} parent=0 // pred_fallthru
    _
  // Predicated region
  $region58: #{image_coding_forward.65} parent=0 // pred_check
    _
  $region59: #{image_coding_forward.65} parent=0 // pred_check_branch
    %743 = sbr.rel (0) target = $region61
  $region60: #{image_coding_forward.65} parent=0 // pred_region
    _
  $region61: #{image_coding_forward.65} parent=0 // pred_fallthru
    _
  // Predicated region
  $region62: #{image_coding_forward.65} parent=0 // pred_check
    _
  $region63: #{image_coding_forward.65} parent=0 // pred_check_branch
    %745 = sbr.rel (0) target = $region65
  $region64: #{image_coding_forward.65} parent=0 // pred_region
    _
  $region65: #{image_coding_forward.65} parent=0 // pred_fallthru
    _
  // Predicated region
  $region66: #{image_coding_forward.65} parent=0 // pred_check
    _
  $region67: #{image_coding_forward.65} parent=0 // pred_check_branch
    %747 = sbr.rel (0) target = $region69
  $region68: #{image_coding_forward.65} parent=0 // pred_region
    _
  $region69: #{image_coding_forward.65} parent=0 // pred_fallthru
    _

// kernel: image_coding_forward.66
$region0: #{image_coding_forward.66}
  #allocation0 [shape = 'u32[]', space=smem, size = 0x4, offset = 0x4, fixed_abs, tag = 'smem constant byte address 0x4 - core index']
  #allocation1 [shape = 'u32[72,128]{1,0:T(1,128)}', space=vmem, size = 0x9000, scoped, tag = 'internal scratch']
  %s0 = inlined_call_operand.vmem [shape: f32[32,36], index: 0, kind: input, shape index: {}]
  %s1 = inlined_call_operand.vmem [shape: f32[36,128], index: 1, kind: input, shape index: {}]
  %s2 = inlined_call_operand.vmem [shape: f32[32,1], index: 2, kind: input, shape index: {}]
  %s3 = inlined_call_operand.vmem [shape: f32[32,128], index: 3, kind: output, shape index: {}]
  %s4 = sld [smem:[#allocation0]]
  $region22: #{image_coding_forward.66} parent=0
    _
  %s6 = ssub.s32 1, %s4
  %s7 = scalar_select 0, %s6, %s4
  // Predicated region
  $region2: #{image_coding_forward.66} parent=0 // pred_check
    _
  $region3: #{image_coding_forward.66} parent=0 // pred_check_branch
    %9 = sbr.rel (0) target = $region5
  $region4: #{image_coding_forward.66} parent=0 // pred_region
    _
  $region5: #{image_coding_forward.66} parent=0 // pred_fallthru
    _
  // Predicated region
  $region6: #{image_coding_forward.66} parent=0 // pred_check
    _
  $region7: #{image_coding_forward.66} parent=0 // pred_check_branch
    %11 = sbr.rel (0) target = $region9
  $region8: #{image_coding_forward.66} parent=0 // pred_region
    _
  $region9: #{image_coding_forward.66} parent=0 // pred_fallthru
    _
  // Predicated region
  $region10: #{image_coding_forward.66} parent=0 // pred_check
    _
  $region11: #{image_coding_forward.66} parent=0 // pred_check_branch
    %13 = sbr.rel (0) target = $region13
  $region12: #{image_coding_forward.66} parent=0 // pred_region
    _
  $region13: #{image_coding_forward.66} parent=0 // pred_fallthru
    _
  %v14 = vld [vmem:[%s0] sm:$0xff]
  %v15 = vld [vmem:[%s0 + $0x8] sm:$0xff]
  %v16 = vld [vmem:[%s0 + $0x10] sm:$0xff]
  %v17 = vld [vmem:[%s0 + $0x18] sm:$0xff]
  %v18 = vld [vmem:[%s1] sm:$0xff]
  %v19 = vld [vmem:[%s1 + $0x8] sm:$0xff]
  %v20 = vld [vmem:[%s1 + $0x10] sm:$0xff]
  %v21 = vld [vmem:[%s1 + $0x18] sm:$0xff]
  %v22 = vld [vmem:[%s1 + $0x20] sm:$0xf]
  %v23 = vld [vmem:[%s2] sm:$0xff]
  %v24 = vld [vmem:[%s2 + $0x8] sm:$0xff]
  %v25 = vld [vmem:[%s2 + $0x10] sm:$0xff]
  %v26 = vld [vmem:[%s2 + $0x18] sm:$0xff]
  %28 = vset.pattern.permute.xlu0 0
  %29 = vperm.xlu0 %28, %v23
  %v30 = vpop.permute.xlu0 %29
  %33 = vset.pattern.permute.xlu0 0
  %34 = vperm.xlu0 %33, %v24
  %v35 = vpop.permute.xlu0 %34
  %38 = vset.pattern.permute.xlu0 0
  %39 = vperm.xlu0 %38, %v25
  %v40 = vpop.permute.xlu0 %39
  %43 = vset.pattern.permute.xlu0 0
  %44 = vperm.xlu0 %43, %v26
  %v45 = vpop.permute.xlu0 %44
  %vm47 = vcmask 293888
  %v49 = vsel %vm47, %v14, 0
  %v52 = vsel %vm47, %v15, 0
  %v55 = vsel %vm47, %v16, 0
  %v58 = vsel %vm47, %v17, 0
  %vm60 = vcmask 1043456
  %v62 = vsel %vm60, %v22, 0
  %64 = vmatpush.msra.mxu0 0.0
  %65 = vmatpush.msra.mxu0 0.0
  %66 = vmatpush.msra.mxu0 0.0
  %67 = vmatpush.msra.mxu0 0.0
  %68 = vmatpush.msra.mxu0 0.0
  %69 = vmatpush.msra.mxu0 0.0
  %70 = vmatpush.msra.mxu0 0.0
  %71 = vmatpush.msra.mxu0 0.0
  %72 = vmatpush.msra.mxu0 0.0
  %73 = vmatpush.msra.mxu0 0.0
  %74 = vmatpush.msra.mxu0 0.0
  %75 = vmatpush.msra.mxu0 %v62
  %76 = vmatpush.msra.mxu0 %v21
  %77 = vmatpush.msra.mxu0 %v20
  %78 = vmatpush.msra.mxu0 %v19
  %79 = vmatpush.msra.mxu0 %v18
  %80 = vmatmul.f32.gmra.mxu0 %v49
  %v81 = vpop.f32.mrf.mxu0
  %v82 = vadd.f32 %v30, %v81
  %83 = vmatmul.f32.gmra.mxu0 %v52
  %v84 = vpop.f32.mrf.mxu0
  %v85 = vadd.f32 %v35, %v84
  %86 = vmatmul.f32.gmra.mxu0 %v55
  %v87 = vpop.f32.mrf.mxu0
  %v88 = vadd.f32 %v40, %v87
  %89 = vmatmul.f32.gmra.mxu0 %v58
  %v90 = vpop.f32.mrf.mxu0
  %v91 = vadd.f32 %v45, %v90
  %92 = vdwg.mxu0
  %vm93 = vcmp.ge.f32.partialorder %v82, 0.0
  %vm94 = vcmp.ge.f32.partialorder %v85, 0.0
  %vm95 = vcmp.ge.f32.partialorder %v88, 0.0
  %vm96 = vcmp.ge.f32.partialorder %v91, 0.0
  %v97 = vmul.f32 %v82, 0.01
  %v98 = vmul.f32 %v85, 0.01
  %v99 = vmul.f32 %v88, 0.01
  %v100 = vmul.f32 %v91, 0.01
  %v101 = vsel %vm93, %v82, %v97
  %v102 = vsel %vm94, %v85, %v98
  %v103 = vsel %vm95, %v88, %v99
  %v104 = vsel %vm96, %v91, %v100
  %105 = vst [vmem:[%s3] sm:$0xff] %v101
  %106 = vst [vmem:[%s3 + $0x8] sm:$0xff] %v102
  %107 = vst [vmem:[%s3 + $0x10] sm:$0xff] %v103
  %108 = vst [vmem:[%s3 + $0x18] sm:$0xff] %v104
  // Predicated region
  $region14: #{image_coding_forward.66} parent=0 // pred_check
    _
  $region15: #{image_coding_forward.66} parent=0 // pred_check_branch
    %110 = sbr.rel (0) target = $region17
  $region16: #{image_coding_forward.66} parent=0 // pred_region
    _
  $region17: #{image_coding_forward.66} parent=0 // pred_fallthru
    _
  // Predicated region
  $region18: #{image_coding_forward.66} parent=0 // pred_check
    _
  $region19: #{image_coding_forward.66} parent=0 // pred_check_branch
    %112 = sbr.rel (0) target = $region21
  $region20: #{image_coding_forward.66} parent=0 // pred_region
    _
  $region21: #{image_coding_forward.66} parent=0 // pred_fallthru
    _

// kernel: image_coding_forward.71
$region0: #{image_coding_forward.71}
  #allocation0 [shape = 'u32[]', space=smem, size = 0x4, offset = 0x4, fixed_abs, tag = 'smem constant byte address 0x4 - core index']
  #allocation1 [shape = 'u32[72,128]{1,0:T(1,128)}', space=vmem, size = 0x9000, scoped, tag = 'internal scratch']
  %s0 = inlined_call_operand.vmem [shape: f32[32,72], index: 0, kind: input, shape index: {}]
  %s1 = inlined_call_operand.vmem [shape: f32[72,128], index: 1, kind: input, shape index: {}]
  %s2 = inlined_call_operand.vmem [shape: f32[32,1], index: 2, kind: input, shape index: {}]
  %s3 = inlined_call_operand.vmem [shape: f32[32,128], index: 3, kind: output, shape index: {}]
  %s4 = sld [smem:[#allocation0]]
  $region22: #{image_coding_forward.71} parent=0
    _
  %s6 = ssub.s32 1, %s4
  %s7 = scalar_select 0, %s6, %s4
  // Predicated region
  $region2: #{image_coding_forward.71} parent=0 // pred_check
    _
  $region3: #{image_coding_forward.71} parent=0 // pred_check_branch
    %9 = sbr.rel (0) target = $region5
  $region4: #{image_coding_forward.71} parent=0 // pred_region
    _
  $region5: #{image_coding_forward.71} parent=0 // pred_fallthru
    _
  // Predicated region
  $region6: #{image_coding_forward.71} parent=0 // pred_check
    _
  $region7: #{image_coding_forward.71} parent=0 // pred_check_branch
    %11 = sbr.rel (0) target = $region9
  $region8: #{image_coding_forward.71} parent=0 // pred_region
    _
  $region9: #{image_coding_forward.71} parent=0 // pred_fallthru
    _
  // Predicated region
  $region10: #{image_coding_forward.71} parent=0 // pred_check
    _
  $region11: #{image_coding_forward.71} parent=0 // pred_check_branch
    %13 = sbr.rel (0) target = $region13
  $region12: #{image_coding_forward.71} parent=0 // pred_region
    _
  $region13: #{image_coding_forward.71} parent=0 // pred_fallthru
    _
  %v14 = vld [vmem:[%s0] sm:$0xff]
  %v15 = vld [vmem:[%s0 + $0x8] sm:$0xff]
  %v16 = vld [vmem:[%s0 + $0x10] sm:$0xff]
  %v17 = vld [vmem:[%s0 + $0x18] sm:$0xff]
  %v18 = vld [vmem:[%s1] sm:$0xff]
  %v19 = vld [vmem:[%s1 + $0x8] sm:$0xff]
  %v20 = vld [vmem:[%s1 + $0x10] sm:$0xff]
  %v21 = vld [vmem:[%s1 + $0x18] sm:$0xff]
  %v22 = vld [vmem:[%s1 + $0x20] sm:$0xff]
  %v23 = vld [vmem:[%s1 + $0x28] sm:$0xff]
  %v24 = vld [vmem:[%s1 + $0x30] sm:$0xff]
  %v25 = vld [vmem:[%s1 + $0x38] sm:$0xff]
  %v26 = vld [vmem:[%s1 + $0x40] sm:$0xff]
  %v27 = vld [vmem:[%s2] sm:$0xff]
  %v28 = vld [vmem:[%s2 + $0x8] sm:$0xff]
  %v29 = vld [vmem:[%s2 + $0x10] sm:$0xff]
  %v30 = vld [vmem:[%s2 + $0x18] sm:$0xff]
  %32 = vset.pattern.permute.xlu0 0
  %33 = vperm.xlu0 %32, %v27
  %v34 = vpop.permute.xlu0 %33
  %37 = vset.pattern.permute.xlu0 0
  %38 = vperm.xlu0 %37, %v28
  %v39 = vpop.permute.xlu0 %38
  %42 = vset.pattern.permute.xlu0 0
  %43 = vperm.xlu0 %42, %v29
  %v44 = vpop.permute.xlu0 %43
  %47 = vset.pattern.permute.xlu0 0
  %48 = vperm.xlu0 %47, %v30
  %v49 = vpop.permute.xlu0 %48
  %vm51 = vcmask 588800
  %v53 = vsel %vm51, %v14, 0
  %v56 = vsel %vm51, %v15, 0
  %v59 = vsel %vm51, %v16, 0
  %v62 = vsel %vm51, %v17, 0
  %64 = vmatpush.msra.mxu0 0.0
  %65 = vmatpush.msra.mxu0 0.0
  %66 = vmatpush.msra.mxu0 0.0
  %67 = vmatpush.msra.mxu0 0.0
  %68 = vmatpush.msra.mxu0 0.0
  %69 = vmatpush.msra.mxu0 0.0
  %70 = vmatpush.msra.mxu0 0.0
  %71 = vmatpush.msra.mxu0 %v26
  %72 = vmatpush.msra.mxu0 %v25
  %73 = vmatpush.msra.mxu0 %v24
  %74 = vmatpush.msra.mxu0 %v23
  %75 = vmatpush.msra.mxu0 %v22
  %76 = vmatpush.msra.mxu0 %v21
  %77 = vmatpush.msra.mxu0 %v20
  %78 = vmatpush.msra.mxu0 %v19
  %79 = vmatpush.msra.mxu0 %v18
  %80 = vmatmul.f32.gmra.mxu0 %v53
  %v81 = vpop.f32.mrf.mxu0
  %v82 = vadd.f32 %v34, %v81
  %83 = vmatmul.f32.gmra.mxu0 %v56
  %v84 = vpop.f32.mrf.mxu0
  %v85 = vadd.f32 %v39, %v84
  %86 = vmatmul.f32.gmra.mxu0 %v59
  %v87 = vpop.f32.mrf.mxu0
  %v88 = vadd.f32 %v44, %v87
  %89 = vmatmul.f32.gmra.mxu0 %v62
  %v90 = vpop.f32.mrf.mxu0
  %v91 = vadd.f32 %v49, %v90
  %92 = vdwg.mxu0
  %vm93 = vcmp.ge.f32.partialorder %v82, 0.0
  %vm94 = vcmp.ge.f32.partialorder %v85, 0.0
  %vm95 = vcmp.ge.f32.partialorder %v88, 0.0
  %vm96 = vcmp.ge.f32.partialorder %v91, 0.0
  %v97 = vmul.f32 %v82, 0.01
  %v98 = vmul.f32 %v85, 0.01
  %v99 = vmul.f32 %v88, 0.01
  %v100 = vmul.f32 %v91, 0.01
  %v101 = vsel %vm93, %v82, %v97
  %v102 = vsel %vm94, %v85, %v98
  %v103 = vsel %vm95, %v88, %v99
  %v104 = vsel %vm96, %v91, %v100
  %105 = vst [vmem:[%s3] sm:$0xff] %v101
  %106 = vst [vmem:[%s3 + $0x8] sm:$0xff] %v102
  %107 = vst [vmem:[%s3 + $0x10] sm:$0xff] %v103
  %108 = vst [vmem:[%s3 + $0x18] sm:$0xff] %v104
  // Predicated region
  $region14: #{image_coding_forward.71} parent=0 // pred_check
    _
  $region15: #{image_coding_forward.71} parent=0 // pred_check_branch
    %110 = sbr.rel (0) target = $region17
  $region16: #{image_coding_forward.71} parent=0 // pred_region
    _
  $region17: #{image_coding_forward.71} parent=0 // pred_fallthru
    _
  // Predicated region
  $region18: #{image_coding_forward.71} parent=0 // pred_check
    _
  $region19: #{image_coding_forward.71} parent=0 // pred_check_branch
    %112 = sbr.rel (0) target = $region21
  $region20: #{image_coding_forward.71} parent=0 // pred_region
    _
  $region21: #{image_coding_forward.71} parent=0 // pred_fallthru
    _

// kernel: image_coding_forward.68
$region0: #{image_coding_forward.68}
  #allocation0 [shape = 'u32[]', space=smem, size = 0x4, offset = 0x4, fixed_abs, tag = 'smem constant byte address 0x4 - core index']
  #allocation1 [shape = 'u32[72,128]{1,0:T(1,128)}', space=vmem, size = 0x9000, scoped, tag = 'internal scratch']
  %s0 = inlined_call_operand.vmem [shape: f32[32,72], index: 0, kind: input, shape index: {}]
  %s1 = inlined_call_operand.vmem [shape: f32[72,256], index: 1, kind: input, shape index: {}]
  %s2 = inlined_call_operand.vmem [shape: f32[32,1], index: 2, kind: input, shape index: {}]
  %s3 = inlined_call_operand.vmem [shape: f32[32,256], index: 3, kind: output, shape index: {}]
  %s4 = sld [smem:[#allocation0]]
  $region22: #{image_coding_forward.68} parent=0
    _
  %s6 = ssub.s32 1, %s4
  %s7 = scalar_select 0, %s6, %s4
  // Predicated region
  $region2: #{image_coding_forward.68} parent=0 // pred_check
    _
  $region3: #{image_coding_forward.68} parent=0 // pred_check_branch
    %9 = sbr.rel (0) target = $region5
  $region4: #{image_coding_forward.68} parent=0 // pred_region
    _
  $region5: #{image_coding_forward.68} parent=0 // pred_fallthru
    _
  // Predicated region
  $region6: #{image_coding_forward.68} parent=0 // pred_check
    _
  $region7: #{image_coding_forward.68} parent=0 // pred_check_branch
    %11 = sbr.rel (0) target = $region9
  $region8: #{image_coding_forward.68} parent=0 // pred_region
    _
  $region9: #{image_coding_forward.68} parent=0 // pred_fallthru
    _
  // Predicated region
  $region10: #{image_coding_forward.68} parent=0 // pred_check
    _
  $region11: #{image_coding_forward.68} parent=0 // pred_check_branch
    %13 = sbr.rel (0) target = $region13
  $region12: #{image_coding_forward.68} parent=0 // pred_region
    _
  $region13: #{image_coding_forward.68} parent=0 // pred_fallthru
    _
  %v14 = vld [vmem:[%s0] sm:$0xff]
  %v15 = vld [vmem:[%s0 + $0x8] sm:$0xff]
  %v16 = vld [vmem:[%s0 + $0x10] sm:$0xff]
  %v17 = vld [vmem:[%s0 + $0x18] sm:$0xff]
  %v18 = vld [vmem:[%s1] sm:$0xff]
  %v19 = vld [vmem:[%s1 + $0x8] sm:$0xff]
  %v20 = vld [vmem:[%s1 + $0x10] sm:$0xff]
  %v21 = vld [vmem:[%s1 + $0x18] sm:$0xff]
  %v22 = vld [vmem:[%s1 + $0x20] sm:$0xff]
  %v23 = vld [vmem:[%s1 + $0x28] sm:$0xff]
  %v24 = vld [vmem:[%s1 + $0x30] sm:$0xff]
  %v25 = vld [vmem:[%s1 + $0x38] sm:$0xff]
  %v26 = vld [vmem:[%s1 + $0x40] sm:$0xff]
  %v27 = vld [vmem:[%s1 + $0x48] sm:$0xff]
  %v28 = vld [vmem:[%s1 + $0x50] sm:$0xff]
  %v29 = vld [vmem:[%s1 + $0x58] sm:$0xff]
  %v30 = vld [vmem:[%s1 + $0x60] sm:$0xff]
  %v31 = vld [vmem:[%s1 + $0x68] sm:$0xff]
  %v32 = vld [vmem:[%s1 + $0x70] sm:$0xff]
  %v33 = vld [vmem:[%s1 + $0x78] sm:$0xff]
  %v34 = vld [vmem:[%s1 + $0x80] sm:$0xff]
  %v35 = vld [vmem:[%s1 + $0x88] sm:$0xff]
  %v36 = vld [vmem:[%s2] sm:$0xff]
  %v37 = vld [vmem:[%s2 + $0x8] sm:$0xff]
  %v38 = vld [vmem:[%s2 + $0x10] sm:$0xff]
  %v39 = vld [vmem:[%s2 + $0x18] sm:$0xff]
  %41 = vset.pattern.permute.xlu0 0
  %42 = vperm.xlu0 %41, %v36
  %v43 = vpop.permute.xlu0 %42
  %46 = vset.pattern.permute.xlu0 0
  %47 = vperm.xlu0 %46, %v37
  %v48 = vpop.permute.xlu0 %47
  %51 = vset.pattern.permute.xlu0 0
  %52 = vperm.xlu0 %51, %v38
  %v53 = vpop.permute.xlu0 %52
  %56 = vset.pattern.permute.xlu0 0
  %57 = vperm.xlu0 %56, %v39
  %v58 = vpop.permute.xlu0 %57
  %vm60 = vcmask 588800
  %v62 = vsel %vm60, %v14, 0
  %v65 = vsel %vm60, %v15, 0
  %v68 = vsel %vm60, %v16, 0
  %v71 = vsel %vm60, %v17, 0
  %73 = vmatpush.msra.mxu0 0.0
  %74 = vmatpush.msra.mxu0 0.0
  %75 = vmatpush.msra.mxu0 0.0
  %76 = vmatpush.msra.mxu0 0.0
  %77 = vmatpush.msra.mxu0 0.0
  %78 = vmatpush.msra.mxu0 0.0
  %79 = vmatpush.msra.mxu0 0.0
  %80 = vmatpush.msra.mxu0 %v34
  %81 = vmatpush.msra.mxu0 %v32
  %82 = vmatpush.msra.mxu0 %v30
  %83 = vmatpush.msra.mxu0 %v28
  %84 = vmatpush.msra.mxu0 %v26
  %85 = vmatpush.msra.mxu0 %v24
  %86 = vmatpush.msra.mxu0 %v22
  %87 = vmatpush.msra.mxu0 %v20
  %88 = vmatpush.msra.mxu0 %v18
  %89 = vmatmul.f32.gmra.mxu0 %v62
  %v90 = vpop.f32.mrf.mxu0
  %v91 = vadd.f32 %v43, %v90
  %92 = vmatmul.f32.gmra.mxu0 %v65
  %v93 = vpop.f32.mrf.mxu0
  %v94 = vadd.f32 %v48, %v93
  %95 = vmatmul.f32.gmra.mxu0 %v68
  %v96 = vpop.f32.mrf.mxu0
  %v97 = vadd.f32 %v53, %v96
  %98 = vmatmul.f32.gmra.mxu0 %v71
  %v99 = vpop.f32.mrf.mxu0
  %v100 = vadd.f32 %v58, %v99
  %101 = vdwg.mxu0
  %102 = vmatpush.msra.mxu0 0.0
  %103 = vmatpush.msra.mxu0 0.0
  %104 = vmatpush.msra.mxu0 0.0
  %105 = vmatpush.msra.mxu0 0.0
  %106 = vmatpush.msra.mxu0 0.0
  %107 = vmatpush.msra.mxu0 0.0
  %108 = vmatpush.msra.mxu0 0.0
  %109 = vmatpush.msra.mxu0 %v35
  %110 = vmatpush.msra.mxu0 %v33
  %111 = vmatpush.msra.mxu0 %v31
  %112 = vmatpush.msra.mxu0 %v29
  %113 = vmatpush.msra.mxu0 %v27
  %114 = vmatpush.msra.mxu0 %v25
  %115 = vmatpush.msra.mxu0 %v23
  %116 = vmatpush.msra.mxu0 %v21
  %117 = vmatpush.msra.mxu0 %v19
  %118 = vmatmul.f32.gmra.mxu0 %v62
  %v119 = vpop.f32.mrf.mxu0
  %v120 = vadd.f32 %v43, %v119
  %121 = vmatmul.f32.gmra.mxu0 %v65
  %v122 = vpop.f32.mrf.mxu0
  %v123 = vadd.f32 %v48, %v122
  %124 = vmatmul.f32.gmra.mxu0 %v68
  %v125 = vpop.f32.mrf.mxu0
  %v126 = vadd.f32 %v53, %v125
  %127 = vmatmul.f32.gmra.mxu0 %v71
  %v128 = vpop.f32.mrf.mxu0
  %v129 = vadd.f32 %v58, %v128
  %130 = vdwg.mxu0
  %vm131 = vcmp.ge.f32.partialorder %v91, 0.0
  %vm132 = vcmp.ge.f32.partialorder %v120, 0.0
  %vm133 = vcmp.ge.f32.partialorder %v94, 0.0
  %vm134 = vcmp.ge.f32.partialorder %v123, 0.0
  %vm135 = vcmp.ge.f32.partialorder %v97, 0.0
  %vm136 = vcmp.ge.f32.partialorder %v126, 0.0
  %vm137 = vcmp.ge.f32.partialorder %v100, 0.0
  %vm138 = vcmp.ge.f32.partialorder %v129, 0.0
  %v139 = vmul.f32 %v91, 0.01
  %v140 = vmul.f32 %v120, 0.01
  %v141 = vmul.f32 %v94, 0.01
  %v142 = vmul.f32 %v123, 0.01
  %v143 = vmul.f32 %v97, 0.01
  %v144 = vmul.f32 %v126, 0.01
  %v145 = vmul.f32 %v100, 0.01
  %v146 = vmul.f32 %v129, 0.01
  %v147 = vsel %vm131, %v91, %v139
  %v148 = vsel %vm132, %v120, %v140
  %v149 = vsel %vm133, %v94, %v141
  %v150 = vsel %vm134, %v123, %v142
  %v151 = vsel %vm135, %v97, %v143
  %v152 = vsel %vm136, %v126, %v144
  %v153 = vsel %vm137, %v100, %v145
  %v154 = vsel %vm138, %v129, %v146
  %155 = vst [vmem:[%s3] sm:$0xff] %v147
  %156 = vst [vmem:[%s3 + $0x8] sm:$0xff] %v148
  %157 = vst [vmem:[%s3 + $0x10] sm:$0xff] %v149
  %158 = vst [vmem:[%s3 + $0x18] sm:$0xff] %v150
  %159 = vst [vmem:[%s3 + $0x20] sm:$0xff] %v151
  %160 = vst [vmem:[%s3 + $0x28] sm:$0xff] %v152
  %161 = vst [vmem:[%s3 + $0x30] sm:$0xff] %v153
  %162 = vst [vmem:[%s3 + $0x38] sm:$0xff] %v154
  // Predicated region
  $region14: #{image_coding_forward.68} parent=0 // pred_check
    _
  $region15: #{image_coding_forward.68} parent=0 // pred_check_branch
    %164 = sbr.rel (0) target = $region17
  $region16: #{image_coding_forward.68} parent=0 // pred_region
    _
  $region17: #{image_coding_forward.68} parent=0 // pred_fallthru
    _
  // Predicated region
  $region18: #{image_coding_forward.68} parent=0 // pred_check
    _
  $region19: #{image_coding_forward.68} parent=0 // pred_check_branch
    %166 = sbr.rel (0) target = $region21
  $region20: #{image_coding_forward.68} parent=0 // pred_region
    _
  $region21: #{image_coding_forward.68} parent=0 // pred_fallthru
    _

// kernel: image_coding_forward.73
$region0: #{image_coding_forward.73}
  #allocation0 [shape = 'u32[]', space=smem, size = 0x4, offset = 0x4, fixed_abs, tag = 'smem constant byte address 0x4 - core index']
  #allocation1 [shape = 'u32[72,128]{1,0:T(1,128)}', space=vmem, size = 0x9000, scoped, tag = 'internal scratch']
  %s0 = inlined_call_operand.vmem [shape: f32[12,72], index: 0, kind: input, shape index: {}]
  %s1 = inlined_call_operand.vmem [shape: f32[72,1024], index: 1, kind: input, shape index: {}]
  %s2 = inlined_call_operand.vmem [shape: f32[12,1], index: 2, kind: input, shape index: {}]
  %s3 = inlined_call_operand.vmem [shape: f32[12,1024], index: 3, kind: output, shape index: {}]
  %s4 = sld [smem:[#allocation0]]
  $region87: #{image_coding_forward.73} parent=0
    _
  %s6 = ssub.s32 1, %s4
  %s7 = scalar_select 0, %s6, %s4
  $region1: #{image_coding_forward.73} parent=0
    #allocation2 [shape = 'u8[294912]{0}', space=vmem, size = 0x48000, scoped, tag = 'input window, operand 1']
    #allocation3 [shape = 'u8[65536]{0}', space=vmem, size = 0x10000, scoped, tag = 'output window, operand 0']
    loop: start=0, step=1, limit=4
    $region2: #{image_coding_forward.73} parent=1 // loop_pre_header
      _
    $region3: #{image_coding_forward.73} parent=1 // loop_header
      %s9 = sphi 0, %s13
      %p10 = scmp.ge.s32.totalorder %s9, 4
      %s17 = sphi 0, %s17
      %s19 = sphi 0, %s17
      %s20 = sphi 0, %s19
      %s34 = sphi 0, %s20
      %s40 = sphi 0, %s42
      %s43 = sphi 0, %s40
      %s44 = sphi 0, %s43
      %s60 = sphi 0, %s44
      %s64 = sphi 0, %s64
      %s66 = sphi 0, %s64
      %s67 = sphi 0, %s66
      %s81 = sphi 0, %s67
      %s87 = sphi 0, %s89
      %s90 = sphi 0, %s87
      %s91 = sphi 0, %s90
      %s107 = sphi 0, %s91
    $region4: #{image_coding_forward.73} parent=1 // loop_header_branch
      %12 = sbr.rel (%p10) target = $region8
    $region5: #{image_coding_forward.73} parent=1 // loop_body
      %s14 = ssub.s32 %s9, 1
      %s15 = ssub.s32 %s9, 2
      %s16 = sadd.s32 %s9, 1
      %s18 = sadd.s32 %s17, 1
      %p21 = scmp.eq.s32.totalorder %s9, 1
      %p22 = scmp.ne.s32.totalorder %s17, %s19
      %p23 = scmp.eq.s32.totalorder %s9, 0
      %p24 = por %p22, %p23
      %p25 = scmp.ne.s32.totalorder %s17, %s19
      %p26 = scmp.eq.s32.totalorder %s14, 1
      %p27 = por %p25, %p26
      %p28 = scmp.ne.s32.totalorder %s19, %s20
      %p29 = scmp.eq.s32.totalorder %s14, 0
      %p30 = por %p28, %p29
      %p31 = scmp.ne.s32.totalorder %s19, %s20
      %p32 = scmp.eq.s32.totalorder %s15, 1
      %p33 = por %p31, %p32
      %p35 = scmp.ne.s32.totalorder %s20, %s34
      %p36 = scmp.eq.s32.totalorder %s15, 0
      %p37 = por %p35, %p36
      %s38 = ssub.s32 %s9, %s16
      %p39 = scmp.eq.s32.totalorder %s38, 0
      %s41 = sadd.s32 %s40, 1
      %s42 = scalar_select %p39, %s40, %s41
      %p45 = pneg %p39
      %p46 = scmp.eq.s32.totalorder %s9, 1
      %p47 = por %p45, %p46
      %p48 = scmp.ne.s32.totalorder %s40, %s43
      %p49 = scmp.eq.s32.totalorder %s9, 0
      %p50 = por %p48, %p49
      %p51 = scmp.ne.s32.totalorder %s40, %s43
      %p52 = scmp.eq.s32.totalorder %s14, 1
      %p53 = por %p51, %p52
      %p54 = scmp.ne.s32.totalorder %s43, %s44
      %p55 = scmp.eq.s32.totalorder %s14, 0
      %p56 = por %p54, %p55
      %p57 = scmp.ne.s32.totalorder %s43, %s44
      %p58 = scmp.eq.s32.totalorder %s15, 1
      %p59 = por %p57, %p58
      %p61 = scmp.ne.s32.totalorder %s44, %s60
      %p62 = scmp.eq.s32.totalorder %s15, 0
      %p63 = por %p61, %p62
      %s65 = sadd.s32 %s64, 1
      %p68 = scmp.eq.s32.totalorder %s9, 1
      %p69 = scmp.ne.s32.totalorder %s64, %s66
      %p70 = scmp.eq.s32.totalorder %s9, 0
      %p71 = por %p69, %p70
      %p72 = scmp.ne.s32.totalorder %s64, %s66
      %p73 = scmp.eq.s32.totalorder %s14, 1
      %p74 = por %p72, %p73
      %p75 = scmp.ne.s32.totalorder %s66, %s67
      %p76 = scmp.eq.s32.totalorder %s14, 0
      %p77 = por %p75, %p76
      %p78 = scmp.ne.s32.totalorder %s66, %s67
      %p79 = scmp.eq.s32.totalorder %s15, 1
      %p80 = por %p78, %p79
      %p82 = scmp.ne.s32.totalorder %s67, %s81
      %p83 = scmp.eq.s32.totalorder %s15, 0
      %p84 = por %p82, %p83
      %s85 = ssub.s32 %s9, %s16
      %p86 = scmp.eq.s32.totalorder %s85, 0
      %s88 = sadd.s32 %s87, 1
      %s89 = scalar_select %p86, %s87, %s88
      %p92 = pneg %p86
      %p93 = scmp.eq.s32.totalorder %s9, 1
      %p94 = por %p92, %p93
      %p95 = scmp.ne.s32.totalorder %s87, %s90
      %p96 = scmp.eq.s32.totalorder %s9, 0
      %p97 = por %p95, %p96
      %p98 = scmp.ne.s32.totalorder %s87, %s90
      %p99 = scmp.eq.s32.totalorder %s14, 1
      %p100 = por %p98, %p99
      %p101 = scmp.ne.s32.totalorder %s90, %s91
      %p102 = scmp.eq.s32.totalorder %s14, 0
      %p103 = por %p101, %p102
      %p104 = scmp.ne.s32.totalorder %s90, %s91
      %p105 = scmp.eq.s32.totalorder %s15, 1
      %p106 = por %p104, %p105
      %p108 = scmp.ne.s32.totalorder %s91, %s107
      %p109 = scmp.eq.s32.totalorder %s15, 0
      %p110 = por %p108, %p109
      %p111 = scmp.le.s32.totalorder 1, %s9
      %p112 = scmp.lt.s32.totalorder %s9, 3
      %p113 = pnand %p111, %p112
      %p114 = pneg %p113
      // Predicated region
      $region9: #{image_coding_forward.73} parent=5 // pred_check
        _
      $region10: #{image_coding_forward.73} parent=5 // pred_check_branch
        %116 = sbr.rel (%p113) target = $region12
      $region11: #{image_coding_forward.73} parent=5 // pred_region
        %s117 = ssub.s32 %s9, 1
        // Predicated region
        $region13: #{image_coding_forward.73} parent=11 // pred_check
          %p118 = pneg %p30
        $region14: #{image_coding_forward.73} parent=11 // pred_check_branch
          %120 = sbr.rel (%p118) target = $region16
        $region15: #{image_coding_forward.73} parent=11 // pred_region
          _
        $region16: #{image_coding_forward.73} parent=11 // pred_fallthru
          _
        // Predicated region
        $region17: #{image_coding_forward.73} parent=11 // pred_check
          %p121 = pneg %p77
        $region18: #{image_coding_forward.73} parent=11 // pred_check_branch
          %123 = sbr.rel (%p121) target = $region20
        $region19: #{image_coding_forward.73} parent=11 // pred_region
          _
        $region20: #{image_coding_forward.73} parent=11 // pred_fallthru
          _
      $region12: #{image_coding_forward.73} parent=5 // pred_fallthru
        _
      %p124 = scmp.lt.s32.totalorder %s9, 2
      // Predicated region
      $region21: #{image_coding_forward.73} parent=5 // pred_check
        %p125 = pneg %p124
      $region22: #{image_coding_forward.73} parent=5 // pred_check_branch
        %127 = sbr.rel (%p125) target = $region24
      $region23: #{image_coding_forward.73} parent=5 // pred_region
        // Predicated region
        $region25: #{image_coding_forward.73} parent=23 // pred_check
          %p128 = pneg %p50
        $region26: #{image_coding_forward.73} parent=23 // pred_check_branch
          %130 = sbr.rel (%p128) target = $region28
        $region27: #{image_coding_forward.73} parent=23 // pred_region
          %s131 = sand.u32 %s40, 1
          %s132 = sand.u32 %s40, 1
          %s133 = smul.addr %s132, 288
          %s134 = scalar_lea.vmem [#allocation2], %s133
          %s135 = smul.u32 4, %s9
          %s136 = smul.addr %s135, 8
          %s137 = scalar_lea.vmem %s1, %s136
          // Predicated region
          $region29: #{image_coding_forward.73} parent=27 // pred_check
            _
          $region30: #{image_coding_forward.73} parent=27 // pred_check_branch
            %139 = sbr.rel (0) target = $region32
          $region31: #{image_coding_forward.73} parent=27 // pred_region
            // Predicated region
            $region33: #{image_coding_forward.73} parent=31 // pred_check
              _
            $region34: #{image_coding_forward.73} parent=31 // pred_check_branch
              %141 = sbr.rel (0) target = $region36
            $region35: #{image_coding_forward.73} parent=31 // pred_region
              loop: start=0, step=1, limit=1
              $region37: #{image_coding_forward.73} parent=35 // loop_pre_header
                _
              $region38: #{image_coding_forward.73} parent=35 // loop_header
                %s143 = sphi 0, %s147
                %p144 = scmp.ge.s32.totalorder %s143, 1
                %s148 = sphi %s137, %s137
                %s149 = sphi %s134, %s134
              $region39: #{image_coding_forward.73} parent=35 // loop_header_branch
                %146 = sbr.rel (%p144) target = $region43
              $region40: #{image_coding_forward.73} parent=35 // loop_body
                %v150 = vld [vmem:[%s148] sm:$0xff]
                %151 = vst [vmem:[%s149] sm:$0xff] %v150
                %v152 = vld [vmem:[%s148 + $0x8] sm:$0xff]
                %153 = vst [vmem:[%s149 + $0x8] sm:$0xff] %v152
                %v154 = vld [vmem:[%s148 + $0x10] sm:$0xff]
                %155 = vst [vmem:[%s149 + $0x10] sm:$0xff] %v154
                %v156 = vld [vmem:[%s148 + $0x18] sm:$0xff]
                %157 = vst [vmem:[%s149 + $0x18] sm:$0xff] %v156
                %v158 = vld [vmem:[%s148 + $0x40] sm:$0xff]
                %159 = vst [vmem:[%s149 + $0x20] sm:$0xff] %v158
                %v160 = vld [vmem:[%s148 + $0x48] sm:$0xff]
                %161 = vst [vmem:[%s149 + $0x28] sm:$0xff] %v160
                %v162 = vld [vmem:[%s148 + $0x50] sm:$0xff]
                %163 = vst [vmem:[%s149 + $0x30] sm:$0xff] %v162
                %v164 = vld [vmem:[%s148 + $0x58] sm:$0xff]
                %165 = vst [vmem:[%s149 + $0x38] sm:$0xff] %v164
                %v166 = vld [vmem:[%s148 + $0x80] sm:$0xff]
                %167 = vst [vmem:[%s149 + $0x40] sm:$0xff] %v166
                %v168 = vld [vmem:[%s148 + $0x88] sm:$0xff]
                %169 = vst [vmem:[%s149 + $0x48] sm:$0xff] %v168
                %v170 = vld [vmem:[%s148 + $0x90] sm:$0xff]
                %171 = vst [vmem:[%s149 + $0x50] sm:$0xff] %v170
                %v172 = vld [vmem:[%s148 + $0x98] sm:$0xff]
                %173 = vst [vmem:[%s149 + $0x58] sm:$0xff] %v172
                %v174 = vld [vmem:[%s148 + $0xc0] sm:$0xff]
                %175 = vst [vmem:[%s149 + $0x60] sm:$0xff] %v174
                %v176 = vld [vmem:[%s148 + $0xc8] sm:$0xff]
                %177 = vst [vmem:[%s149 + $0x68] sm:$0xff] %v176
                %v178 = vld [vmem:[%s148 + $0xd0] sm:$0xff]
                %179 = vst [vmem:[%s149 + $0x70] sm:$0xff] %v178
                %v180 = vld [vmem:[%s148 + $0xd8] sm:$0xff]
                %181 = vst [vmem:[%s149 + $0x78] sm:$0xff] %v180
                %v182 = vld [vmem:[%s148 + $0x100] sm:$0xff]
                %183 = vst [vmem:[%s149 + $0x80] sm:$0xff] %v182
                %v184 = vld [vmem:[%s148 + $0x108] sm:$0xff]
                %185 = vst [vmem:[%s149 + $0x88] sm:$0xff] %v184
                %v186 = vld [vmem:[%s148 + $0x110] sm:$0xff]
                %187 = vst [vmem:[%s149 + $0x90] sm:$0xff] %v186
                %v188 = vld [vmem:[%s148 + $0x118] sm:$0xff]
                %189 = vst [vmem:[%s149 + $0x98] sm:$0xff] %v188
                %v190 = vld [vmem:[%s148 + $0x140] sm:$0xff]
                %191 = vst [vmem:[%s149 + $0xa0] sm:$0xff] %v190
                %v192 = vld [vmem:[%s148 + $0x148] sm:$0xff]
                %193 = vst [vmem:[%s149 + $0xa8] sm:$0xff] %v192
                %v194 = vld [vmem:[%s148 + $0x150] sm:$0xff]
                %195 = vst [vmem:[%s149 + $0xb0] sm:$0xff] %v194
                %v196 = vld [vmem:[%s148 + $0x158] sm:$0xff]
                %197 = vst [vmem:[%s149 + $0xb8] sm:$0xff] %v196
                %v198 = vld [vmem:[%s148 + $0x180] sm:$0xff]
                %199 = vst [vmem:[%s149 + $0xc0] sm:$0xff] %v198
                %v200 = vld [vmem:[%s148 + $0x188] sm:$0xff]
                %201 = vst [vmem:[%s149 + $0xc8] sm:$0xff] %v200
                %v202 = vld [vmem:[%s148 + $0x190] sm:$0xff]
                %203 = vst [vmem:[%s149 + $0xd0] sm:$0xff] %v202
                %v204 = vld [vmem:[%s148 + $0x198] sm:$0xff]
                %205 = vst [vmem:[%s149 + $0xd8] sm:$0xff] %v204
                %v206 = vld [vmem:[%s148 + $0x1c0] sm:$0xff]
                %207 = vst [vmem:[%s149 + $0xe0] sm:$0xff] %v206
                %v208 = vld [vmem:[%s148 + $0x1c8] sm:$0xff]
                %209 = vst [vmem:[%s149 + $0xe8] sm:$0xff] %v208
                %v210 = vld [vmem:[%s148 + $0x1d0] sm:$0xff]
                %211 = vst [vmem:[%s149 + $0xf0] sm:$0xff] %v210
                %v212 = vld [vmem:[%s148 + $0x1d8] sm:$0xff]
                %213 = vst [vmem:[%s149 + $0xf8] sm:$0xff] %v212
                %v214 = vld [vmem:[%s148 + $0x200] sm:$0xff]
                %215 = vst [vmem:[%s149 + $0x100] sm:$0xff] %v214
                %v216 = vld [vmem:[%s148 + $0x208] sm:$0xff]
                %217 = vst [vmem:[%s149 + $0x108] sm:$0xff] %v216
                %v218 = vld [vmem:[%s148 + $0x210] sm:$0xff]
                %219 = vst [vmem:[%s149 + $0x110] sm:$0xff] %v218
                %v220 = vld [vmem:[%s148 + $0x218] sm:$0xff]
                %221 = vst [vmem:[%s149 + $0x118] sm:$0xff] %v220
              $region41: #{image_coding_forward.73} parent=35 // loop_footer
                %s147 = sadd.s32 1, %s143
              $region42: #{image_coding_forward.73} parent=35 // loop_footer_branch
                %142 = sbr.rel target = $region38
              $region43: #{image_coding_forward.73} parent=35 // loop_exit
                _
            $region36: #{image_coding_forward.73} parent=31 // pred_fallthru
              _
            // Predicated region
            $region44: #{image_coding_forward.73} parent=31 // pred_check
              _
            $region45: #{image_coding_forward.73} parent=31 // pred_check_branch
              %223 = sbr.rel target = $region47
            $region46: #{image_coding_forward.73} parent=31 // pred_region
              _
            $region47: #{image_coding_forward.73} parent=31 // pred_fallthru
              _
          $region32: #{image_coding_forward.73} parent=27 // pred_fallthru
            _
          %224 = vnop
        $region28: #{image_coding_forward.73} parent=23 // pred_fallthru
          _
      $region24: #{image_coding_forward.73} parent=5 // pred_fallthru
        _
      %p225 = scmp.le.s32.totalorder 1, %s9
      %p226 = scmp.lt.s32.totalorder %s9, 3
      %p227 = pnand %p225, %p226
      %p228 = pneg %p227
      // Predicated region
      $region48: #{image_coding_forward.73} parent=5 // pred_check
        _
      $region49: #{image_coding_forward.73} parent=5 // pred_check_branch
        %230 = sbr.rel (%p227) target = $region51
      $region50: #{image_coding_forward.73} parent=5 // pred_region
        %s231 = ssub.s32 %s9, 1
        %s232 = sand.u32 %s43, 1
        %s233 = sand.u32 %s43, 1
        %s234 = smul.addr %s233, 288
        %s235 = scalar_lea.vmem [#allocation2], %s234
        // Predicated region
        $region52: #{image_coding_forward.73} parent=50 // pred_check
          %p236 = pneg %p56
        $region53: #{image_coding_forward.73} parent=50 // pred_check_branch
          %238 = sbr.rel (%p236) target = $region55
        $region54: #{image_coding_forward.73} parent=50 // pred_region
          _
        $region55: #{image_coding_forward.73} parent=50 // pred_fallthru
          _
        %p239 = pneg %p30
        %p240 = pneg %p27
        %s241 = sand.u32 %s43, 1
        %s242 = sand.u32 %s43, 1
        %s243 = smul.addr %s242, 288
        %s244 = scalar_lea.vmem [#allocation2], %s243
        %p245 = pneg %p56
        %p246 = pneg %p53
        %p247 = pneg %p77
        %p248 = pneg %p74
        %p249 = pneg %p103
        %p250 = pneg %p100
        %s251 = sand.u32 %s90, 1
        %s252 = sand.u32 %s90, 1
        %s253 = smul.addr %s252, 64
        %s254 = scalar_lea.vmem [#allocation3], %s253
        %s255 = smul.u32 4, %s14
        %s256 = smul.u32 4, %s14
        %v257 = vld [vmem:[%s0] sm:$0xff]
        %v258 = vld [vmem:[%s0 + $0x8] sm:$0xf]
        %v259 = vld [vmem:[%s235] sm:$0xff]
        %v260 = vld [vmem:[%s235 + $0x8] sm:$0xff]
        %v261 = vld [vmem:[%s235 + $0x10] sm:$0xff]
        %v262 = vld [vmem:[%s235 + $0x18] sm:$0xff]
        %v263 = vld [vmem:[%s235 + $0x20] sm:$0xff]
        %v264 = vld [vmem:[%s235 + $0x28] sm:$0xff]
        %v265 = vld [vmem:[%s235 + $0x30] sm:$0xff]
        %v266 = vld [vmem:[%s235 + $0x38] sm:$0xff]
        %v267 = vld [vmem:[%s235 + $0x40] sm:$0xff]
        %v268 = vld [vmem:[%s235 + $0x48] sm:$0xff]
        %v269 = vld [vmem:[%s235 + $0x50] sm:$0xff]
        %v270 = vld [vmem:[%s235 + $0x58] sm:$0xff]
        %v271 = vld [vmem:[%s235 + $0x60] sm:$0xff]
        %v272 = vld [vmem:[%s235 + $0x68] sm:$0xff]
        %v273 = vld [vmem:[%s235 + $0x70] sm:$0xff]
        %v274 = vld [vmem:[%s235 + $0x78] sm:$0xff]
        %v275 = vld [vmem:[%s235 + $0x80] sm:$0xff]
        %v276 = vld [vmem:[%s235 + $0x88] sm:$0xff]
        %v277 = vld [vmem:[%s235 + $0x90] sm:$0xff]
        %v278 = vld [vmem:[%s235 + $0x98] sm:$0xff]
        %v279 = vld [vmem:[%s235 + $0xa0] sm:$0xff]
        %v280 = vld [vmem:[%s235 + $0xa8] sm:$0xff]
        %v281 = vld [vmem:[%s235 + $0xb0] sm:$0xff]
        %v282 = vld [vmem:[%s235 + $0xb8] sm:$0xff]
        %v283 = vld [vmem:[%s235 + $0xc0] sm:$0xff]
        %v284 = vld [vmem:[%s235 + $0xc8] sm:$0xff]
        %v285 = vld [vmem:[%s235 + $0xd0] sm:$0xff]
        %v286 = vld [vmem:[%s235 + $0xd8] sm:$0xff]
        %v287 = vld [vmem:[%s235 + $0xe0] sm:$0xff]
        %v288 = vld [vmem:[%s235 + $0xe8] sm:$0xff]
        %v289 = vld [vmem:[%s235 + $0xf0] sm:$0xff]
        %v290 = vld [vmem:[%s235 + $0xf8] sm:$0xff]
        %v291 = vld [vmem:[%s235 + $0x100] sm:$0xff]
        %v292 = vld [vmem:[%s235 + $0x108] sm:$0xff]
        %v293 = vld [vmem:[%s235 + $0x110] sm:$0xff]
        %v294 = vld [vmem:[%s235 + $0x118] sm:$0xff]
        %v295 = vld [vmem:[%s2] sm:$0xff]
        %v296 = vld [vmem:[%s2 + $0x8] sm:$0xf]
        %298 = vset.pattern.permute.xlu0 0
        %299 = vperm.xlu0 %298, %v295
        %v300 = vpop.permute.xlu0 %299
        %303 = vset.pattern.permute.xlu0 0
        %304 = vperm.xlu0 %303, %v296
        %v305 = vpop.permute.xlu0 %304
        %vm307 = vcmask 588800
        %v309 = vsel %vm307, %v257, 0
        %v312 = vsel %vm307, %v258, 0
        %314 = vmatpush.msra.mxu0 0.0
        %315 = vmatpush.msra.mxu0 0.0
        %316 = vmatpush.msra.mxu0 0.0
        %317 = vmatpush.msra.mxu0 0.0
        %318 = vmatpush.msra.mxu0 0.0
        %319 = vmatpush.msra.mxu0 0.0
        %320 = vmatpush.msra.mxu0 0.0
        %321 = vmatpush.msra.mxu0 %v291
        %322 = vmatpush.msra.mxu0 %v287
        %323 = vmatpush.msra.mxu0 %v283
        %324 = vmatpush.msra.mxu0 %v279
        %325 = vmatpush.msra.mxu0 %v275
        %326 = vmatpush.msra.mxu0 %v271
        %327 = vmatpush.msra.mxu0 %v267
        %328 = vmatpush.msra.mxu0 %v263
        %329 = vmatpush.msra.mxu0 %v259
        %330 = vmatmul.f32.gmra.mxu0 %v309
        %v331 = vpop.f32.mrf.mxu0
        %v332 = vadd.f32 %v300, %v331
        %333 = vmatmul.f32.gmra.mxu0 %v312
        %v334 = vpop.f32.mrf.mxu0
        %v335 = vadd.f32 %v305, %v334
        %336 = vdwg.mxu0
        %337 = vmatpush.msra.mxu0 0.0
        %338 = vmatpush.msra.mxu0 0.0
        %339 = vmatpush.msra.mxu0 0.0
        %340 = vmatpush.msra.mxu0 0.0
        %341 = vmatpush.msra.mxu0 0.0
        %342 = vmatpush.msra.mxu0 0.0
        %343 = vmatpush.msra.mxu0 0.0
        %344 = vmatpush.msra.mxu0 %v292
        %345 = vmatpush.msra.mxu0 %v288
        %346 = vmatpush.msra.mxu0 %v284
        %347 = vmatpush.msra.mxu0 %v280
        %348 = vmatpush.msra.mxu0 %v276
        %349 = vmatpush.msra.mxu0 %v272
        %350 = vmatpush.msra.mxu0 %v268
        %351 = vmatpush.msra.mxu0 %v264
        %352 = vmatpush.msra.mxu0 %v260
        %353 = vmatmul.f32.gmra.mxu0 %v309
        %v354 = vpop.f32.mrf.mxu0
        %v355 = vadd.f32 %v300, %v354
        %356 = vmatmul.f32.gmra.mxu0 %v312
        %v357 = vpop.f32.mrf.mxu0
        %v358 = vadd.f32 %v305, %v357
        %359 = vdwg.mxu0
        %360 = vmatpush.msra.mxu0 0.0
        %361 = vmatpush.msra.mxu0 0.0
        %362 = vmatpush.msra.mxu0 0.0
        %363 = vmatpush.msra.mxu0 0.0
        %364 = vmatpush.msra.mxu0 0.0
        %365 = vmatpush.msra.mxu0 0.0
        %366 = vmatpush.msra.mxu0 0.0
        %367 = vmatpush.msra.mxu0 %v293
        %368 = vmatpush.msra.mxu0 %v289
        %369 = vmatpush.msra.mxu0 %v285
        %370 = vmatpush.msra.mxu0 %v281
        %371 = vmatpush.msra.mxu0 %v277
        %372 = vmatpush.msra.mxu0 %v273
        %373 = vmatpush.msra.mxu0 %v269
        %374 = vmatpush.msra.mxu0 %v265
        %375 = vmatpush.msra.mxu0 %v261
        %376 = vmatmul.f32.gmra.mxu0 %v309
        %v377 = vpop.f32.mrf.mxu0
        %v378 = vadd.f32 %v300, %v377
        %379 = vmatmul.f32.gmra.mxu0 %v312
        %v380 = vpop.f32.mrf.mxu0
        %v381 = vadd.f32 %v305, %v380
        %382 = vdwg.mxu0
        %383 = vmatpush.msra.mxu0 0.0
        %384 = vmatpush.msra.mxu0 0.0
        %385 = vmatpush.msra.mxu0 0.0
        %386 = vmatpush.msra.mxu0 0.0
        %387 = vmatpush.msra.mxu0 0.0
        %388 = vmatpush.msra.mxu0 0.0
        %389 = vmatpush.msra.mxu0 0.0
        %390 = vmatpush.msra.mxu0 %v294
        %391 = vmatpush.msra.mxu0 %v290
        %392 = vmatpush.msra.mxu0 %v286
        %393 = vmatpush.msra.mxu0 %v282
        %394 = vmatpush.msra.mxu0 %v278
        %395 = vmatpush.msra.mxu0 %v274
        %396 = vmatpush.msra.mxu0 %v270
        %397 = vmatpush.msra.mxu0 %v266
        %398 = vmatpush.msra.mxu0 %v262
        %399 = vmatmul.f32.gmra.mxu0 %v309
        %v400 = vpop.f32.mrf.mxu0
        %v401 = vadd.f32 %v300, %v400
        %402 = vmatmul.f32.gmra.mxu0 %v312
        %v403 = vpop.f32.mrf.mxu0
        %v404 = vadd.f32 %v305, %v403
        %405 = vdwg.mxu0
        %406 = vst [vmem:[%s254] sm:$0xff] %v332
        %407 = vst [vmem:[%s254 + $0x8] sm:$0xff] %v355
        %408 = vst [vmem:[%s254 + $0x10] sm:$0xff] %v378
        %409 = vst [vmem:[%s254 + $0x18] sm:$0xff] %v401
        %410 = vst [vmem:[%s254 + $0x20] sm:$0xf] %v335
        %411 = vst [vmem:[%s254 + $0x28] sm:$0xf] %v358
        %412 = vst [vmem:[%s254 + $0x30] sm:$0xf] %v381
        %413 = vst [vmem:[%s254 + $0x38] sm:$0xf] %v404
        %s414 = sand.u32 %s90, 1
        %s415 = sand.u32 %s90, 1
        %s416 = smul.addr %s415, 64
        %s417 = scalar_lea.vmem [#allocation3], %s416
        // Predicated region
        $region56: #{image_coding_forward.73} parent=50 // pred_check
          %p418 = pneg %p100
        $region57: #{image_coding_forward.73} parent=50 // pred_check_branch
          %420 = sbr.rel (%p418) target = $region59
        $region58: #{image_coding_forward.73} parent=50 // pred_region
          %s421 = smul.u32 4, %s14
          %s422 = smul.addr %s421, 8
          %s423 = scalar_lea.vmem %s3, %s422
          // Predicated region
          $region60: #{image_coding_forward.73} parent=58 // pred_check
            _
          $region61: #{image_coding_forward.73} parent=58 // pred_check_branch
            %425 = sbr.rel (0) target = $region63
          $region62: #{image_coding_forward.73} parent=58 // pred_region
            // Predicated region
            $region64: #{image_coding_forward.73} parent=62 // pred_check
              _
            $region65: #{image_coding_forward.73} parent=62 // pred_check_branch
              %427 = sbr.rel (0) target = $region67
            $region66: #{image_coding_forward.73} parent=62 // pred_region
              loop: start=0, step=1, limit=1
              $region68: #{image_coding_forward.73} parent=66 // loop_pre_header
                _
              $region69: #{image_coding_forward.73} parent=66 // loop_header
                %s429 = sphi 0, %s433
                %p430 = scmp.ge.s32.totalorder %s429, 1
                %s434 = sphi %s417, %s417
                %s435 = sphi %s423, %s423
              $region70: #{image_coding_forward.73} parent=66 // loop_header_branch
                %432 = sbr.rel (%p430) target = $region74
              $region71: #{image_coding_forward.73} parent=66 // loop_body
                %v436 = vld [vmem:[%s434] sm:$0xff]
                %437 = vst [vmem:[%s435] sm:$0xff] %v436
                %v438 = vld [vmem:[%s434 + $0x8] sm:$0xff]
                %439 = vst [vmem:[%s435 + $0x8] sm:$0xff] %v438
                %v440 = vld [vmem:[%s434 + $0x10] sm:$0xff]
                %441 = vst [vmem:[%s435 + $0x10] sm:$0xff] %v440
                %v442 = vld [vmem:[%s434 + $0x18] sm:$0xff]
                %443 = vst [vmem:[%s435 + $0x18] sm:$0xff] %v442
                %v444 = vld [vmem:[%s434 + $0x20] sm:$0xff]
                %445 = vst [vmem:[%s435 + $0x40] sm:$0xff] %v444
                %v446 = vld [vmem:[%s434 + $0x28] sm:$0xff]
                %447 = vst [vmem:[%s435 + $0x48] sm:$0xff] %v446
                %v448 = vld [vmem:[%s434 + $0x30] sm:$0xff]
                %449 = vst [vmem:[%s435 + $0x50] sm:$0xff] %v448
                %v450 = vld [vmem:[%s434 + $0x38] sm:$0xff]
                %451 = vst [vmem:[%s435 + $0x58] sm:$0xff] %v450
              $region72: #{image_coding_forward.73} parent=66 // loop_footer
                %s433 = sadd.s32 1, %s429
              $region73: #{image_coding_forward.73} parent=66 // loop_footer_branch
                %428 = sbr.rel target = $region69
              $region74: #{image_coding_forward.73} parent=66 // loop_exit
                _
            $region67: #{image_coding_forward.73} parent=62 // pred_fallthru
              _
            // Predicated region
            $region75: #{image_coding_forward.73} parent=62 // pred_check
              _
            $region76: #{image_coding_forward.73} parent=62 // pred_check_branch
              %453 = sbr.rel target = $region78
            $region77: #{image_coding_forward.73} parent=62 // pred_region
              _
            $region78: #{image_coding_forward.73} parent=62 // pred_fallthru
              _
          $region63: #{image_coding_forward.73} parent=58 // pred_fallthru
            _
          %454 = vnop
        $region59: #{image_coding_forward.73} parent=50 // pred_fallthru
          _
      $region51: #{image_coding_forward.73} parent=5 // pred_fallthru
        _
      %p455 = scmp.le.s32.totalorder 2, %s9
      // Predicated region
      $region79: #{image_coding_forward.73} parent=5 // pred_check
        %p456 = pneg %p455
      $region80: #{image_coding_forward.73} parent=5 // pred_check_branch
        %458 = sbr.rel (%p456) target = $region82
      $region81: #{image_coding_forward.73} parent=5 // pred_region
        %s459 = ssub.s32 %s9, 2
        // Predicated region
        $region83: #{image_coding_forward.73} parent=81 // pred_check
          %p460 = pneg %p106
        $region84: #{image_coding_forward.73} parent=81 // pred_check_branch
          %462 = sbr.rel (%p460) target = $region86
        $region85: #{image_coding_forward.73} parent=81 // pred_region
          %s463 = sand.u32 %s91, 1
          %s464 = sand.u32 %s91, 1
          %s465 = smul.addr %s464, 64
          %s466 = scalar_lea.vmem [#allocation3], %s465
        $region86: #{image_coding_forward.73} parent=81 // pred_fallthru
          _
      $region82: #{image_coding_forward.73} parent=5 // pred_fallthru
        _
    $region6: #{image_coding_forward.73} parent=1 // loop_footer
      %s13 = sadd.s32 1, %s9
    $region7: #{image_coding_forward.73} parent=1 // loop_footer_branch
      %8 = sbr.rel target = $region3
    $region8: #{image_coding_forward.73} parent=1 // loop_exit
      _

</llo_original>
